<compile_context>
chip_gen: v7x
topology: tpu7x:2x2x1
jax: 0.10.0
libtpu: 0.0.40
codegen_flags: <defaults>
</compile_context>

<pallas_src>
import functools

import jax
import jax.numpy as jnp
from jax.experimental import pallas as pl
from jax.experimental.pallas import tpu as pltpu

NEG_SLOPE = 0.01     # nn.LeakyReLU default
OUT_LANES = 128      # lane-dense packed output width


def _lrelu(x):
    return jnp.where(x >= 0, x, NEG_SLOPE * x)


def _dot(a, b):
    # bf16 MXU operands, f32 accumulation; RHS weights are already bf16.
    return jnp.dot(a.astype(jnp.bfloat16), b, preferred_element_type=jnp.float32)


def _lstm_cell(gp, c, H):
    # PyTorch gate order: i, f, g, o.  Two full-vreg transcendentals instead
    # of four sub-vreg ones (EUP works per-vreg; (BB, 4H) is a single vreg).
    sg = jax.nn.sigmoid(gp)
    tg = jnp.tanh(gp)
    i = sg[:, 0 * H:1 * H]
    f = sg[:, 1 * H:2 * H]
    g = tg[:, 2 * H:3 * H]
    o = sg[:, 3 * H:4 * H]
    c_new = f * c + i * g
    h_new = o * jnp.tanh(c_new)
    return h_new, c_new


def appearance_encoder_kernel(x_ref, w_ref, b_ref, out_ref,
                              *, BB, T, n_out, I, H, S, V, woff, boff):
    """x_ref: (T*BB, I+H) time-major rows; w_ref: bf16 weight slab;
    b_ref: f32 bias slab; out_ref: (TN*BB, 128) packed lane-dense output."""
    TN = T + n_out
    f32 = jnp.float32

    def wslice(name):
        off, r, c = woff[name]
        return w_ref[off:off + r, 0:c]          # static, tile-aligned slice

    b_all = b_ref[...]                          # (RB, lanes) f32, loaded once

    def bslice(name):
        row, c = boff[name]
        return b_all[row:row + 1, 0:c]

    # ---- weights (bf16, sliced from the slab, hoisted) ----
    e_w0 = wslice("e_w0")        # (I+H, 4H)  [W_ih0_x ; W_ih0_prev]
    e_whh0 = wslice("e_whh0")    # (H, 4H)
    e_w1 = wslice("e_w1")        # (2H, 4H)   [W_ih1 ; W_hh1]
    p_wih0 = wslice("p_wih0")    # (H, 4H)
    p_wih1 = wslice("p_wih1")    # (H, 4H)
    wv0h = wslice("wv0h")        # (H, H)
    ws = wslice("ws")            # (H, S)
    wv = wslice("wv")            # (H, V)
    wi = wslice("wi")            # (H, V)
    w_stat = wslice("w_stat")    # (S, 2H)    [wi0s | wv0s]
    wi0x = wslice("wi0x")        # (I, H)

    # ---- biases (f32), broadcasts hoisted out of the loops ----
    e_b0 = bslice("e_b0")                                    # (1, 4H)
    e_b1 = jnp.broadcast_to(bslice("e_b1"), (BB, 4 * H))
    p_b0 = jnp.broadcast_to(bslice("p_b0"), (BB, 4 * H))
    p_b1 = jnp.broadcast_to(bslice("p_b1"), (BB, 4 * H))
    bv0 = bslice("bv0")                                      # (1, H)
    bs = bslice("bs")                                        # (1, S)
    bv = bslice("bv")                                        # (1, V)
    bi = bslice("bi")                                        # (1, V)
    bi0 = bslice("bi0")                                      # (1, H)

    x_all = x_ref[...]                                       # (T*BB, I+H) f32

    # ---- batched, recurrence-independent layer-0 input projection ----
    xproj = _dot(x_all, e_w0) + e_b0                         # (T*BB, 4H) f32

    zeros_bh = jnp.zeros((BB, H), f32)

    # ---- 2-layer LSTM encoder, fully unrolled ----
    h0 = c0 = h1 = c1 = zeros_bh
    hs = []
    for t in range(T):
        g0 = xproj[t * BB:(t + 1) * BB, :] + _dot(h0, e_whh0)
        h0, c0 = _lstm_cell(g0, c0, H)
        g1 = _dot(jnp.concatenate([h0, h1], axis=1), e_w1) + e_b1
        h1, c1 = _lstm_cell(g1, c1, H)
        hs.append(h1)

    last_h = h1

    # ---- static appearance head ----
    stat = _dot(last_h, ws) + bs                             # (BB, S)

    # ---- predictor: n_out single-step calls; state zero-reset each call so
    #      the dot(0, W_hh) terms are exactly zero and have been removed ----
    pred_in = last_h
    for _ in range(n_out):
        g0 = _dot(pred_in, p_wih0) + p_b0
        a, _ = _lstm_cell(g0, zeros_bh, H)
        g1 = _dot(a, p_wih1) + p_b1
        b2, _ = _lstm_cell(g1, zeros_bh, H)
        hs.append(b2)
        pred_in = b2

    full_rows = jnp.concatenate(hs, axis=0)                  # (TN*BB, H)

    # ---- shared-LHS head matmul on stat: [wi0s | wv0s] in one MXU call ----
    stat2 = _dot(stat, w_stat)                               # (BB, 2H)
    ini_stat = stat2[:, 0:H]
    var_stat = stat2[:, H:2 * H] + bv0                       # (BB, H)

    # ---- initial conditions (uses x at t=0 straight from x_ref) ----
    x0 = x_all[0:BB, 0:I]
    ini_h = _lrelu(_dot(x0, wi0x) + ini_stat + bi0)
    ini = _dot(ini_h, wi) + bi                               # (BB, V)

    # ---- varying appearance head, batched over all TN steps ----
    r = _dot(full_rows, wv0h)                                # (TN*BB, H)
    vh = _lrelu(r.reshape(TN, BB, H) + var_stat[None, :, :])  # broadcast, no concat
    v = _dot(vh.reshape(TN * BB, H), wv) + bv                # (TN*BB, V)

    # ---- cumulative accumulation (cheap serial VPU adds) ----
    acc = ini
    accs = []
    for t in range(TN):
        acc = acc + v[t * BB:(t + 1) * BB, :]
        accs.append(acc)
    var_rows = jnp.concatenate(accs, axis=0)                 # (TN*BB, V)

    # ---- pack everything into one lane-dense (TN*BB, 128) slab, one store ----
    stat_rep = jnp.broadcast_to(stat[None], (TN, BB, S)).reshape(TN * BB, S)
    parts = [full_rows, var_rows, stat_rep]
    pad_w = OUT_LANES - (H + V + S)
    if pad_w > 0:
        parts.append(jnp.zeros((TN * BB, pad_w), f32))
    out_ref[...] = jnp.concatenate(parts, axis=1)


# ----------------------- wrapper -----------------------
def _pack_rows(items, dtype, row_align, lane):
    """Stack 2-D arrays into one (rows, lane) slab (rows of each piece padded
    to `row_align`, cols padded to `lane`); returns slab + {name: (off, r, c)}."""
    pieces, offs, off = [], {}, 0
    for name, a in items:
        r, c = a.shape
        rp = -(-r // row_align) * row_align
        buf = jnp.zeros((rp, lane), dtype)
        buf = buf.at[:r, :c].set(a.astype(dtype))
        pieces.append(buf)
        offs[name] = (off, r, c)
        off += rp
    return jnp.concatenate(pieces, axis=0), offs


def appearance_encoder_forward(x, prev, params, n_frames_output):
    """x: (B, T, input_size), prev: (B, T, hidden_size)  (batch-first, like torch)."""
    B, T, I = x.shape
    H = params["e_whh0"].shape[0]
    S = params["ws"].shape[1]
    V = params["wv"].shape[1]
    n_out = n_frames_output
    TN = T + n_out
    assert H + V + S <= OUT_LANES, "packed output assumes H+V+S <= 128"

    # Batch blocking: pad to 8 sublanes; big batches split into 128-row blocks
    # over a parallel grid (uses the second TensorCore on v7x).
    Bp = max(8, -(-B // 8) * 8)
    if Bp > 128:
        BB = 128
        Bp = -(-Bp // BB) * BB
    else:
        BB = Bp
    nb = Bp // BB
    pad = Bp - B

    xf = jnp.pad(x.astype(jnp.float32), ((0, pad), (0, 0), (0, 0)))
    pf = jnp.pad(prev.astype(jnp.float32), ((0, pad), (0, 0), (0, 0)))
    xp = jnp.concatenate([xf, pf], axis=-1)                        # (Bp, T, I+H)
    # (nb, T*BB, I+H): time-major rows inside each batch block.
    xp = xp.reshape(nb, BB, T, I + H).transpose(0, 2, 1, 3).reshape(nb, T * BB, I + H)

    lane = max(128, (-(-(4 * H) // 128)) * 128)

    # ---- one bf16 weight slab (single DMA) ----
    w_items = [
        ("e_w0",   jnp.concatenate([params["e_wih0x"], params["e_wih0h"]], axis=0)),
        ("e_whh0", params["e_whh0"]),
        ("e_w1",   jnp.concatenate([params["e_wih1"], params["e_whh1"]], axis=0)),
        ("p_wih0", params["p_wih0"]),
        ("p_wih1", params["p_wih1"]),
        ("wv0h",   params["wv0h"]),
        ("ws",     params["ws"]),
        ("wv",     params["wv"]),
        ("wi",     params["wi"]),
        ("w_stat", jnp.concatenate([params["wi0s"], params["wv0s"]], axis=1)),
        ("wi0x",   params["wi0x"]),
    ]
    w_slab, woff = _pack_rows(w_items, jnp.bfloat16, row_align=16, lane=lane)

    # ---- one f32 bias slab (single DMA); one row per bias ----
    b_items = [("e_b0", params["e_b0"]), ("e_b1", params["e_b1"]),
               ("p_b0", params["p_b0"]), ("p_b1", params["p_b1"]),
               ("bv0", params["bv0"]), ("bs", params["bs"]),
               ("bv", params["bv"]), ("bi", params["bi"]), ("bi0", params["bi0"])]
    rb = -(-len(b_items) // 8) * 8
    b_slab = jnp.zeros((rb, lane), jnp.float32)
    boff = {}
    for r, (name, arr) in enumerate(b_items):
        c = arr.shape[-1]
        b_slab = b_slab.at[r, :c].set(arr.reshape(-1))
        boff[name] = (r, c)

    kernel = functools.partial(appearance_encoder_kernel,
                               BB=BB, T=T, n_out=n_out, I=I, H=H, S=S, V=V,
                               woff=woff, boff=boff)

    out = pl.pallas_call(
        kernel,
        grid=(nb,),
        in_specs=[
            pl.BlockSpec((None, T * BB, I + H), lambda b: (b, 0, 0)),
            pl.BlockSpec(w_slab.shape, lambda b: (0, 0)),
            pl.BlockSpec(b_slab.shape, lambda b: (0, 0)),
        ],
        out_specs=pl.BlockSpec((None, TN * BB, OUT_LANES), lambda b: (b, 0, 0)),
        out_shape=jax.ShapeDtypeStruct((nb, TN * BB, OUT_LANES), jnp.float32),
        compiler_params=pltpu.CompilerParams(dimension_semantics=("parallel",)),
    )(xp, w_slab, b_slab)

    # Unpack the lane-dense slab; drop padded batch rows (cheap XLA slices).
    out = out.reshape(nb, TN, BB, OUT_LANES).transpose(1, 0, 2, 3).reshape(TN, Bp, OUT_LANES)
    full = jnp.transpose(out[:, :B, 0:H], (1, 0, 2))                 # (B, TN, H)
    var_app_output = jnp.transpose(out[:, :B, H:H + V], (1, 0, 2))   # (B, TN, V)
    stat = out[0, :B, H + V:H + V + S]                               # (B, S)
    prev_obj_hidden = full[:, :T]
    return stat, var_app_output, prev_obj_hidden


# ----------------------- deterministic param init -----------------------
def init_params(key, I, H, S, V):
    keys = iter(jax.random.split(key, 32))

    def u(shape, fan_in):
        k = 1.0 / float(fan_in) ** 0.5
        return jax.random.uniform(next(keys), shape, jnp.float32, -k, k)

    p = {}
    p["e_wih0x"] = u((I, 4 * H), H)
    p["e_wih0h"] = u((H, 4 * H), H)
    p["e_whh0"] = u((H, 4 * H), H)
    p["e_b0"] = u((1, 4 * H), H) + u((1, 4 * H), H)
    p["e_wih1"] = u((H, 4 * H), H)
    p["e_whh1"] = u((H, 4 * H), H)
    p["e_b1"] = u((1, 4 * H), H) + u((1, 4 * H), H)
    p["p_wih0"] = u((H, 4 * H), H)
    p["p_whh0"] = u((H, 4 * H), H)       # only used by the reference (x 0)
    p["p_b0"] = u((1, 4 * H), H) + u((1, 4 * H), H)
    p["p_wih1"] = u((H, 4 * H), H)
    p["p_whh1"] = u((H, 4 * H), H)       # only used by the reference (x 0)
    p["p_b1"] = u((1, 4 * H), H) + u((1, 4 * H), H)
    p["ws"] = u((H, S), H)
    p["bs"] = u((1, S), H)
    p["wv"] = u((H, V), H)
    p["bv"] = u((1, V), H)
    p["wv0h"] = u((H, H), H + S)
    p["wv0s"] = u((S, H), H + S)
    p["bv0"] = u((1, H), H + S)
    p["wi"] = u((H, V), H)
    p["bi"] = u((1, V), H)
    p["wi0x"] = u((I, H), I + S)
    p["wi0s"] = u((S, H), I + S)
    p["bi0"] = u((1, H), I + S)
    return p


# ----------------------- pure-JAX reference (matched bf16-MXU precision) -----------------------
def _mm(a, b):
    return jnp.dot(a.astype(jnp.bfloat16), b.astype(jnp.bfloat16),
                   preferred_element_type=jnp.float32)


def reference_forward(x, prev, p, n_out):
    B, T, _ = x.shape
    H = p["e_whh0"].shape[0]

    def cell(g, c):
        i = jax.nn.sigmoid(g[:, :H])
        f = jax.nn.sigmoid(g[:, H:2 * H])
        gg = jnp.tanh(g[:, 2 * H:3 * H])
        o = jax.nn.sigmoid(g[:, 3 * H:])
        c = f * c + i * gg
        return o * jnp.tanh(c), c

    z = jnp.zeros((B, H), jnp.float32)
    h0 = c0 = h1 = c1 = z
    enc = []
    for t in range(T):
        g0 = (_mm(x[:, t], p["e_wih0x"]) + _mm(prev[:, t], p["e_wih0h"])
              + _mm(h0, p["e_whh0"]) + p["e_b0"])
        h0, c0 = cell(g0, c0)
        g1 = _mm(h0, p["e_wih1"]) + _mm(h1, p["e_whh1"]) + p["e_b1"]
        h1, c1 = cell(g1, c1)
        enc.append(h1)
    enc = jnp.stack(enc, axis=1)                              # (B, T, H)

    stat = _mm(enc[:, -1], p["ws"]) + p["bs"]                 # (B, S)

    pred_in = enc[:, -1]
    preds = []
    for _ in range(n_out):
        g0 = _mm(pred_in, p["p_wih0"]) + _mm(z, p["p_whh0"]) + p["p_b0"]
        a, _ = cell(g0, z)
        g1 = _mm(a, p["p_wih1"]) + _mm(z, p["p_whh1"]) + p["p_b1"]
        b, _ = cell(g1, z)
        preds.append(b)
        pred_in = b
    full = jnp.concatenate([enc, jnp.stack(preds, axis=1)], axis=1)  # (B, T+n, H)

    ini = _mm(_lrelu(_mm(x[:, 0], p["wi0x"]) + _mm(stat, p["wi0s"]) + p["bi0"]),
              p["wi"]) + p["bi"]
    vh = _lrelu(_mm(full, p["wv0h"]) + _mm(stat, p["wv0s"])[:, None, :] + p["bv0"])
    v = _mm(vh, p["wv"]) + p["bv"]
    var = ini[:, None, :] + jnp.cumsum(v, axis=1)
    return stat, var, enc


if __name__ == "__main__":
    B, T = 2, 8
    input_size, hidden_size = 16, 32
    stat_app_size, var_app_size = 8, 8
    n_frames_output = 4

    key = jax.random.PRNGKey(0)
    kx, kp, kw = jax.random.split(key, 3)
    x = jax.random.normal(kx, (B, T, input_size), jnp.float32)
    prev_obj_hidden = jax.random.normal(kp, (B, T, hidden_size), jnp.float32)
    params = init_params(kw, input_size, hidden_size, stat_app_size, var_app_size)

    stat, var, enc = appearance_encoder_forward(x, prev_obj_hidden, params,
                                                n_frames_output)
    jax.block_until_ready((stat, var, enc))

    # Reference uses the same bf16-MXU / f32-accumulate precision as the kernel
    # (bf16 matmul operands are an intentional, accepted perf tradeoff).
    stat_r, var_r, enc_r = reference_forward(x, prev_obj_hidden, params,
                                             n_frames_output)
    jax.block_until_ready((stat_r, var_r, enc_r))

    assert stat.shape == (B, stat_app_size)
    assert var.shape == (B, T + n_frames_output, var_app_size)
    assert enc.shape == (B, T, hidden_size)
    assert jnp.allclose(stat, stat_r, atol=2e-3, rtol=2e-3)
    assert jnp.allclose(var, var_r, atol=2e-3, rtol=2e-3)
    assert jnp.allclose(enc, enc_r, atol=2e-3, rtol=2e-3)

    print("KERNEL_OK")
</pallas_src>

<mosaic_0001>
module attributes {stable_mosaic.version = 11 : i64} {
  func.func @appearance_encoder_kernel(%arg0: i32, %arg1: memref<1x64x48xf32, #tpu.memory_space<vmem>>, %arg2: memref<368x128xbf16, #tpu.memory_space<vmem>>, %arg3: memref<16x128xf32, #tpu.memory_space<vmem>>, %arg4: memref<1x96x128xf32, #tpu.memory_space<vmem>>) attributes {dimension_semantics = [#tpu.dimension_semantics<parallel>], iteration_bounds = array<i64: 1>, scalar_prefetch = 0 : i64, scratch_operands = 0 : i64, tpu.core_type = #tpu.core_type<tc>, window_params = [{transform_indices = @transform_0, window_bounds = array<i64: 1, 64, 48>}, {pipeline_mode = #tpu.pipeline_mode<synchronous>, transform_indices = @transform_1, window_bounds = array<i64: 368, 128>}, {pipeline_mode = #tpu.pipeline_mode<synchronous>, transform_indices = @transform_2, window_bounds = array<i64: 16, 128>}, {transform_indices = @transform_3, window_bounds = array<i64: 1, 96, 128>}]} {
    %c0 = arith.constant 0 : index
    %c0_0 = arith.constant 0 : index
    %0 = vector.load %arg3[%c0, %c0_0] : memref<16x128xf32, #tpu.memory_space<vmem>>, vector<16x128xf32>
    %c0_1 = arith.constant 0 : index
    %c0_2 = arith.constant 0 : index
    %1 = vector.load %arg2[%c0_1, %c0_2] : memref<368x128xbf16, #tpu.memory_space<vmem>>, vector<48x128xbf16>
    %c48 = arith.constant 48 : index
    %c0_3 = arith.constant 0 : index
    %2 = vector.load %arg2[%c48, %c0_3] : memref<368x128xbf16, #tpu.memory_space<vmem>>, vector<32x128xbf16>
    %c80 = arith.constant 80 : index
    %c0_4 = arith.constant 0 : index
    %3 = vector.load %arg2[%c80, %c0_4] : memref<368x128xbf16, #tpu.memory_space<vmem>>, vector<64x128xbf16>
    %c144 = arith.constant 144 : index
    %c0_5 = arith.constant 0 : index
    %4 = vector.load %arg2[%c144, %c0_5] : memref<368x128xbf16, #tpu.memory_space<vmem>>, vector<32x128xbf16>
    %c176 = arith.constant 176 : index
    %c0_6 = arith.constant 0 : index
    %5 = vector.load %arg2[%c176, %c0_6] : memref<368x128xbf16, #tpu.memory_space<vmem>>, vector<32x128xbf16>
    %c208 = arith.constant 208 : index
    %c0_7 = arith.constant 0 : index
    %6 = vector.load %arg2[%c208, %c0_7] : memref<368x128xbf16, #tpu.memory_space<vmem>>, vector<32x32xbf16>
    %c240 = arith.constant 240 : index
    %c0_8 = arith.constant 0 : index
    %7 = vector.load %arg2[%c240, %c0_8] : memref<368x128xbf16, #tpu.memory_space<vmem>>, vector<32x8xbf16>
    %c272 = arith.constant 272 : index
    %c0_9 = arith.constant 0 : index
    %8 = vector.load %arg2[%c272, %c0_9] : memref<368x128xbf16, #tpu.memory_space<vmem>>, vector<32x8xbf16>
    %c304 = arith.constant 304 : index
    %c0_10 = arith.constant 0 : index
    %9 = vector.load %arg2[%c304, %c0_10] : memref<368x128xbf16, #tpu.memory_space<vmem>>, vector<32x8xbf16>
    %c336 = arith.constant 336 : index
    %c0_11 = arith.constant 0 : index
    %10 = vector.load %arg2[%c336, %c0_11] : memref<368x128xbf16, #tpu.memory_space<vmem>>, vector<8x64xbf16>
    %c352 = arith.constant 352 : index
    %c0_12 = arith.constant 0 : index
    %11 = vector.load %arg2[%c352, %c0_12] : memref<368x128xbf16, #tpu.memory_space<vmem>>, vector<16x32xbf16>
    %12 = vector.extract_strided_slice %0 {offsets = [0, 0], sizes = [1, 128], strides = [1, 1]} : vector<16x128xf32> to vector<1x128xf32>
    %13 = vector.extract_strided_slice %0 {offsets = [1, 0], sizes = [1, 128], strides = [1, 1]} : vector<16x128xf32> to vector<1x128xf32>
    %14 = vector.shape_cast %13 : vector<1x128xf32> to vector<1x128xf32>
    %15 = vector.broadcast %14 : vector<1x128xf32> to vector<8x128xf32>
    %16 = vector.extract_strided_slice %0 {offsets = [2, 0], sizes = [1, 128], strides = [1, 1]} : vector<16x128xf32> to vector<1x128xf32>
    %17 = vector.shape_cast %16 : vector<1x128xf32> to vector<1x128xf32>
    %18 = vector.broadcast %17 : vector<1x128xf32> to vector<8x128xf32>
    %19 = vector.extract_strided_slice %0 {offsets = [3, 0], sizes = [1, 128], strides = [1, 1]} : vector<16x128xf32> to vector<1x128xf32>
    %20 = vector.shape_cast %19 : vector<1x128xf32> to vector<1x128xf32>
    %21 = vector.broadcast %20 : vector<1x128xf32> to vector<8x128xf32>
    %22 = vector.extract_strided_slice %0 {offsets = [4, 0], sizes = [1, 32], strides = [1, 1]} : vector<16x128xf32> to vector<1x32xf32>
    %23 = vector.extract_strided_slice %0 {offsets = [5, 0], sizes = [1, 8], strides = [1, 1]} : vector<16x128xf32> to vector<1x8xf32>
    %24 = vector.extract_strided_slice %0 {offsets = [6, 0], sizes = [1, 8], strides = [1, 1]} : vector<16x128xf32> to vector<1x8xf32>
    %25 = vector.extract_strided_slice %0 {offsets = [7, 0], sizes = [1, 8], strides = [1, 1]} : vector<16x128xf32> to vector<1x8xf32>
    %26 = vector.extract_strided_slice %0 {offsets = [8, 0], sizes = [1, 32], strides = [1, 1]} : vector<16x128xf32> to vector<1x32xf32>
    %c0_13 = arith.constant 0 : index
    %c0_14 = arith.constant 0 : index
    %c0_15 = arith.constant 0 : index
    %27 = vector.load %arg1[%c0_13, %c0_14, %c0_15] : memref<1x64x48xf32, #tpu.memory_space<vmem>>, vector<1x64x48xf32>
    %28 = vector.shape_cast %27 : vector<1x64x48xf32> to vector<64x48xf32>
    %29 = arith.truncf %28 : vector<64x48xf32> to vector<64x48xbf16>
    %cst = arith.constant dense<0.000000e+00> : vector<64x128xf32>
    %30 = tpu.matmul %29, %1, %cst {dimension_numbers = #tpu.dot_dimension_numbers<[1], [0], [0], [1], [0, 0, 1, 1], [], []>} : vector<64x48xbf16>, vector<48x128xbf16>, vector<64x128xf32> -> vector<64x128xf32>
    %31 = vector.broadcast %12 : vector<1x128xf32> to vector<64x128xf32>
    %32 = arith.addf %30, %31 : vector<64x128xf32>
    %cst_16 = arith.constant 0.000000e+00 : f32
    %33 = vector.broadcast %cst_16 : f32 to vector<8x32xf32>
    %34 = vector.extract_strided_slice %32 {offsets = [0, 0], sizes = [8, 128], strides = [1, 1]} : vector<64x128xf32> to vector<8x128xf32>
    %35 = arith.truncf %33 : vector<8x32xf32> to vector<8x32xbf16>
    %cst_17 = arith.constant dense<0.000000e+00> : vector<8x128xf32>
    %36 = tpu.matmul %35, %2, %cst_17 {dimension_numbers = #tpu.dot_dimension_numbers<[1], [0], [0], [1], [0, 0, 1, 1], [], []>} : vector<8x32xbf16>, vector<32x128xbf16>, vector<8x128xf32> -> vector<8x128xf32>
    %37 = arith.addf %34, %36 : vector<8x128xf32>
    %38 = arith.negf %37 : vector<8x128xf32>
    %39 = math.exp %38 : vector<8x128xf32>
    %cst_18 = arith.constant 1.000000e+00 : f32
    %40 = vector.broadcast %cst_18 : f32 to vector<8x128xf32>
    %41 = arith.addf %40, %39 : vector<8x128xf32>
    %42 = arith.divf %40, %41 : vector<8x128xf32>
    %43 = math.tanh %37 : vector<8x128xf32>
    %44 = vector.extract_strided_slice %42 {offsets = [0, 0], sizes = [8, 32], strides = [1, 1]} : vector<8x128xf32> to vector<8x32xf32>
    %45 = vector.extract_strided_slice %42 {offsets = [0, 32], sizes = [8, 32], strides = [1, 1]} : vector<8x128xf32> to vector<8x32xf32>
    %46 = vector.extract_strided_slice %43 {offsets = [0, 64], sizes = [8, 32], strides = [1, 1]} : vector<8x128xf32> to vector<8x32xf32>
    %47 = vector.extract_strided_slice %42 {offsets = [0, 96], sizes = [8, 32], strides = [1, 1]} : vector<8x128xf32> to vector<8x32xf32>
    %48 = arith.mulf %45, %33 : vector<8x32xf32>
    %49 = arith.mulf %44, %46 : vector<8x32xf32>
    %50 = arith.addf %48, %49 : vector<8x32xf32>
    %51 = math.tanh %50 : vector<8x32xf32>
    %52 = arith.mulf %47, %51 : vector<8x32xf32>
    %53 = tpu.concatenate %52, %33 in 1 : vector<8x32xf32>, vector<8x32xf32> -> vector<8x64xf32>
    %54 = arith.truncf %53 : vector<8x64xf32> to vector<8x64xbf16>
    %cst_19 = arith.constant dense<0.000000e+00> : vector<8x128xf32>
    %55 = tpu.matmul %54, %3, %cst_19 {dimension_numbers = #tpu.dot_dimension_numbers<[1], [0], [0], [1], [0, 0, 1, 1], [], []>} : vector<8x64xbf16>, vector<64x128xbf16>, vector<8x128xf32> -> vector<8x128xf32>
    %56 = arith.addf %55, %15 : vector<8x128xf32>
    %57 = arith.negf %56 : vector<8x128xf32>
    %58 = math.exp %57 : vector<8x128xf32>
    %cst_20 = arith.constant 1.000000e+00 : f32
    %59 = vector.broadcast %cst_20 : f32 to vector<8x128xf32>
    %60 = arith.addf %59, %58 : vector<8x128xf32>
    %61 = arith.divf %59, %60 : vector<8x128xf32>
    %62 = math.tanh %56 : vector<8x128xf32>
    %63 = vector.extract_strided_slice %61 {offsets = [0, 0], sizes = [8, 32], strides = [1, 1]} : vector<8x128xf32> to vector<8x32xf32>
    %64 = vector.extract_strided_slice %61 {offsets = [0, 32], sizes = [8, 32], strides = [1, 1]} : vector<8x128xf32> to vector<8x32xf32>
    %65 = vector.extract_strided_slice %62 {offsets = [0, 64], sizes = [8, 32], strides = [1, 1]} : vector<8x128xf32> to vector<8x32xf32>
    %66 = vector.extract_strided_slice %61 {offsets = [0, 96], sizes = [8, 32], strides = [1, 1]} : vector<8x128xf32> to vector<8x32xf32>
    %67 = arith.mulf %64, %33 : vector<8x32xf32>
    %68 = arith.mulf %63, %65 : vector<8x32xf32>
    %69 = arith.addf %67, %68 : vector<8x32xf32>
    %70 = math.tanh %69 : vector<8x32xf32>
    %71 = arith.mulf %66, %70 : vector<8x32xf32>
    %72 = vector.extract_strided_slice %32 {offsets = [8, 0], sizes = [8, 128], strides = [1, 1]} : vector<64x128xf32> to vector<8x128xf32>
    %73 = arith.truncf %52 : vector<8x32xf32> to vector<8x32xbf16>
    %cst_21 = arith.constant dense<0.000000e+00> : vector<8x128xf32>
    %74 = tpu.matmul %73, %2, %cst_21 {dimension_numbers = #tpu.dot_dimension_numbers<[1], [0], [0], [1], [0, 0, 1, 1], [], []>} : vector<8x32xbf16>, vector<32x128xbf16>, vector<8x128xf32> -> vector<8x128xf32>
    %75 = arith.addf %72, %74 : vector<8x128xf32>
    %76 = arith.negf %75 : vector<8x128xf32>
    %77 = math.exp %76 : vector<8x128xf32>
    %cst_22 = arith.constant 1.000000e+00 : f32
    %78 = vector.broadcast %cst_22 : f32 to vector<8x128xf32>
    %79 = arith.addf %78, %77 : vector<8x128xf32>
    %80 = arith.divf %78, %79 : vector<8x128xf32>
    %81 = math.tanh %75 : vector<8x128xf32>
    %82 = vector.extract_strided_slice %80 {offsets = [0, 0], sizes = [8, 32], strides = [1, 1]} : vector<8x128xf32> to vector<8x32xf32>
    %83 = vector.extract_strided_slice %80 {offsets = [0, 32], sizes = [8, 32], strides = [1, 1]} : vector<8x128xf32> to vector<8x32xf32>
    %84 = vector.extract_strided_slice %81 {offsets = [0, 64], sizes = [8, 32], strides = [1, 1]} : vector<8x128xf32> to vector<8x32xf32>
    %85 = vector.extract_strided_slice %80 {offsets = [0, 96], sizes = [8, 32], strides = [1, 1]} : vector<8x128xf32> to vector<8x32xf32>
    %86 = arith.mulf %83, %50 : vector<8x32xf32>
    %87 = arith.mulf %82, %84 : vector<8x32xf32>
    %88 = arith.addf %86, %87 : vector<8x32xf32>
    %89 = math.tanh %88 : vector<8x32xf32>
    %90 = arith.mulf %85, %89 : vector<8x32xf32>
    %91 = tpu.concatenate %90, %71 in 1 : vector<8x32xf32>, vector<8x32xf32> -> vector<8x64xf32>
    %92 = arith.truncf %91 : vector<8x64xf32> to vector<8x64xbf16>
    %cst_23 = arith.constant dense<0.000000e+00> : vector<8x128xf32>
    %93 = tpu.matmul %92, %3, %cst_23 {dimension_numbers = #tpu.dot_dimension_numbers<[1], [0], [0], [1], [0, 0, 1, 1], [], []>} : vector<8x64xbf16>, vector<64x128xbf16>, vector<8x128xf32> -> vector<8x128xf32>
    %94 = arith.addf %93, %15 : vector<8x128xf32>
    %95 = arith.negf %94 : vector<8x128xf32>
    %96 = math.exp %95 : vector<8x128xf32>
    %cst_24 = arith.constant 1.000000e+00 : f32
    %97 = vector.broadcast %cst_24 : f32 to vector<8x128xf32>
    %98 = arith.addf %97, %96 : vector<8x128xf32>
    %99 = arith.divf %97, %98 : vector<8x128xf32>
    %100 = math.tanh %94 : vector<8x128xf32>
    %101 = vector.extract_strided_slice %99 {offsets = [0, 0], sizes = [8, 32], strides = [1, 1]} : vector<8x128xf32> to vector<8x32xf32>
    %102 = vector.extract_strided_slice %99 {offsets = [0, 32], sizes = [8, 32], strides = [1, 1]} : vector<8x128xf32> to vector<8x32xf32>
    %103 = vector.extract_strided_slice %100 {offsets = [0, 64], sizes = [8, 32], strides = [1, 1]} : vector<8x128xf32> to vector<8x32xf32>
    %104 = vector.extract_strided_slice %99 {offsets = [0, 96], sizes = [8, 32], strides = [1, 1]} : vector<8x128xf32> to vector<8x32xf32>
    %105 = arith.mulf %102, %69 : vector<8x32xf32>
    %106 = arith.mulf %101, %103 : vector<8x32xf32>
    %107 = arith.addf %105, %106 : vector<8x32xf32>
    %108 = math.tanh %107 : vector<8x32xf32>
    %109 = arith.mulf %104, %108 : vector<8x32xf32>
    %110 = vector.extract_strided_slice %32 {offsets = [16, 0], sizes = [8, 128], strides = [1, 1]} : vector<64x128xf32> to vector<8x128xf32>
    %111 = arith.truncf %90 : vector<8x32xf32> to vector<8x32xbf16>
    %cst_25 = arith.constant dense<0.000000e+00> : vector<8x128xf32>
    %112 = tpu.matmul %111, %2, %cst_25 {dimension_numbers = #tpu.dot_dimension_numbers<[1], [0], [0], [1], [0, 0, 1, 1], [], []>} : vector<8x32xbf16>, vector<32x128xbf16>, vector<8x128xf32> -> vector<8x128xf32>
    %113 = arith.addf %110, %112 : vector<8x128xf32>
    %114 = arith.negf %113 : vector<8x128xf32>
    %115 = math.exp %114 : vector<8x128xf32>
    %cst_26 = arith.constant 1.000000e+00 : f32
    %116 = vector.broadcast %cst_26 : f32 to vector<8x128xf32>
    %117 = arith.addf %116, %115 : vector<8x128xf32>
    %118 = arith.divf %116, %117 : vector<8x128xf32>
    %119 = math.tanh %113 : vector<8x128xf32>
    %120 = vector.extract_strided_slice %118 {offsets = [0, 0], sizes = [8, 32], strides = [1, 1]} : vector<8x128xf32> to vector<8x32xf32>
    %121 = vector.extract_strided_slice %118 {offsets = [0, 32], sizes = [8, 32], strides = [1, 1]} : vector<8x128xf32> to vector<8x32xf32>
    %122 = vector.extract_strided_slice %119 {offsets = [0, 64], sizes = [8, 32], strides = [1, 1]} : vector<8x128xf32> to vector<8x32xf32>
    %123 = vector.extract_strided_slice %118 {offsets = [0, 96], sizes = [8, 32], strides = [1, 1]} : vector<8x128xf32> to vector<8x32xf32>
    %124 = arith.mulf %121, %88 : vector<8x32xf32>
    %125 = arith.mulf %120, %122 : vector<8x32xf32>
    %126 = arith.addf %124, %125 : vector<8x32xf32>
    %127 = math.tanh %126 : vector<8x32xf32>
    %128 = arith.mulf %123, %127 : vector<8x32xf32>
    %129 = tpu.concatenate %128, %109 in 1 : vector<8x32xf32>, vector<8x32xf32> -> vector<8x64xf32>
    %130 = arith.truncf %129 : vector<8x64xf32> to vector<8x64xbf16>
    %cst_27 = arith.constant dense<0.000000e+00> : vector<8x128xf32>
    %131 = tpu.matmul %130, %3, %cst_27 {dimension_numbers = #tpu.dot_dimension_numbers<[1], [0], [0], [1], [0, 0, 1, 1], [], []>} : vector<8x64xbf16>, vector<64x128xbf16>, vector<8x128xf32> -> vector<8x128xf32>
    %132 = arith.addf %131, %15 : vector<8x128xf32>
    %133 = arith.negf %132 : vector<8x128xf32>
    %134 = math.exp %133 : vector<8x128xf32>
    %cst_28 = arith.constant 1.000000e+00 : f32
    %135 = vector.broadcast %cst_28 : f32 to vector<8x128xf32>
    %136 = arith.addf %135, %134 : vector<8x128xf32>
    %137 = arith.divf %135, %136 : vector<8x128xf32>
    %138 = math.tanh %132 : vector<8x128xf32>
    %139 = vector.extract_strided_slice %137 {offsets = [0, 0], sizes = [8, 32], strides = [1, 1]} : vector<8x128xf32> to vector<8x32xf32>
    %140 = vector.extract_strided_slice %137 {offsets = [0, 32], sizes = [8, 32], strides = [1, 1]} : vector<8x128xf32> to vector<8x32xf32>
    %141 = vector.extract_strided_slice %138 {offsets = [0, 64], sizes = [8, 32], strides = [1, 1]} : vector<8x128xf32> to vector<8x32xf32>
    %142 = vector.extract_strided_slice %137 {offsets = [0, 96], sizes = [8, 32], strides = [1, 1]} : vector<8x128xf32> to vector<8x32xf32>
    %143 = arith.mulf %140, %107 : vector<8x32xf32>
    %144 = arith.mulf %139, %141 : vector<8x32xf32>
    %145 = arith.addf %143, %144 : vector<8x32xf32>
    %146 = math.tanh %145 : vector<8x32xf32>
    %147 = arith.mulf %142, %146 : vector<8x32xf32>
    %148 = vector.extract_strided_slice %32 {offsets = [24, 0], sizes = [8, 128], strides = [1, 1]} : vector<64x128xf32> to vector<8x128xf32>
    %149 = arith.truncf %128 : vector<8x32xf32> to vector<8x32xbf16>
    %cst_29 = arith.constant dense<0.000000e+00> : vector<8x128xf32>
    %150 = tpu.matmul %149, %2, %cst_29 {dimension_numbers = #tpu.dot_dimension_numbers<[1], [0], [0], [1], [0, 0, 1, 1], [], []>} : vector<8x32xbf16>, vector<32x128xbf16>, vector<8x128xf32> -> vector<8x128xf32>
    %151 = arith.addf %148, %150 : vector<8x128xf32>
    %152 = arith.negf %151 : vector<8x128xf32>
    %153 = math.exp %152 : vector<8x128xf32>
    %cst_30 = arith.constant 1.000000e+00 : f32
    %154 = vector.broadcast %cst_30 : f32 to vector<8x128xf32>
    %155 = arith.addf %154, %153 : vector<8x128xf32>
    %156 = arith.divf %154, %155 : vector<8x128xf32>
    %157 = math.tanh %151 : vector<8x128xf32>
    %158 = vector.extract_strided_slice %156 {offsets = [0, 0], sizes = [8, 32], strides = [1, 1]} : vector<8x128xf32> to vector<8x32xf32>
    %159 = vector.extract_strided_slice %156 {offsets = [0, 32], sizes = [8, 32], strides = [1, 1]} : vector<8x128xf32> to vector<8x32xf32>
    %160 = vector.extract_strided_slice %157 {offsets = [0, 64], sizes = [8, 32], strides = [1, 1]} : vector<8x128xf32> to vector<8x32xf32>
    %161 = vector.extract_strided_slice %156 {offsets = [0, 96], sizes = [8, 32], strides = [1, 1]} : vector<8x128xf32> to vector<8x32xf32>
    %162 = arith.mulf %159, %126 : vector<8x32xf32>
    %163 = arith.mulf %158, %160 : vector<8x32xf32>
    %164 = arith.addf %162, %163 : vector<8x32xf32>
    %165 = math.tanh %164 : vector<8x32xf32>
    %166 = arith.mulf %161, %165 : vector<8x32xf32>
    %167 = tpu.concatenate %166, %147 in 1 : vector<8x32xf32>, vector<8x32xf32> -> vector<8x64xf32>
    %168 = arith.truncf %167 : vector<8x64xf32> to vector<8x64xbf16>
    %cst_31 = arith.constant dense<0.000000e+00> : vector<8x128xf32>
    %169 = tpu.matmul %168, %3, %cst_31 {dimension_numbers = #tpu.dot_dimension_numbers<[1], [0], [0], [1], [0, 0, 1, 1], [], []>} : vector<8x64xbf16>, vector<64x128xbf16>, vector<8x128xf32> -> vector<8x128xf32>
    %170 = arith.addf %169, %15 : vector<8x128xf32>
    %171 = arith.negf %170 : vector<8x128xf32>
    %172 = math.exp %171 : vector<8x128xf32>
    %cst_32 = arith.constant 1.000000e+00 : f32
    %173 = vector.broadcast %cst_32 : f32 to vector<8x128xf32>
    %174 = arith.addf %173, %172 : vector<8x128xf32>
    %175 = arith.divf %173, %174 : vector<8x128xf32>
    %176 = math.tanh %170 : vector<8x128xf32>
    %177 = vector.extract_strided_slice %175 {offsets = [0, 0], sizes = [8, 32], strides = [1, 1]} : vector<8x128xf32> to vector<8x32xf32>
    %178 = vector.extract_strided_slice %175 {offsets = [0, 32], sizes = [8, 32], strides = [1, 1]} : vector<8x128xf32> to vector<8x32xf32>
    %179 = vector.extract_strided_slice %176 {offsets = [0, 64], sizes = [8, 32], strides = [1, 1]} : vector<8x128xf32> to vector<8x32xf32>
    %180 = vector.extract_strided_slice %175 {offsets = [0, 96], sizes = [8, 32], strides = [1, 1]} : vector<8x128xf32> to vector<8x32xf32>
    %181 = arith.mulf %178, %145 : vector<8x32xf32>
    %182 = arith.mulf %177, %179 : vector<8x32xf32>
    %183 = arith.addf %181, %182 : vector<8x32xf32>
    %184 = math.tanh %183 : vector<8x32xf32>
    %185 = arith.mulf %180, %184 : vector<8x32xf32>
    %186 = vector.extract_strided_slice %32 {offsets = [32, 0], sizes = [8, 128], strides = [1, 1]} : vector<64x128xf32> to vector<8x128xf32>
    %187 = arith.truncf %166 : vector<8x32xf32> to vector<8x32xbf16>
    %cst_33 = arith.constant dense<0.000000e+00> : vector<8x128xf32>
    %188 = tpu.matmul %187, %2, %cst_33 {dimension_numbers = #tpu.dot_dimension_numbers<[1], [0], [0], [1], [0, 0, 1, 1], [], []>} : vector<8x32xbf16>, vector<32x128xbf16>, vector<8x128xf32> -> vector<8x128xf32>
    %189 = arith.addf %186, %188 : vector<8x128xf32>
    %190 = arith.negf %189 : vector<8x128xf32>
    %191 = math.exp %190 : vector<8x128xf32>
    %cst_34 = arith.constant 1.000000e+00 : f32
    %192 = vector.broadcast %cst_34 : f32 to vector<8x128xf32>
    %193 = arith.addf %192, %191 : vector<8x128xf32>
    %194 = arith.divf %192, %193 : vector<8x128xf32>
    %195 = math.tanh %189 : vector<8x128xf32>
    %196 = vector.extract_strided_slice %194 {offsets = [0, 0], sizes = [8, 32], strides = [1, 1]} : vector<8x128xf32> to vector<8x32xf32>
    %197 = vector.extract_strided_slice %194 {offsets = [0, 32], sizes = [8, 32], strides = [1, 1]} : vector<8x128xf32> to vector<8x32xf32>
    %198 = vector.extract_strided_slice %195 {offsets = [0, 64], sizes = [8, 32], strides = [1, 1]} : vector<8x128xf32> to vector<8x32xf32>
    %199 = vector.extract_strided_slice %194 {offsets = [0, 96], sizes = [8, 32], strides = [1, 1]} : vector<8x128xf32> to vector<8x32xf32>
    %200 = arith.mulf %197, %164 : vector<8x32xf32>
    %201 = arith.mulf %196, %198 : vector<8x32xf32>
    %202 = arith.addf %200, %201 : vector<8x32xf32>
    %203 = math.tanh %202 : vector<8x32xf32>
    %204 = arith.mulf %199, %203 : vector<8x32xf32>
    %205 = tpu.concatenate %204, %185 in 1 : vector<8x32xf32>, vector<8x32xf32> -> vector<8x64xf32>
    %206 = arith.truncf %205 : vector<8x64xf32> to vector<8x64xbf16>
    %cst_35 = arith.constant dense<0.000000e+00> : vector<8x128xf32>
    %207 = tpu.matmul %206, %3, %cst_35 {dimension_numbers = #tpu.dot_dimension_numbers<[1], [0], [0], [1], [0, 0, 1, 1], [], []>} : vector<8x64xbf16>, vector<64x128xbf16>, vector<8x128xf32> -> vector<8x128xf32>
    %208 = arith.addf %207, %15 : vector<8x128xf32>
    %209 = arith.negf %208 : vector<8x128xf32>
    %210 = math.exp %209 : vector<8x128xf32>
    %cst_36 = arith.constant 1.000000e+00 : f32
    %211 = vector.broadcast %cst_36 : f32 to vector<8x128xf32>
    %212 = arith.addf %211, %210 : vector<8x128xf32>
    %213 = arith.divf %211, %212 : vector<8x128xf32>
    %214 = math.tanh %208 : vector<8x128xf32>
    %215 = vector.extract_strided_slice %213 {offsets = [0, 0], sizes = [8, 32], strides = [1, 1]} : vector<8x128xf32> to vector<8x32xf32>
    %216 = vector.extract_strided_slice %213 {offsets = [0, 32], sizes = [8, 32], strides = [1, 1]} : vector<8x128xf32> to vector<8x32xf32>
    %217 = vector.extract_strided_slice %214 {offsets = [0, 64], sizes = [8, 32], strides = [1, 1]} : vector<8x128xf32> to vector<8x32xf32>
    %218 = vector.extract_strided_slice %213 {offsets = [0, 96], sizes = [8, 32], strides = [1, 1]} : vector<8x128xf32> to vector<8x32xf32>
    %219 = arith.mulf %216, %183 : vector<8x32xf32>
    %220 = arith.mulf %215, %217 : vector<8x32xf32>
    %221 = arith.addf %219, %220 : vector<8x32xf32>
    %222 = math.tanh %221 : vector<8x32xf32>
    %223 = arith.mulf %218, %222 : vector<8x32xf32>
    %224 = vector.extract_strided_slice %32 {offsets = [40, 0], sizes = [8, 128], strides = [1, 1]} : vector<64x128xf32> to vector<8x128xf32>
    %225 = arith.truncf %204 : vector<8x32xf32> to vector<8x32xbf16>
    %cst_37 = arith.constant dense<0.000000e+00> : vector<8x128xf32>
    %226 = tpu.matmul %225, %2, %cst_37 {dimension_numbers = #tpu.dot_dimension_numbers<[1], [0], [0], [1], [0, 0, 1, 1], [], []>} : vector<8x32xbf16>, vector<32x128xbf16>, vector<8x128xf32> -> vector<8x128xf32>
    %227 = arith.addf %224, %226 : vector<8x128xf32>
    %228 = arith.negf %227 : vector<8x128xf32>
    %229 = math.exp %228 : vector<8x128xf32>
    %cst_38 = arith.constant 1.000000e+00 : f32
    %230 = vector.broadcast %cst_38 : f32 to vector<8x128xf32>
    %231 = arith.addf %230, %229 : vector<8x128xf32>
    %232 = arith.divf %230, %231 : vector<8x128xf32>
    %233 = math.tanh %227 : vector<8x128xf32>
    %234 = vector.extract_strided_slice %232 {offsets = [0, 0], sizes = [8, 32], strides = [1, 1]} : vector<8x128xf32> to vector<8x32xf32>
    %235 = vector.extract_strided_slice %232 {offsets = [0, 32], sizes = [8, 32], strides = [1, 1]} : vector<8x128xf32> to vector<8x32xf32>
    %236 = vector.extract_strided_slice %233 {offsets = [0, 64], sizes = [8, 32], strides = [1, 1]} : vector<8x128xf32> to vector<8x32xf32>
    %237 = vector.extract_strided_slice %232 {offsets = [0, 96], sizes = [8, 32], strides = [1, 1]} : vector<8x128xf32> to vector<8x32xf32>
    %238 = arith.mulf %235, %202 : vector<8x32xf32>
    %239 = arith.mulf %234, %236 : vector<8x32xf32>
    %240 = arith.addf %238, %239 : vector<8x32xf32>
    %241 = math.tanh %240 : vector<8x32xf32>
    %242 = arith.mulf %237, %241 : vector<8x32xf32>
    %243 = tpu.concatenate %242, %223 in 1 : vector<8x32xf32>, vector<8x32xf32> -> vector<8x64xf32>
    %244 = arith.truncf %243 : vector<8x64xf32> to vector<8x64xbf16>
    %cst_39 = arith.constant dense<0.000000e+00> : vector<8x128xf32>
    %245 = tpu.matmul %244, %3, %cst_39 {dimension_numbers = #tpu.dot_dimension_numbers<[1], [0], [0], [1], [0, 0, 1, 1], [], []>} : vector<8x64xbf16>, vector<64x128xbf16>, vector<8x128xf32> -> vector<8x128xf32>
    %246 = arith.addf %245, %15 : vector<8x128xf32>
    %247 = arith.negf %246 : vector<8x128xf32>
    %248 = math.exp %247 : vector<8x128xf32>
    %cst_40 = arith.constant 1.000000e+00 : f32
    %249 = vector.broadcast %cst_40 : f32 to vector<8x128xf32>
    %250 = arith.addf %249, %248 : vector<8x128xf32>
    %251 = arith.divf %249, %250 : vector<8x128xf32>
    %252 = math.tanh %246 : vector<8x128xf32>
    %253 = vector.extract_strided_slice %251 {offsets = [0, 0], sizes = [8, 32], strides = [1, 1]} : vector<8x128xf32> to vector<8x32xf32>
    %254 = vector.extract_strided_slice %251 {offsets = [0, 32], sizes = [8, 32], strides = [1, 1]} : vector<8x128xf32> to vector<8x32xf32>
    %255 = vector.extract_strided_slice %252 {offsets = [0, 64], sizes = [8, 32], strides = [1, 1]} : vector<8x128xf32> to vector<8x32xf32>
    %256 = vector.extract_strided_slice %251 {offsets = [0, 96], sizes = [8, 32], strides = [1, 1]} : vector<8x128xf32> to vector<8x32xf32>
    %257 = arith.mulf %254, %221 : vector<8x32xf32>
    %258 = arith.mulf %253, %255 : vector<8x32xf32>
    %259 = arith.addf %257, %258 : vector<8x32xf32>
    %260 = math.tanh %259 : vector<8x32xf32>
    %261 = arith.mulf %256, %260 : vector<8x32xf32>
    %262 = vector.extract_strided_slice %32 {offsets = [48, 0], sizes = [8, 128], strides = [1, 1]} : vector<64x128xf32> to vector<8x128xf32>
    %263 = arith.truncf %242 : vector<8x32xf32> to vector<8x32xbf16>
    %cst_41 = arith.constant dense<0.000000e+00> : vector<8x128xf32>
    %264 = tpu.matmul %263, %2, %cst_41 {dimension_numbers = #tpu.dot_dimension_numbers<[1], [0], [0], [1], [0, 0, 1, 1], [], []>} : vector<8x32xbf16>, vector<32x128xbf16>, vector<8x128xf32> -> vector<8x128xf32>
    %265 = arith.addf %262, %264 : vector<8x128xf32>
    %266 = arith.negf %265 : vector<8x128xf32>
    %267 = math.exp %266 : vector<8x128xf32>
    %cst_42 = arith.constant 1.000000e+00 : f32
    %268 = vector.broadcast %cst_42 : f32 to vector<8x128xf32>
    %269 = arith.addf %268, %267 : vector<8x128xf32>
    %270 = arith.divf %268, %269 : vector<8x128xf32>
    %271 = math.tanh %265 : vector<8x128xf32>
    %272 = vector.extract_strided_slice %270 {offsets = [0, 0], sizes = [8, 32], strides = [1, 1]} : vector<8x128xf32> to vector<8x32xf32>
    %273 = vector.extract_strided_slice %270 {offsets = [0, 32], sizes = [8, 32], strides = [1, 1]} : vector<8x128xf32> to vector<8x32xf32>
    %274 = vector.extract_strided_slice %271 {offsets = [0, 64], sizes = [8, 32], strides = [1, 1]} : vector<8x128xf32> to vector<8x32xf32>
    %275 = vector.extract_strided_slice %270 {offsets = [0, 96], sizes = [8, 32], strides = [1, 1]} : vector<8x128xf32> to vector<8x32xf32>
    %276 = arith.mulf %273, %240 : vector<8x32xf32>
    %277 = arith.mulf %272, %274 : vector<8x32xf32>
    %278 = arith.addf %276, %277 : vector<8x32xf32>
    %279 = math.tanh %278 : vector<8x32xf32>
    %280 = arith.mulf %275, %279 : vector<8x32xf32>
    %281 = tpu.concatenate %280, %261 in 1 : vector<8x32xf32>, vector<8x32xf32> -> vector<8x64xf32>
    %282 = arith.truncf %281 : vector<8x64xf32> to vector<8x64xbf16>
    %cst_43 = arith.constant dense<0.000000e+00> : vector<8x128xf32>
    %283 = tpu.matmul %282, %3, %cst_43 {dimension_numbers = #tpu.dot_dimension_numbers<[1], [0], [0], [1], [0, 0, 1, 1], [], []>} : vector<8x64xbf16>, vector<64x128xbf16>, vector<8x128xf32> -> vector<8x128xf32>
    %284 = arith.addf %283, %15 : vector<8x128xf32>
    %285 = arith.negf %284 : vector<8x128xf32>
    %286 = math.exp %285 : vector<8x128xf32>
    %cst_44 = arith.constant 1.000000e+00 : f32
    %287 = vector.broadcast %cst_44 : f32 to vector<8x128xf32>
    %288 = arith.addf %287, %286 : vector<8x128xf32>
    %289 = arith.divf %287, %288 : vector<8x128xf32>
    %290 = math.tanh %284 : vector<8x128xf32>
    %291 = vector.extract_strided_slice %289 {offsets = [0, 0], sizes = [8, 32], strides = [1, 1]} : vector<8x128xf32> to vector<8x32xf32>
    %292 = vector.extract_strided_slice %289 {offsets = [0, 32], sizes = [8, 32], strides = [1, 1]} : vector<8x128xf32> to vector<8x32xf32>
    %293 = vector.extract_strided_slice %290 {offsets = [0, 64], sizes = [8, 32], strides = [1, 1]} : vector<8x128xf32> to vector<8x32xf32>
    %294 = vector.extract_strided_slice %289 {offsets = [0, 96], sizes = [8, 32], strides = [1, 1]} : vector<8x128xf32> to vector<8x32xf32>
    %295 = arith.mulf %292, %259 : vector<8x32xf32>
    %296 = arith.mulf %291, %293 : vector<8x32xf32>
    %297 = arith.addf %295, %296 : vector<8x32xf32>
    %298 = math.tanh %297 : vector<8x32xf32>
    %299 = arith.mulf %294, %298 : vector<8x32xf32>
    %300 = vector.extract_strided_slice %32 {offsets = [56, 0], sizes = [8, 128], strides = [1, 1]} : vector<64x128xf32> to vector<8x128xf32>
    %301 = arith.truncf %280 : vector<8x32xf32> to vector<8x32xbf16>
    %cst_45 = arith.constant dense<0.000000e+00> : vector<8x128xf32>
    %302 = tpu.matmul %301, %2, %cst_45 {dimension_numbers = #tpu.dot_dimension_numbers<[1], [0], [0], [1], [0, 0, 1, 1], [], []>} : vector<8x32xbf16>, vector<32x128xbf16>, vector<8x128xf32> -> vector<8x128xf32>
    %303 = arith.addf %300, %302 : vector<8x128xf32>
    %304 = arith.negf %303 : vector<8x128xf32>
    %305 = math.exp %304 : vector<8x128xf32>
    %cst_46 = arith.constant 1.000000e+00 : f32
    %306 = vector.broadcast %cst_46 : f32 to vector<8x128xf32>
    %307 = arith.addf %306, %305 : vector<8x128xf32>
    %308 = arith.divf %306, %307 : vector<8x128xf32>
    %309 = math.tanh %303 : vector<8x128xf32>
    %310 = vector.extract_strided_slice %308 {offsets = [0, 0], sizes = [8, 32], strides = [1, 1]} : vector<8x128xf32> to vector<8x32xf32>
    %311 = vector.extract_strided_slice %308 {offsets = [0, 32], sizes = [8, 32], strides = [1, 1]} : vector<8x128xf32> to vector<8x32xf32>
    %312 = vector.extract_strided_slice %309 {offsets = [0, 64], sizes = [8, 32], strides = [1, 1]} : vector<8x128xf32> to vector<8x32xf32>
    %313 = vector.extract_strided_slice %308 {offsets = [0, 96], sizes = [8, 32], strides = [1, 1]} : vector<8x128xf32> to vector<8x32xf32>
    %314 = arith.mulf %311, %278 : vector<8x32xf32>
    %315 = arith.mulf %310, %312 : vector<8x32xf32>
    %316 = arith.addf %314, %315 : vector<8x32xf32>
    %317 = math.tanh %316 : vector<8x32xf32>
    %318 = arith.mulf %313, %317 : vector<8x32xf32>
    %319 = tpu.concatenate %318, %299 in 1 : vector<8x32xf32>, vector<8x32xf32> -> vector<8x64xf32>
    %320 = arith.truncf %319 : vector<8x64xf32> to vector<8x64xbf16>
    %cst_47 = arith.constant dense<0.000000e+00> : vector<8x128xf32>
    %321 = tpu.matmul %320, %3, %cst_47 {dimension_numbers = #tpu.dot_dimension_numbers<[1], [0], [0], [1], [0, 0, 1, 1], [], []>} : vector<8x64xbf16>, vector<64x128xbf16>, vector<8x128xf32> -> vector<8x128xf32>
    %322 = arith.addf %321, %15 : vector<8x128xf32>
    %323 = arith.negf %322 : vector<8x128xf32>
    %324 = math.exp %323 : vector<8x128xf32>
    %cst_48 = arith.constant 1.000000e+00 : f32
    %325 = vector.broadcast %cst_48 : f32 to vector<8x128xf32>
    %326 = arith.addf %325, %324 : vector<8x128xf32>
    %327 = arith.divf %325, %326 : vector<8x128xf32>
    %328 = math.tanh %322 : vector<8x128xf32>
    %329 = vector.extract_strided_slice %327 {offsets = [0, 0], sizes = [8, 32], strides = [1, 1]} : vector<8x128xf32> to vector<8x32xf32>
    %330 = vector.extract_strided_slice %327 {offsets = [0, 32], sizes = [8, 32], strides = [1, 1]} : vector<8x128xf32> to vector<8x32xf32>
    %331 = vector.extract_strided_slice %328 {offsets = [0, 64], sizes = [8, 32], strides = [1, 1]} : vector<8x128xf32> to vector<8x32xf32>
    %332 = vector.extract_strided_slice %327 {offsets = [0, 96], sizes = [8, 32], strides = [1, 1]} : vector<8x128xf32> to vector<8x32xf32>
    %333 = arith.mulf %330, %297 : vector<8x32xf32>
    %334 = arith.mulf %329, %331 : vector<8x32xf32>
    %335 = arith.addf %333, %334 : vector<8x32xf32>
    %336 = math.tanh %335 : vector<8x32xf32>
    %337 = arith.mulf %332, %336 : vector<8x32xf32>
    %338 = arith.truncf %337 : vector<8x32xf32> to vector<8x32xbf16>
    %cst_49 = arith.constant dense<0.000000e+00> : vector<8x8xf32>
    %339 = tpu.matmul %338, %7, %cst_49 {dimension_numbers = #tpu.dot_dimension_numbers<[1], [0], [0], [1], [0, 0, 1, 1], [], []>} : vector<8x32xbf16>, vector<32x8xbf16>, vector<8x8xf32> -> vector<8x8xf32>
    %340 = vector.broadcast %23 : vector<1x8xf32> to vector<8x8xf32>
    %341 = arith.addf %339, %340 : vector<8x8xf32>
    %342 = arith.truncf %337 : vector<8x32xf32> to vector<8x32xbf16>
    %cst_50 = arith.constant dense<0.000000e+00> : vector<8x128xf32>
    %343 = tpu.matmul %342, %4, %cst_50 {dimension_numbers = #tpu.dot_dimension_numbers<[1], [0], [0], [1], [0, 0, 1, 1], [], []>} : vector<8x32xbf16>, vector<32x128xbf16>, vector<8x128xf32> -> vector<8x128xf32>
    %344 = arith.addf %343, %18 : vector<8x128xf32>
    %345 = arith.negf %344 : vector<8x128xf32>
    %346 = math.exp %345 : vector<8x128xf32>
    %cst_51 = arith.constant 1.000000e+00 : f32
    %347 = vector.broadcast %cst_51 : f32 to vector<8x128xf32>
    %348 = arith.addf %347, %346 : vector<8x128xf32>
    %349 = arith.divf %347, %348 : vector<8x128xf32>
    %350 = math.tanh %344 : vector<8x128xf32>
    %351 = vector.extract_strided_slice %349 {offsets = [0, 0], sizes = [8, 32], strides = [1, 1]} : vector<8x128xf32> to vector<8x32xf32>
    %352 = vector.extract_strided_slice %349 {offsets = [0, 32], sizes = [8, 32], strides = [1, 1]} : vector<8x128xf32> to vector<8x32xf32>
    %353 = vector.extract_strided_slice %350 {offsets = [0, 64], sizes = [8, 32], strides = [1, 1]} : vector<8x128xf32> to vector<8x32xf32>
    %354 = vector.extract_strided_slice %349 {offsets = [0, 96], sizes = [8, 32], strides = [1, 1]} : vector<8x128xf32> to vector<8x32xf32>
    %355 = arith.mulf %352, %33 : vector<8x32xf32>
    %356 = arith.mulf %351, %353 : vector<8x32xf32>
    %357 = arith.addf %355, %356 : vector<8x32xf32>
    %358 = math.tanh %357 : vector<8x32xf32>
    %359 = arith.mulf %354, %358 : vector<8x32xf32>
    %360 = arith.truncf %359 : vector<8x32xf32> to vector<8x32xbf16>
    %cst_52 = arith.constant dense<0.000000e+00> : vector<8x128xf32>
    %361 = tpu.matmul %360, %5, %cst_52 {dimension_numbers = #tpu.dot_dimension_numbers<[1], [0], [0], [1], [0, 0, 1, 1], [], []>} : vector<8x32xbf16>, vector<32x128xbf16>, vector<8x128xf32> -> vector<8x128xf32>
    %362 = arith.addf %361, %21 : vector<8x128xf32>
    %363 = arith.negf %362 : vector<8x128xf32>
    %364 = math.exp %363 : vector<8x128xf32>
    %cst_53 = arith.constant 1.000000e+00 : f32
    %365 = vector.broadcast %cst_53 : f32 to vector<8x128xf32>
    %366 = arith.addf %365, %364 : vector<8x128xf32>
    %367 = arith.divf %365, %366 : vector<8x128xf32>
    %368 = math.tanh %362 : vector<8x128xf32>
    %369 = vector.extract_strided_slice %367 {offsets = [0, 0], sizes = [8, 32], strides = [1, 1]} : vector<8x128xf32> to vector<8x32xf32>
    %370 = vector.extract_strided_slice %367 {offsets = [0, 32], sizes = [8, 32], strides = [1, 1]} : vector<8x128xf32> to vector<8x32xf32>
    %371 = vector.extract_strided_slice %368 {offsets = [0, 64], sizes = [8, 32], strides = [1, 1]} : vector<8x128xf32> to vector<8x32xf32>
    %372 = vector.extract_strided_slice %367 {offsets = [0, 96], sizes = [8, 32], strides = [1, 1]} : vector<8x128xf32> to vector<8x32xf32>
    %373 = arith.mulf %370, %33 : vector<8x32xf32>
    %374 = arith.mulf %369, %371 : vector<8x32xf32>
    %375 = arith.addf %373, %374 : vector<8x32xf32>
    %376 = math.tanh %375 : vector<8x32xf32>
    %377 = arith.mulf %372, %376 : vector<8x32xf32>
    %378 = arith.truncf %377 : vector<8x32xf32> to vector<8x32xbf16>
    %cst_54 = arith.constant dense<0.000000e+00> : vector<8x128xf32>
    %379 = tpu.matmul %378, %4, %cst_54 {dimension_numbers = #tpu.dot_dimension_numbers<[1], [0], [0], [1], [0, 0, 1, 1], [], []>} : vector<8x32xbf16>, vector<32x128xbf16>, vector<8x128xf32> -> vector<8x128xf32>
    %380 = arith.addf %379, %18 : vector<8x128xf32>
    %381 = arith.negf %380 : vector<8x128xf32>
    %382 = math.exp %381 : vector<8x128xf32>
    %cst_55 = arith.constant 1.000000e+00 : f32
    %383 = vector.broadcast %cst_55 : f32 to vector<8x128xf32>
    %384 = arith.addf %383, %382 : vector<8x128xf32>
    %385 = arith.divf %383, %384 : vector<8x128xf32>
    %386 = math.tanh %380 : vector<8x128xf32>
    %387 = vector.extract_strided_slice %385 {offsets = [0, 0], sizes = [8, 32], strides = [1, 1]} : vector<8x128xf32> to vector<8x32xf32>
    %388 = vector.extract_strided_slice %385 {offsets = [0, 32], sizes = [8, 32], strides = [1, 1]} : vector<8x128xf32> to vector<8x32xf32>
    %389 = vector.extract_strided_slice %386 {offsets = [0, 64], sizes = [8, 32], strides = [1, 1]} : vector<8x128xf32> to vector<8x32xf32>
    %390 = vector.extract_strided_slice %385 {offsets = [0, 96], sizes = [8, 32], strides = [1, 1]} : vector<8x128xf32> to vector<8x32xf32>
    %391 = arith.mulf %388, %33 : vector<8x32xf32>
    %392 = arith.mulf %387, %389 : vector<8x32xf32>
    %393 = arith.addf %391, %392 : vector<8x32xf32>
    %394 = math.tanh %393 : vector<8x32xf32>
    %395 = arith.mulf %390, %394 : vector<8x32xf32>
    %396 = arith.truncf %395 : vector<8x32xf32> to vector<8x32xbf16>
    %cst_56 = arith.constant dense<0.000000e+00> : vector<8x128xf32>
    %397 = tpu.matmul %396, %5, %cst_56 {dimension_numbers = #tpu.dot_dimension_numbers<[1], [0], [0], [1], [0, 0, 1, 1], [], []>} : vector<8x32xbf16>, vector<32x128xbf16>, vector<8x128xf32> -> vector<8x128xf32>
    %398 = arith.addf %397, %21 : vector<8x128xf32>
    %399 = arith.negf %398 : vector<8x128xf32>
    %400 = math.exp %399 : vector<8x128xf32>
    %cst_57 = arith.constant 1.000000e+00 : f32
    %401 = vector.broadcast %cst_57 : f32 to vector<8x128xf32>
    %402 = arith.addf %401, %400 : vector<8x128xf32>
    %403 = arith.divf %401, %402 : vector<8x128xf32>
    %404 = math.tanh %398 : vector<8x128xf32>
    %405 = vector.extract_strided_slice %403 {offsets = [0, 0], sizes = [8, 32], strides = [1, 1]} : vector<8x128xf32> to vector<8x32xf32>
    %406 = vector.extract_strided_slice %403 {offsets = [0, 32], sizes = [8, 32], strides = [1, 1]} : vector<8x128xf32> to vector<8x32xf32>
    %407 = vector.extract_strided_slice %404 {offsets = [0, 64], sizes = [8, 32], strides = [1, 1]} : vector<8x128xf32> to vector<8x32xf32>
    %408 = vector.extract_strided_slice %403 {offsets = [0, 96], sizes = [8, 32], strides = [1, 1]} : vector<8x128xf32> to vector<8x32xf32>
    %409 = arith.mulf %406, %33 : vector<8x32xf32>
    %410 = arith.mulf %405, %407 : vector<8x32xf32>
    %411 = arith.addf %409, %410 : vector<8x32xf32>
    %412 = math.tanh %411 : vector<8x32xf32>
    %413 = arith.mulf %408, %412 : vector<8x32xf32>
    %414 = arith.truncf %413 : vector<8x32xf32> to vector<8x32xbf16>
    %cst_58 = arith.constant dense<0.000000e+00> : vector<8x128xf32>
    %415 = tpu.matmul %414, %4, %cst_58 {dimension_numbers = #tpu.dot_dimension_numbers<[1], [0], [0], [1], [0, 0, 1, 1], [], []>} : vector<8x32xbf16>, vector<32x128xbf16>, vector<8x128xf32> -> vector<8x128xf32>
    %416 = arith.addf %415, %18 : vector<8x128xf32>
    %417 = arith.negf %416 : vector<8x128xf32>
    %418 = math.exp %417 : vector<8x128xf32>
    %cst_59 = arith.constant 1.000000e+00 : f32
    %419 = vector.broadcast %cst_59 : f32 to vector<8x128xf32>
    %420 = arith.addf %419, %418 : vector<8x128xf32>
    %421 = arith.divf %419, %420 : vector<8x128xf32>
    %422 = math.tanh %416 : vector<8x128xf32>
    %423 = vector.extract_strided_slice %421 {offsets = [0, 0], sizes = [8, 32], strides = [1, 1]} : vector<8x128xf32> to vector<8x32xf32>
    %424 = vector.extract_strided_slice %421 {offsets = [0, 32], sizes = [8, 32], strides = [1, 1]} : vector<8x128xf32> to vector<8x32xf32>
    %425 = vector.extract_strided_slice %422 {offsets = [0, 64], sizes = [8, 32], strides = [1, 1]} : vector<8x128xf32> to vector<8x32xf32>
    %426 = vector.extract_strided_slice %421 {offsets = [0, 96], sizes = [8, 32], strides = [1, 1]} : vector<8x128xf32> to vector<8x32xf32>
    %427 = arith.mulf %424, %33 : vector<8x32xf32>
    %428 = arith.mulf %423, %425 : vector<8x32xf32>
    %429 = arith.addf %427, %428 : vector<8x32xf32>
    %430 = math.tanh %429 : vector<8x32xf32>
    %431 = arith.mulf %426, %430 : vector<8x32xf32>
    %432 = arith.truncf %431 : vector<8x32xf32> to vector<8x32xbf16>
    %cst_60 = arith.constant dense<0.000000e+00> : vector<8x128xf32>
    %433 = tpu.matmul %432, %5, %cst_60 {dimension_numbers = #tpu.dot_dimension_numbers<[1], [0], [0], [1], [0, 0, 1, 1], [], []>} : vector<8x32xbf16>, vector<32x128xbf16>, vector<8x128xf32> -> vector<8x128xf32>
    %434 = arith.addf %433, %21 : vector<8x128xf32>
    %435 = arith.negf %434 : vector<8x128xf32>
    %436 = math.exp %435 : vector<8x128xf32>
    %cst_61 = arith.constant 1.000000e+00 : f32
    %437 = vector.broadcast %cst_61 : f32 to vector<8x128xf32>
    %438 = arith.addf %437, %436 : vector<8x128xf32>
    %439 = arith.divf %437, %438 : vector<8x128xf32>
    %440 = math.tanh %434 : vector<8x128xf32>
    %441 = vector.extract_strided_slice %439 {offsets = [0, 0], sizes = [8, 32], strides = [1, 1]} : vector<8x128xf32> to vector<8x32xf32>
    %442 = vector.extract_strided_slice %439 {offsets = [0, 32], sizes = [8, 32], strides = [1, 1]} : vector<8x128xf32> to vector<8x32xf32>
    %443 = vector.extract_strided_slice %440 {offsets = [0, 64], sizes = [8, 32], strides = [1, 1]} : vector<8x128xf32> to vector<8x32xf32>
    %444 = vector.extract_strided_slice %439 {offsets = [0, 96], sizes = [8, 32], strides = [1, 1]} : vector<8x128xf32> to vector<8x32xf32>
    %445 = arith.mulf %442, %33 : vector<8x32xf32>
    %446 = arith.mulf %441, %443 : vector<8x32xf32>
    %447 = arith.addf %445, %446 : vector<8x32xf32>
    %448 = math.tanh %447 : vector<8x32xf32>
    %449 = arith.mulf %444, %448 : vector<8x32xf32>
    %450 = arith.truncf %449 : vector<8x32xf32> to vector<8x32xbf16>
    %cst_62 = arith.constant dense<0.000000e+00> : vector<8x128xf32>
    %451 = tpu.matmul %450, %4, %cst_62 {dimension_numbers = #tpu.dot_dimension_numbers<[1], [0], [0], [1], [0, 0, 1, 1], [], []>} : vector<8x32xbf16>, vector<32x128xbf16>, vector<8x128xf32> -> vector<8x128xf32>
    %452 = arith.addf %451, %18 : vector<8x128xf32>
    %453 = arith.negf %452 : vector<8x128xf32>
    %454 = math.exp %453 : vector<8x128xf32>
    %cst_63 = arith.constant 1.000000e+00 : f32
    %455 = vector.broadcast %cst_63 : f32 to vector<8x128xf32>
    %456 = arith.addf %455, %454 : vector<8x128xf32>
    %457 = arith.divf %455, %456 : vector<8x128xf32>
    %458 = math.tanh %452 : vector<8x128xf32>
    %459 = vector.extract_strided_slice %457 {offsets = [0, 0], sizes = [8, 32], strides = [1, 1]} : vector<8x128xf32> to vector<8x32xf32>
    %460 = vector.extract_strided_slice %457 {offsets = [0, 32], sizes = [8, 32], strides = [1, 1]} : vector<8x128xf32> to vector<8x32xf32>
    %461 = vector.extract_strided_slice %458 {offsets = [0, 64], sizes = [8, 32], strides = [1, 1]} : vector<8x128xf32> to vector<8x32xf32>
    %462 = vector.extract_strided_slice %457 {offsets = [0, 96], sizes = [8, 32], strides = [1, 1]} : vector<8x128xf32> to vector<8x32xf32>
    %463 = arith.mulf %460, %33 : vector<8x32xf32>
    %464 = arith.mulf %459, %461 : vector<8x32xf32>
    %465 = arith.addf %463, %464 : vector<8x32xf32>
    %466 = math.tanh %465 : vector<8x32xf32>
    %467 = arith.mulf %462, %466 : vector<8x32xf32>
    %468 = arith.truncf %467 : vector<8x32xf32> to vector<8x32xbf16>
    %cst_64 = arith.constant dense<0.000000e+00> : vector<8x128xf32>
    %469 = tpu.matmul %468, %5, %cst_64 {dimension_numbers = #tpu.dot_dimension_numbers<[1], [0], [0], [1], [0, 0, 1, 1], [], []>} : vector<8x32xbf16>, vector<32x128xbf16>, vector<8x128xf32> -> vector<8x128xf32>
    %470 = arith.addf %469, %21 : vector<8x128xf32>
    %471 = arith.negf %470 : vector<8x128xf32>
    %472 = math.exp %471 : vector<8x128xf32>
    %cst_65 = arith.constant 1.000000e+00 : f32
    %473 = vector.broadcast %cst_65 : f32 to vector<8x128xf32>
    %474 = arith.addf %473, %472 : vector<8x128xf32>
    %475 = arith.divf %473, %474 : vector<8x128xf32>
    %476 = math.tanh %470 : vector<8x128xf32>
    %477 = vector.extract_strided_slice %475 {offsets = [0, 0], sizes = [8, 32], strides = [1, 1]} : vector<8x128xf32> to vector<8x32xf32>
    %478 = vector.extract_strided_slice %475 {offsets = [0, 32], sizes = [8, 32], strides = [1, 1]} : vector<8x128xf32> to vector<8x32xf32>
    %479 = vector.extract_strided_slice %476 {offsets = [0, 64], sizes = [8, 32], strides = [1, 1]} : vector<8x128xf32> to vector<8x32xf32>
    %480 = vector.extract_strided_slice %475 {offsets = [0, 96], sizes = [8, 32], strides = [1, 1]} : vector<8x128xf32> to vector<8x32xf32>
    %481 = arith.mulf %478, %33 : vector<8x32xf32>
    %482 = arith.mulf %477, %479 : vector<8x32xf32>
    %483 = arith.addf %481, %482 : vector<8x32xf32>
    %484 = math.tanh %483 : vector<8x32xf32>
    %485 = arith.mulf %480, %484 : vector<8x32xf32>
    %486 = tpu.concatenate %71, %109, %147, %185, %223, %261, %299, %337, %377, %413, %449, %485 in 0 : vector<8x32xf32>, vector<8x32xf32>, vector<8x32xf32>, vector<8x32xf32>, vector<8x32xf32>, vector<8x32xf32>, vector<8x32xf32>, vector<8x32xf32>, vector<8x32xf32>, vector<8x32xf32>, vector<8x32xf32>, vector<8x32xf32> -> vector<96x32xf32>
    %487 = arith.truncf %341 : vector<8x8xf32> to vector<8x8xbf16>
    %cst_66 = arith.constant dense<0.000000e+00> : vector<8x64xf32>
    %488 = tpu.matmul %487, %10, %cst_66 {dimension_numbers = #tpu.dot_dimension_numbers<[1], [0], [0], [1], [0, 0, 1, 1], [], []>} : vector<8x8xbf16>, vector<8x64xbf16>, vector<8x64xf32> -> vector<8x64xf32>
    %489 = vector.extract_strided_slice %488 {offsets = [0, 0], sizes = [8, 32], strides = [1, 1]} : vector<8x64xf32> to vector<8x32xf32>
    %490 = vector.extract_strided_slice %488 {offsets = [0, 32], sizes = [8, 32], strides = [1, 1]} : vector<8x64xf32> to vector<8x32xf32>
    %491 = vector.broadcast %22 : vector<1x32xf32> to vector<8x32xf32>
    %492 = arith.addf %490, %491 : vector<8x32xf32>
    %493 = vector.extract_strided_slice %28 {offsets = [0, 0], sizes = [8, 16], strides = [1, 1]} : vector<64x48xf32> to vector<8x16xf32>
    %494 = arith.truncf %493 : vector<8x16xf32> to vector<8x16xbf16>
    %cst_67 = arith.constant dense<0.000000e+00> : vector<8x32xf32>
    %495 = tpu.matmul %494, %11, %cst_67 {dimension_numbers = #tpu.dot_dimension_numbers<[1], [0], [0], [1], [0, 0, 1, 1], [], []>} : vector<8x16xbf16>, vector<16x32xbf16>, vector<8x32xf32> -> vector<8x32xf32>
    %496 = arith.addf %495, %489 : vector<8x32xf32>
    %497 = vector.broadcast %26 : vector<1x32xf32> to vector<8x32xf32>
    %498 = arith.addf %496, %497 : vector<8x32xf32>
    %cst_68 = arith.constant 0.000000e+00 : f32
    %499 = vector.broadcast %cst_68 : f32 to vector<8x32xf32>
    %500 = arith.cmpf oge, %498, %499 : vector<8x32xf32>
    %cst_69 = arith.constant 0.00999999977 : f32
    %501 = vector.broadcast %cst_69 : f32 to vector<8x32xf32>
    %502 = arith.mulf %501, %498 : vector<8x32xf32>
    %503 = arith.select %500, %498, %502 : vector<8x32xi1>, vector<8x32xf32>
    %504 = arith.truncf %503 : vector<8x32xf32> to vector<8x32xbf16>
    %cst_70 = arith.constant dense<0.000000e+00> : vector<8x8xf32>
    %505 = tpu.matmul %504, %9, %cst_70 {dimension_numbers = #tpu.dot_dimension_numbers<[1], [0], [0], [1], [0, 0, 1, 1], [], []>} : vector<8x32xbf16>, vector<32x8xbf16>, vector<8x8xf32> -> vector<8x8xf32>
    %506 = vector.broadcast %25 : vector<1x8xf32> to vector<8x8xf32>
    %507 = arith.addf %505, %506 : vector<8x8xf32>
    %508 = arith.truncf %486 : vector<96x32xf32> to vector<96x32xbf16>
    %cst_71 = arith.constant dense<0.000000e+00> : vector<96x32xf32>
    %509 = tpu.matmul %508, %6, %cst_71 {dimension_numbers = #tpu.dot_dimension_numbers<[1], [0], [0], [1], [0, 0, 1, 1], [], []>} : vector<96x32xbf16>, vector<32x32xbf16>, vector<96x32xf32> -> vector<96x32xf32>
    %510 = vector.shape_cast %509 : vector<96x32xf32> to vector<12x8x32xf32>
    %511 = vector.shape_cast %492 : vector<8x32xf32> to vector<1x8x32xf32>
    %512 = vector.broadcast %511 : vector<1x8x32xf32> to vector<12x8x32xf32>
    %513 = arith.addf %510, %512 : vector<12x8x32xf32>
    %cst_72 = arith.constant 0.000000e+00 : f32
    %514 = vector.broadcast %cst_72 : f32 to vector<12x8x32xf32>
    %515 = arith.cmpf oge, %513, %514 : vector<12x8x32xf32>
    %cst_73 = arith.constant 0.00999999977 : f32
    %516 = vector.broadcast %cst_73 : f32 to vector<12x8x32xf32>
    %517 = arith.mulf %516, %513 : vector<12x8x32xf32>
    %518 = arith.select %515, %513, %517 : vector<12x8x32xi1>, vector<12x8x32xf32>
    %519 = vector.shape_cast %518 : vector<12x8x32xf32> to vector<96x32xf32>
    %520 = arith.truncf %519 : vector<96x32xf32> to vector<96x32xbf16>
    %cst_74 = arith.constant dense<0.000000e+00> : vector<96x8xf32>
    %521 = tpu.matmul %520, %8, %cst_74 {dimension_numbers = #tpu.dot_dimension_numbers<[1], [0], [0], [1], [0, 0, 1, 1], [], []>} : vector<96x32xbf16>, vector<32x8xbf16>, vector<96x8xf32> -> vector<96x8xf32>
    %522 = vector.broadcast %24 : vector<1x8xf32> to vector<96x8xf32>
    %523 = arith.addf %521, %522 : vector<96x8xf32>
    %524 = vector.extract_strided_slice %523 {offsets = [0, 0], sizes = [8, 8], strides = [1, 1]} : vector<96x8xf32> to vector<8x8xf32>
    %525 = arith.addf %507, %524 : vector<8x8xf32>
    %526 = vector.extract_strided_slice %523 {offsets = [8, 0], sizes = [8, 8], strides = [1, 1]} : vector<96x8xf32> to vector<8x8xf32>
    %527 = arith.addf %525, %526 : vector<8x8xf32>
    %528 = vector.extract_strided_slice %523 {offsets = [16, 0], sizes = [8, 8], strides = [1, 1]} : vector<96x8xf32> to vector<8x8xf32>
    %529 = arith.addf %527, %528 : vector<8x8xf32>
    %530 = vector.extract_strided_slice %523 {offsets = [24, 0], sizes = [8, 8], strides = [1, 1]} : vector<96x8xf32> to vector<8x8xf32>
    %531 = arith.addf %529, %530 : vector<8x8xf32>
    %532 = vector.extract_strided_slice %523 {offsets = [32, 0], sizes = [8, 8], strides = [1, 1]} : vector<96x8xf32> to vector<8x8xf32>
    %533 = arith.addf %531, %532 : vector<8x8xf32>
    %534 = vector.extract_strided_slice %523 {offsets = [40, 0], sizes = [8, 8], strides = [1, 1]} : vector<96x8xf32> to vector<8x8xf32>
    %535 = arith.addf %533, %534 : vector<8x8xf32>
    %536 = vector.extract_strided_slice %523 {offsets = [48, 0], sizes = [8, 8], strides = [1, 1]} : vector<96x8xf32> to vector<8x8xf32>
    %537 = arith.addf %535, %536 : vector<8x8xf32>
    %538 = vector.extract_strided_slice %523 {offsets = [56, 0], sizes = [8, 8], strides = [1, 1]} : vector<96x8xf32> to vector<8x8xf32>
    %539 = arith.addf %537, %538 : vector<8x8xf32>
    %540 = vector.extract_strided_slice %523 {offsets = [64, 0], sizes = [8, 8], strides = [1, 1]} : vector<96x8xf32> to vector<8x8xf32>
    %541 = arith.addf %539, %540 : vector<8x8xf32>
    %542 = vector.extract_strided_slice %523 {offsets = [72, 0], sizes = [8, 8], strides = [1, 1]} : vector<96x8xf32> to vector<8x8xf32>
    %543 = arith.addf %541, %542 : vector<8x8xf32>
    %544 = vector.extract_strided_slice %523 {offsets = [80, 0], sizes = [8, 8], strides = [1, 1]} : vector<96x8xf32> to vector<8x8xf32>
    %545 = arith.addf %543, %544 : vector<8x8xf32>
    %546 = vector.extract_strided_slice %523 {offsets = [88, 0], sizes = [8, 8], strides = [1, 1]} : vector<96x8xf32> to vector<8x8xf32>
    %547 = arith.addf %545, %546 : vector<8x8xf32>
    %548 = tpu.concatenate %525, %527, %529, %531, %533, %535, %537, %539, %541, %543, %545, %547 in 0 : vector<8x8xf32>, vector<8x8xf32>, vector<8x8xf32>, vector<8x8xf32>, vector<8x8xf32>, vector<8x8xf32>, vector<8x8xf32>, vector<8x8xf32>, vector<8x8xf32>, vector<8x8xf32>, vector<8x8xf32>, vector<8x8xf32> -> vector<96x8xf32>
    %549 = vector.shape_cast %341 : vector<8x8xf32> to vector<1x8x8xf32>
    %550 = vector.shape_cast %549 : vector<1x8x8xf32> to vector<1x8x8xf32>
    %551 = vector.broadcast %550 : vector<1x8x8xf32> to vector<12x8x8xf32>
    %552 = vector.shape_cast %551 : vector<12x8x8xf32> to vector<96x8xf32>
    %cst_75 = arith.constant 0.000000e+00 : f32
    %553 = vector.broadcast %cst_75 : f32 to vector<96x80xf32>
    %554 = tpu.concatenate %486, %548, %552, %553 in 1 : vector<96x32xf32>, vector<96x8xf32>, vector<96x8xf32>, vector<96x80xf32> -> vector<96x128xf32>
    %c0_76 = arith.constant 0 : index
    %c0_77 = arith.constant 0 : index
    %c0_78 = arith.constant 0 : index
    %555 = vector.load %arg4[%c0_76, %c0_77, %c0_78] : memref<1x96x128xf32, #tpu.memory_space<vmem>>, vector<1x96x128xf32>
    %556 = vector.shape_cast %555 : vector<1x96x128xf32> to vector<96x128xf32>
    %557 = vector.shape_cast %554 : vector<96x128xf32> to vector<1x96x128xf32>
    tpu.vector_store %arg4[%c0_76, %c0_77, %c0_78], %557 {strides = array<i32>} : memref<1x96x128xf32, #tpu.memory_space<vmem>>, vector<1x96x128xf32>,
    return
  }
  func.func @transform_0(%arg0: i32) -> (i32, i32, i32) {
    %c0_i32 = arith.constant 0 : i32
    %c0_i32_0 = arith.constant 0 : i32
    %c0_i32_1 = arith.constant 0 : i32
    return %arg0, %c0_i32, %c0_i32_0 : i32, i32, i32
  }
  func.func @transform_1(%arg0: i32) -> (i32, i32) {
    %c0_i32 = arith.constant 0 : i32
    %c0_i32_0 = arith.constant 0 : i32
    %c0_i32_1 = arith.constant 0 : i32
    return %c0_i32, %c0_i32_0 : i32, i32
  }
  func.func @transform_2(%arg0: i32) -> (i32, i32) {
    %c0_i32 = arith.constant 0 : i32
    %c0_i32_0 = arith.constant 0 : i32
    %c0_i32_1 = arith.constant 0 : i32
    return %c0_i32, %c0_i32_0 : i32, i32
  }
  func.func @transform_3(%arg0: i32) -> (i32, i32, i32) {
    %c0_i32 = arith.constant 0 : i32
    %c0_i32_0 = arith.constant 0 : i32
    %c0_i32_1 = arith.constant 0 : i32
    return %arg0, %c0_i32, %c0_i32_0 : i32, i32, i32
  }
}

</mosaic_0001>

<llo_original>
// kernel: tpu_custom_call.1
$region0: #{tpu_custom_call.1}
  #allocation0 [shape = 'u32[]', space=smem, size = 0x4, offset = 0x4, fixed_abs, tag = 'smem constant byte address 0x4 - core index']
  #allocation1 [shape = 'u32[144,128]{1,0:T(1,128)}', space=vmem, size = 0x12000, scoped, tag = 'internal scratch']
  %s0 = inlined_call_operand.vmem [shape: f32[1,64,48], index: 0, kind: input, shape index: {}]
  %s1 = inlined_call_operand.hbm [shape: bf16[368,128], index: 1, kind: input, shape index: {}]
  %s2 = inlined_call_operand.vmem [shape: f32[16,128], index: 2, kind: input, shape index: {}]
  %s3 = inlined_call_operand.hbm [shape: f32[1,96,128], index: 3, kind: output, shape index: {}]
  %s4 = sld [smem:[#allocation0]]
  $region26: #{tpu_custom_call.1} parent=0
    _
  %s6 = ssub.s32 1, %s4
  %s7 = scalar_select 0, %s6, %s4
  $region1: #{tpu_custom_call.1} parent=0
    #allocation2 [shape = 'u8[94208]{0}', space=vmem, size = 0x17000, scoped, tag = 'input window, operand 1, single buffered']
    #allocation3 [shape = 's32[1]{0}', space=sflag, size = 0x4, scoped, tag = 'scoped memory for tpu_custom_call.1']
    #allocation4 [shape = 's32[1]{0}', space=sflag, size = 0x4, scoped, tag = 'scoped memory for tpu_custom_call.1']
    #allocation5 [shape = 'u8[49152]{0}', space=vmem, size = 0xc000, scoped, tag = 'output window, operand 0, single buffered']
    %8 = vsyncpa [#allocation3], 0
    %9 = vsyncpa [#allocation4], 0
    // Predicated region
    $region2: #{tpu_custom_call.1} parent=1 // pred_check
      _
    $region3: #{tpu_custom_call.1} parent=1 // pred_check_branch
      %11 = sbr.rel (0) target = $region5
    $region4: #{tpu_custom_call.1} parent=1 // pred_region
      _
    $region5: #{tpu_custom_call.1} parent=1 // pred_fallthru
      _
    // Predicated region
    $region6: #{tpu_custom_call.1} parent=1 // pred_check
      _
    $region7: #{tpu_custom_call.1} parent=1 // pred_check_branch
      %13 = sbr.rel (0) target = $region9
    $region8: #{tpu_custom_call.1} parent=1 // pred_region
      %s15 = ssub.s32 2944, 2944
      %16 = vsyncadd [#allocation3], %s15
      %s17 = sshll.u32 [#allocation2], 4
      %s18 = int_to_ptr.vmem [resolvable:$true] %s17
      %23 = dma.hbm_to_vmem [thread:$0]  %s1, 2944, %s18, [#allocation3], 64, 64, 4
    $region9: #{tpu_custom_call.1} parent=1 // pred_fallthru
      _
    // Predicated region
    $region10: #{tpu_custom_call.1} parent=1 // pred_check
      _
    $region11: #{tpu_custom_call.1} parent=1 // pred_check_branch
      %25 = sbr.rel (0) target = $region13
    $region12: #{tpu_custom_call.1} parent=1 // pred_region
      _
    $region13: #{tpu_custom_call.1} parent=1 // pred_fallthru
      _
    // Predicated region
    $region14: #{tpu_custom_call.1} parent=1 // pred_check
      _
    $region15: #{tpu_custom_call.1} parent=1 // pred_check_branch
      %27 = sbr.rel (0) target = $region17
    $region16: #{tpu_custom_call.1} parent=1 // pred_region
      %28 = dma.done [#allocation3], 2944
    $region17: #{tpu_custom_call.1} parent=1 // pred_fallthru
      _
    %v30 = vld [vmem:[%s2] sm:$0xff]
    %v31 = vld [vmem:[%s2 + $0x8] sm:$0xff]
    %v32 = vld [vmem:[#allocation2] sm:$0xf]
    %v33 = vld [vmem:[#allocation2 + $0x4] sm:$0xf]
    %v34 = vld [vmem:[#allocation2 + $0x8] sm:$0xf]
    %v35 = vld [vmem:[#allocation2 + $0xc] sm:$0xf]
    %v36 = vld [vmem:[#allocation2 + $0x10] sm:$0xf]
    %v37 = vld [vmem:[#allocation2 + $0x14] sm:$0xf]
    %v38 = vld [vmem:[#allocation2 + $0x18] sm:$0xf]
    %v39 = vld [vmem:[#allocation2 + $0x1c] sm:$0xf]
    %v40 = vld [vmem:[#allocation2 + $0x20] sm:$0xf]
    %v41 = vld [vmem:[#allocation2 + $0x24] sm:$0xf]
    %v42 = vld [vmem:[#allocation2 + $0x28] sm:$0xf]
    %v43 = vld [vmem:[#allocation2 + $0x2c] sm:$0xf]
    %v44 = vld [vmem:[#allocation2 + $0x30] sm:$0xf]
    %v45 = vld [vmem:[#allocation2 + $0x34] sm:$0xf]
    %v46 = vld [vmem:[#allocation2 + $0x38] sm:$0xf]
    %v47 = vld [vmem:[#allocation2 + $0x3c] sm:$0xf]
    %v48 = vld [vmem:[#allocation2 + $0x40] sm:$0xf]
    %v49 = vld [vmem:[#allocation2 + $0x44] sm:$0xf]
    %v50 = vld [vmem:[#allocation2 + $0x48] sm:$0xf]
    %v51 = vld [vmem:[#allocation2 + $0x4c] sm:$0xf]
    %v52 = vld [vmem:[#allocation2 + $0x50] sm:$0xf]
    %v53 = vld [vmem:[#allocation2 + $0x54] sm:$0xf]
    %v54 = vld [vmem:[#allocation2 + $0x58] sm:$0xf]
    %v55 = vld [vmem:[#allocation2 + $0x5c] sm:$0xf]
    %v56 = vld [vmem:[#allocation2 + $0x60] sm:$0xf]
    %v57 = vld [vmem:[#allocation2 + $0x64] sm:$0xf]
    %v58 = vld [vmem:[#allocation2 + $0x68] sm:$0xf]
    %v59 = vld [vmem:[#allocation2 + $0x6c] sm:$0xf]
    %v60 = vld [vmem:[#allocation2 + $0x70] sm:$0xf]
    %v61 = vld [vmem:[#allocation2 + $0x74] sm:$0xf]
    %v62 = vld [vmem:[#allocation2 + $0x78] sm:$0xf]
    %v63 = vld [vmem:[#allocation2 + $0x7c] sm:$0xf]
    %v64 = vld [vmem:[#allocation2 + $0x80] sm:$0xf]
    %v65 = vld [vmem:[#allocation2 + $0x84] sm:$0xf]
    %v66 = vld [vmem:[#allocation2 + $0x88] sm:$0xf]
    %v67 = vld [vmem:[#allocation2 + $0x8c] sm:$0xf]
    %v68 = vld [vmem:[#allocation2 + $0x90] sm:$0xf]
    %v69 = vld [vmem:[#allocation2 + $0x94] sm:$0xf]
    %v70 = vld [vmem:[#allocation2 + $0x98] sm:$0xf]
    %v71 = vld [vmem:[#allocation2 + $0x9c] sm:$0xf]
    %v72 = vld [vmem:[#allocation2 + $0xa0] sm:$0xf]
    %v73 = vld [vmem:[#allocation2 + $0xa4] sm:$0xf]
    %v74 = vld [vmem:[#allocation2 + $0xa8] sm:$0xf]
    %v75 = vld [vmem:[#allocation2 + $0xb0] sm:$0xf]
    %v76 = vld [vmem:[#allocation2 + $0xb4] sm:$0xf]
    %v77 = vlaneseq
    %v78 = vshrl.u32 %v77, 7
    %v79 = vsub.s32 1, %v78
    %v80 = vrot.slane %v30, %v79
    %v81 = vlaneseq
    %v82 = vshrl.u32 %v81, 7
    %v83 = vsub.s32 2, %v82
    %v84 = vrot.slane %v30, %v83
    %v85 = vlaneseq
    %v86 = vshrl.u32 %v85, 7
    %v87 = vsub.s32 3, %v86
    %v88 = vrot.slane %v30, %v87
    %v89 = vld [vmem:[%s0] sm:$0xff]
    %v90 = vld [vmem:[%s0 + $0x8] sm:$0xff]
    %v91 = vld [vmem:[%s0 + $0x10] sm:$0xff]
    %v92 = vld [vmem:[%s0 + $0x18] sm:$0xff]
    %v93 = vld [vmem:[%s0 + $0x20] sm:$0xff]
    %v94 = vld [vmem:[%s0 + $0x28] sm:$0xff]
    %v95 = vld [vmem:[%s0 + $0x30] sm:$0xff]
    %v96 = vld [vmem:[%s0 + $0x38] sm:$0xff]
    %v97 = vpack.c.bf16 %v90, %v89
    %v98 = vpack.c.bf16 %v92, %v91
    %v99 = vpack.c.bf16 %v94, %v93
    %v100 = vpack.c.bf16 %v96, %v95
    %v101 = vlaneseq
    %v102 = vshrl.u32 %v101, 7
    %v103 = vsub.s32 0, %v102
    %v104 = vrot.slane %v30, %v103
    %v111 = vunpack.c.l.b16 %v32
    %v112 = vunpack.c.l.b16 %v33
    %v113 = vunpack.c.l.b16 %v34
    %v114 = vunpack.c.l.b16 %v35
    %v115 = vunpack.c.l.b16 %v36
    %v116 = vunpack.c.l.b16 %v37
    %v117 = vpack.c.b16 %v112, %v111
    %v118 = vpack.c.b16 %v114, %v113
    %v119 = vpack.c.b16 %v116, %v115
    %vm123 = vcmask 392192
    %v125 = vsel %vm123, %v97, 0
    %v128 = vsel %vm123, %v98, 0
    %v131 = vsel %vm123, %v99, 0
    %v134 = vsel %vm123, %v100, 0
    %136 = vmatprep.subr.bf16.mxu0 0
    %137 = vmatpush1.bf16.msra.mxu0 %v117
    %138 = vmatprep.subr.bf16.mxu0 0
    %139 = vmatpush1.bf16.msra.mxu0 %v118
    %140 = vmatprep.subr.bf16.mxu0 0
    %141 = vmatpush1.bf16.msra.mxu0 %v119
    %142 = vmatprep.subr.bf16.mxu0 0
    %143 = vmatpush1.bf16.msra.mxu0 0
    %144 = vmatprep.subr.bf16.mxu0 0
    %145 = vmatpush1.bf16.msra.mxu0 0
    %146 = vmatprep.subr.bf16.mxu0 0
    %147 = vmatpush1.bf16.msra.mxu0 0
    %148 = vmatprep.subr.bf16.mxu0 0
    %149 = vmatpush1.bf16.msra.mxu0 0
    %150 = vmatprep.subr.bf16.mxu0 0
    %151 = vmatpush1.bf16.msra.mxu0 0
    %152 = vmatprep.subr.bf16.mxu0 0
    %153 = vmatpush1.bf16.msra.mxu0 0
    %154 = vmatprep.subr.bf16.mxu0 0
    %155 = vmatpush1.bf16.msra.mxu0 0
    %156 = vmatprep.subr.bf16.mxu0 0
    %157 = vmatpush1.bf16.msra.mxu0 0
    %158 = vmatprep.subr.bf16.mxu0 0
    %159 = vmatpush1.bf16.msra.mxu0 0
    %160 = vmatprep.subr.bf16.mxu0 0
    %161 = vmatpush1.bf16.msra.mxu0 0
    %162 = vmatprep.subr.bf16.mxu0 0
    %163 = vmatpush1.bf16.msra.mxu0 0
    %164 = vmatprep.subr.bf16.mxu0 0
    %165 = vmatpush1.bf16.msra.mxu0 0
    %166 = vmatprep.subr.bf16.mxu0 0
    %167 = vmatpush1.bf16.msra.mxu0 0
    %168 = vmatprep.mubr.bf16.mxu0 0
    %169 = vmatmul.mubr.bf16.gmra.mrb[0].mxu0 %v125
    %v170 = vpop.f32.mrb[0].mxu0
    %v171 = vadd.f32 %v104, %v170
    %v172 = vpop.f32.mrb[0].mxu0
    %v173 = vpop.f32.mrb[0].mxu0
    %v174 = vadd.f32 %v104, %v173
    %v175 = vpop.f32.mrb[0].mxu0
    %176 = vmatprep.mubr.bf16.mxu0 0
    %177 = vmatmul.mubr.bf16.gmra.mrb[0].mxu0 %v128
    %v178 = vpop.f32.mrb[0].mxu0
    %v179 = vadd.f32 %v104, %v178
    %v180 = vpop.f32.mrb[0].mxu0
    %v181 = vpop.f32.mrb[0].mxu0
    %v182 = vadd.f32 %v104, %v181
    %v183 = vpop.f32.mrb[0].mxu0
    %184 = vmatprep.mubr.bf16.mxu0 0
    %185 = vmatmul.mubr.bf16.gmra.mrb[0].mxu0 %v131
    %v186 = vpop.f32.mrb[0].mxu0
    %v187 = vadd.f32 %v104, %v186
    %v188 = vpop.f32.mrb[0].mxu0
    %v189 = vpop.f32.mrb[0].mxu0
    %v190 = vadd.f32 %v104, %v189
    %v191 = vpop.f32.mrb[0].mxu0
    %192 = vmatprep.mubr.bf16.mxu0 0
    %193 = vmatmul.mubr.bf16.gmra.mrb[0].mxu0 %v134
    %v194 = vpop.f32.mrb[0].mxu0
    %v195 = vadd.f32 %v104, %v194
    %v196 = vpop.f32.mrb[0].mxu0
    %v197 = vpop.f32.mrb[0].mxu0
    %v198 = vadd.f32 %v104, %v197
    %v199 = vpop.f32.mrb[0].mxu0
    %200 = vdwg.mxu0
    %v205 = vunpack.c.l.b16 %v38
    %v206 = vunpack.c.l.b16 %v39
    %v207 = vunpack.c.l.b16 %v40
    %v208 = vunpack.c.l.b16 %v41
    %v209 = vpack.c.b16 %v206, %v205
    %v210 = vpack.c.b16 %v208, %v207
    %vm213 = vcmask 261120
    %v215 = vsel %vm213, 0, 0
    %217 = vmatprep.subr.bf16.mxu0 0
    %218 = vmatpush1.bf16.msra.mxu0 %v209
    %219 = vmatprep.subr.bf16.mxu0 0
    %220 = vmatpush1.bf16.msra.mxu0 %v210
    %221 = vmatprep.subr.bf16.mxu0 0
    %222 = vmatpush1.bf16.msra.mxu0 0
    %223 = vmatprep.subr.bf16.mxu0 0
    %224 = vmatpush1.bf16.msra.mxu0 0
    %225 = vmatprep.subr.bf16.mxu0 0
    %226 = vmatpush1.bf16.msra.mxu0 0
    %227 = vmatprep.subr.bf16.mxu0 0
    %228 = vmatpush1.bf16.msra.mxu0 0
    %229 = vmatprep.subr.bf16.mxu0 0
    %230 = vmatpush1.bf16.msra.mxu0 0
    %231 = vmatprep.subr.bf16.mxu0 0
    %232 = vmatpush1.bf16.msra.mxu0 0
    %233 = vmatprep.subr.bf16.mxu0 0
    %234 = vmatpush1.bf16.msra.mxu0 0
    %235 = vmatprep.subr.bf16.mxu0 0
    %236 = vmatpush1.bf16.msra.mxu0 0
    %237 = vmatprep.subr.bf16.mxu0 0
    %238 = vmatpush1.bf16.msra.mxu0 0
    %239 = vmatprep.subr.bf16.mxu0 0
    %240 = vmatpush1.bf16.msra.mxu0 0
    %241 = vmatprep.subr.bf16.mxu0 0
    %242 = vmatpush1.bf16.msra.mxu0 0
    %243 = vmatprep.subr.bf16.mxu0 0
    %244 = vmatpush1.bf16.msra.mxu0 0
    %245 = vmatprep.subr.bf16.mxu0 0
    %246 = vmatpush1.bf16.msra.mxu0 0
    %247 = vmatprep.subr.bf16.mxu0 0
    %248 = vmatpush1.bf16.msra.mxu0 0
    %249 = vmatprep.mubr.bf16.mxu0 0
    %250 = vmatmul.mubr.bf16.gmra.mrb[0].mxu0 %v215
    %v251 = vpop.f32.mrb[0].mxu0
    %v252 = vadd.f32 0.0, %v251
    %v253 = vpop.f32.mrb[0].mxu0
    %v254 = vpop.f32.mrb[0].mxu0
    %v255 = vpop.f32.mrb[0].mxu0
    %256 = vdwg.mxu0
    %v257 = vadd.f32 %v171, %v252
    %v258 = vxor.u32 %v257, 2147483648
    %v259 = vmul.f32 %v258, 1.442695
    %v260 = vpow.pop %v259
    %v261 = vadd.f32 %v260, 1.0
    %v262 = vrcp.pop %v261
    %v263 = vmul.f32 1.0, %v262
    %v264 = vtanh.pop %v257
    %v265 = vmul.f32 %v263, 0.0
    %267 = vrot.lane.b32.xlu0 %v264, 64
    %v268 = vpop.permute.xlu0 %267
    %v270 = vmul.f32 %v263, %v268
    %272 = vrot.lane.b32.xlu0 %v270, 32
    %v273 = vpop.permute.xlu0 %272
    %v275 = vadd.f32 %v265, %v273
    %v276 = vtanh.pop %v275
    %278 = vrot.lane.b32.xlu0 %v276, 64
    %v279 = vpop.permute.xlu0 %278
    %v281 = vmul.f32 %v263, %v279
    %283 = vrot.lane.b32.xlu0 %v281, 32
    %v284 = vpop.permute.xlu0 %283
    %v286 = vsel %vm213, %v284, 0.0
    %v287 = vpack.c.bf16 %v286, %v286
    %v296 = vunpack.c.l.b16 %v42
    %v297 = vunpack.c.l.b16 %v43
    %v298 = vunpack.c.l.b16 %v44
    %v299 = vunpack.c.l.b16 %v45
    %v300 = vunpack.c.l.b16 %v46
    %v301 = vunpack.c.l.b16 %v47
    %v302 = vunpack.c.l.b16 %v48
    %v303 = vunpack.c.l.b16 %v49
    %v304 = vpack.c.b16 %v297, %v296
    %v305 = vpack.c.b16 %v299, %v298
    %v306 = vpack.c.b16 %v301, %v300
    %v307 = vpack.c.b16 %v303, %v302
    %vm312 = vcmask 523264
    %v314 = vsel %vm312, %v287, 0
    %316 = vmatprep.subr.bf16.mxu0 0
    %317 = vmatpush1.bf16.msra.mxu0 %v304
    %318 = vmatprep.subr.bf16.mxu0 0
    %319 = vmatpush1.bf16.msra.mxu0 %v305
    %320 = vmatprep.subr.bf16.mxu0 0
    %321 = vmatpush1.bf16.msra.mxu0 %v306
    %322 = vmatprep.subr.bf16.mxu0 0
    %323 = vmatpush1.bf16.msra.mxu0 %v307
    %324 = vmatprep.subr.bf16.mxu0 0
    %325 = vmatpush1.bf16.msra.mxu0 0
    %326 = vmatprep.subr.bf16.mxu0 0
    %327 = vmatpush1.bf16.msra.mxu0 0
    %328 = vmatprep.subr.bf16.mxu0 0
    %329 = vmatpush1.bf16.msra.mxu0 0
    %330 = vmatprep.subr.bf16.mxu0 0
    %331 = vmatpush1.bf16.msra.mxu0 0
    %332 = vmatprep.subr.bf16.mxu0 0
    %333 = vmatpush1.bf16.msra.mxu0 0
    %334 = vmatprep.subr.bf16.mxu0 0
    %335 = vmatpush1.bf16.msra.mxu0 0
    %336 = vmatprep.subr.bf16.mxu0 0
    %337 = vmatpush1.bf16.msra.mxu0 0
    %338 = vmatprep.subr.bf16.mxu0 0
    %339 = vmatpush1.bf16.msra.mxu0 0
    %340 = vmatprep.subr.bf16.mxu0 0
    %341 = vmatpush1.bf16.msra.mxu0 0
    %342 = vmatprep.subr.bf16.mxu0 0
    %343 = vmatpush1.bf16.msra.mxu0 0
    %344 = vmatprep.subr.bf16.mxu0 0
    %345 = vmatpush1.bf16.msra.mxu0 0
    %346 = vmatprep.subr.bf16.mxu0 0
    %347 = vmatpush1.bf16.msra.mxu0 0
    %348 = vmatprep.mubr.bf16.mxu0 0
    %349 = vmatmul.mubr.bf16.gmra.mrb[0].mxu0 %v314
    %v350 = vpop.f32.mrb[0].mxu0
    %v351 = vadd.f32 %v80, %v350
    %v352 = vpop.f32.mrb[0].mxu0
    %v353 = vpop.f32.mrb[0].mxu0
    %v354 = vpop.f32.mrb[0].mxu0
    %355 = vdwg.mxu0
    %v356 = vxor.u32 %v351, 2147483648
    %v357 = vmul.f32 %v356, 1.442695
    %v358 = vpow.pop %v357
    %v359 = vadd.f32 %v358, 1.0
    %v360 = vrcp.pop %v359
    %v361 = vmul.f32 1.0, %v360
    %v362 = vtanh.pop %v351
    %v363 = vmul.f32 %v361, 0.0
    %365 = vrot.lane.b32.xlu0 %v362, 64
    %v366 = vpop.permute.xlu0 %365
    %v368 = vmul.f32 %v361, %v366
    %370 = vrot.lane.b32.xlu0 %v368, 32
    %v371 = vpop.permute.xlu0 %370
    %v373 = vadd.f32 %v363, %v371
    %v374 = vtanh.pop %v373
    %376 = vrot.lane.b32.xlu0 %v374, 64
    %v377 = vpop.permute.xlu0 %376
    %v379 = vmul.f32 %v361, %v377
    %v380 = vpack.c.bf16 %v281, %v281
    %382 = vrot.lane.b32.xlu0 %v380, 32
    %v383 = vpop.permute.xlu0 %382
    %v385 = vsel %vm213, %v383, 0
    %387 = vmatprep.subr.bf16.mxu0 0
    %388 = vmatpush1.bf16.msra.mxu0 %v209
    %389 = vmatprep.subr.bf16.mxu0 0
    %390 = vmatpush1.bf16.msra.mxu0 %v210
    %391 = vmatprep.subr.bf16.mxu0 0
    %392 = vmatpush1.bf16.msra.mxu0 0
    %393 = vmatprep.subr.bf16.mxu0 0
    %394 = vmatpush1.bf16.msra.mxu0 0
    %395 = vmatprep.subr.bf16.mxu0 0
    %396 = vmatpush1.bf16.msra.mxu0 0
    %397 = vmatprep.subr.bf16.mxu0 0
    %398 = vmatpush1.bf16.msra.mxu0 0
    %399 = vmatprep.subr.bf16.mxu0 0
    %400 = vmatpush1.bf16.msra.mxu0 0
    %401 = vmatprep.subr.bf16.mxu0 0
    %402 = vmatpush1.bf16.msra.mxu0 0
    %403 = vmatprep.subr.bf16.mxu0 0
    %404 = vmatpush1.bf16.msra.mxu0 0
    %405 = vmatprep.subr.bf16.mxu0 0
    %406 = vmatpush1.bf16.msra.mxu0 0
    %407 = vmatprep.subr.bf16.mxu0 0
    %408 = vmatpush1.bf16.msra.mxu0 0
    %409 = vmatprep.subr.bf16.mxu0 0
    %410 = vmatpush1.bf16.msra.mxu0 0
    %411 = vmatprep.subr.bf16.mxu0 0
    %412 = vmatpush1.bf16.msra.mxu0 0
    %413 = vmatprep.subr.bf16.mxu0 0
    %414 = vmatpush1.bf16.msra.mxu0 0
    %415 = vmatprep.subr.bf16.mxu0 0
    %416 = vmatpush1.bf16.msra.mxu0 0
    %417 = vmatprep.subr.bf16.mxu0 0
    %418 = vmatpush1.bf16.msra.mxu0 0
    %419 = vmatprep.mubr.bf16.mxu0 0
    %420 = vmatmul.mubr.bf16.gmra.mrb[0].mxu0 %v385
    %v421 = vpop.f32.mrb[0].mxu0
    %v422 = vadd.f32 0.0, %v421
    %v423 = vpop.f32.mrb[0].mxu0
    %v424 = vpop.f32.mrb[0].mxu0
    %v425 = vpop.f32.mrb[0].mxu0
    %426 = vdwg.mxu0
    %v427 = vadd.f32 %v174, %v422
    %v428 = vxor.u32 %v427, 2147483648
    %v429 = vmul.f32 %v428, 1.442695
    %v430 = vpow.pop %v429
    %v431 = vadd.f32 %v430, 1.0
    %v432 = vrcp.pop %v431
    %v433 = vmul.f32 1.0, %v432
    %v434 = vtanh.pop %v427
    %v435 = vmul.f32 %v433, %v275
    %437 = vrot.lane.b32.xlu0 %v434, 64
    %v438 = vpop.permute.xlu0 %437
    %v440 = vmul.f32 %v433, %v438
    %442 = vrot.lane.b32.xlu0 %v440, 32
    %v443 = vpop.permute.xlu0 %442
    %v445 = vadd.f32 %v435, %v443
    %v446 = vtanh.pop %v445
    %448 = vrot.lane.b32.xlu0 %v446, 64
    %v449 = vpop.permute.xlu0 %448
    %v451 = vmul.f32 %v433, %v449
    %453 = vrot.lane.b32.xlu0 %v451, 32
    %v454 = vpop.permute.xlu0 %453
    %457 = vrot.lane.b32.xlu0 %v379, 64
    %v458 = vpop.permute.xlu0 %457
    %v460 = vsel %vm213, %v454, %v458
    %v461 = vpack.c.bf16 %v460, %v460
    %v463 = vsel %vm312, %v461, 0
    %465 = vmatprep.subr.bf16.mxu0 0
    %466 = vmatpush1.bf16.msra.mxu0 %v304
    %467 = vmatprep.subr.bf16.mxu0 0
    %468 = vmatpush1.bf16.msra.mxu0 %v305
    %469 = vmatprep.subr.bf16.mxu0 0
    %470 = vmatpush1.bf16.msra.mxu0 %v306
    %471 = vmatprep.subr.bf16.mxu0 0
    %472 = vmatpush1.bf16.msra.mxu0 %v307
    %473 = vmatprep.subr.bf16.mxu0 0
    %474 = vmatpush1.bf16.msra.mxu0 0
    %475 = vmatprep.subr.bf16.mxu0 0
    %476 = vmatpush1.bf16.msra.mxu0 0
    %477 = vmatprep.subr.bf16.mxu0 0
    %478 = vmatpush1.bf16.msra.mxu0 0
    %479 = vmatprep.subr.bf16.mxu0 0
    %480 = vmatpush1.bf16.msra.mxu0 0
    %481 = vmatprep.subr.bf16.mxu0 0
    %482 = vmatpush1.bf16.msra.mxu0 0
    %483 = vmatprep.subr.bf16.mxu0 0
    %484 = vmatpush1.bf16.msra.mxu0 0
    %485 = vmatprep.subr.bf16.mxu0 0
    %486 = vmatpush1.bf16.msra.mxu0 0
    %487 = vmatprep.subr.bf16.mxu0 0
    %488 = vmatpush1.bf16.msra.mxu0 0
    %489 = vmatprep.subr.bf16.mxu0 0
    %490 = vmatpush1.bf16.msra.mxu0 0
    %491 = vmatprep.subr.bf16.mxu0 0
    %492 = vmatpush1.bf16.msra.mxu0 0
    %493 = vmatprep.subr.bf16.mxu0 0
    %494 = vmatpush1.bf16.msra.mxu0 0
    %495 = vmatprep.subr.bf16.mxu0 0
    %496 = vmatpush1.bf16.msra.mxu0 0
    %497 = vmatprep.mubr.bf16.mxu0 0
    %498 = vmatmul.mubr.bf16.gmra.mrb[0].mxu0 %v463
    %v499 = vpop.f32.mrb[0].mxu0
    %v500 = vadd.f32 %v80, %v499
    %v501 = vpop.f32.mrb[0].mxu0
    %v502 = vpop.f32.mrb[0].mxu0
    %v503 = vpop.f32.mrb[0].mxu0
    %504 = vdwg.mxu0
    %v505 = vxor.u32 %v500, 2147483648
    %v506 = vmul.f32 %v505, 1.442695
    %v507 = vpow.pop %v506
    %v508 = vadd.f32 %v507, 1.0
    %v509 = vrcp.pop %v508
    %v510 = vmul.f32 1.0, %v509
    %v511 = vtanh.pop %v500
    %v512 = vmul.f32 %v510, %v373
    %514 = vrot.lane.b32.xlu0 %v511, 64
    %v515 = vpop.permute.xlu0 %514
    %v517 = vmul.f32 %v510, %v515
    %519 = vrot.lane.b32.xlu0 %v517, 32
    %v520 = vpop.permute.xlu0 %519
    %v522 = vadd.f32 %v512, %v520
    %v523 = vtanh.pop %v522
    %525 = vrot.lane.b32.xlu0 %v523, 64
    %v526 = vpop.permute.xlu0 %525
    %v528 = vmul.f32 %v510, %v526
    %v529 = vpack.c.bf16 %v451, %v451
    %531 = vrot.lane.b32.xlu0 %v529, 32
    %v532 = vpop.permute.xlu0 %531
    %v534 = vsel %vm213, %v532, 0
    %536 = vmatprep.subr.bf16.mxu0 0
    %537 = vmatpush1.bf16.msra.mxu0 %v209
    %538 = vmatprep.subr.bf16.mxu0 0
    %539 = vmatpush1.bf16.msra.mxu0 %v210
    %540 = vmatprep.subr.bf16.mxu0 0
    %541 = vmatpush1.bf16.msra.mxu0 0
    %542 = vmatprep.subr.bf16.mxu0 0
    %543 = vmatpush1.bf16.msra.mxu0 0
    %544 = vmatprep.subr.bf16.mxu0 0
    %545 = vmatpush1.bf16.msra.mxu0 0
    %546 = vmatprep.subr.bf16.mxu0 0
    %547 = vmatpush1.bf16.msra.mxu0 0
    %548 = vmatprep.subr.bf16.mxu0 0
    %549 = vmatpush1.bf16.msra.mxu0 0
    %550 = vmatprep.subr.bf16.mxu0 0
    %551 = vmatpush1.bf16.msra.mxu0 0
    %552 = vmatprep.subr.bf16.mxu0 0
    %553 = vmatpush1.bf16.msra.mxu0 0
    %554 = vmatprep.subr.bf16.mxu0 0
    %555 = vmatpush1.bf16.msra.mxu0 0
    %556 = vmatprep.subr.bf16.mxu0 0
    %557 = vmatpush1.bf16.msra.mxu0 0
    %558 = vmatprep.subr.bf16.mxu0 0
    %559 = vmatpush1.bf16.msra.mxu0 0
    %560 = vmatprep.subr.bf16.mxu0 0
    %561 = vmatpush1.bf16.msra.mxu0 0
    %562 = vmatprep.subr.bf16.mxu0 0
    %563 = vmatpush1.bf16.msra.mxu0 0
    %564 = vmatprep.subr.bf16.mxu0 0
    %565 = vmatpush1.bf16.msra.mxu0 0
    %566 = vmatprep.subr.bf16.mxu0 0
    %567 = vmatpush1.bf16.msra.mxu0 0
    %568 = vmatprep.mubr.bf16.mxu0 0
    %569 = vmatmul.mubr.bf16.gmra.mrb[0].mxu0 %v534
    %v570 = vpop.f32.mrb[0].mxu0
    %v571 = vadd.f32 0.0, %v570
    %v572 = vpop.f32.mrb[0].mxu0
    %v573 = vpop.f32.mrb[0].mxu0
    %v574 = vpop.f32.mrb[0].mxu0
    %575 = vdwg.mxu0
    %v576 = vadd.f32 %v179, %v571
    %v577 = vxor.u32 %v576, 2147483648
    %v578 = vmul.f32 %v577, 1.442695
    %v579 = vpow.pop %v578
    %v580 = vadd.f32 %v579, 1.0
    %v581 = vrcp.pop %v580
    %v582 = vmul.f32 1.0, %v581
    %v583 = vtanh.pop %v576
    %v584 = vmul.f32 %v582, %v445
    %586 = vrot.lane.b32.xlu0 %v583, 64
    %v587 = vpop.permute.xlu0 %586
    %v589 = vmul.f32 %v582, %v587
    %591 = vrot.lane.b32.xlu0 %v589, 32
    %v592 = vpop.permute.xlu0 %591
    %v594 = vadd.f32 %v584, %v592
    %v595 = vtanh.pop %v594
    %597 = vrot.lane.b32.xlu0 %v595, 64
    %v598 = vpop.permute.xlu0 %597
    %v600 = vmul.f32 %v582, %v598
    %602 = vrot.lane.b32.xlu0 %v600, 32
    %v603 = vpop.permute.xlu0 %602
    %606 = vrot.lane.b32.xlu0 %v528, 64
    %v607 = vpop.permute.xlu0 %606
    %v609 = vsel %vm213, %v603, %v607
    %v610 = vpack.c.bf16 %v609, %v609
    %v612 = vsel %vm312, %v610, 0
    %614 = vmatprep.subr.bf16.mxu0 0
    %615 = vmatpush1.bf16.msra.mxu0 %v304
    %616 = vmatprep.subr.bf16.mxu0 0
    %617 = vmatpush1.bf16.msra.mxu0 %v305
    %618 = vmatprep.subr.bf16.mxu0 0
    %619 = vmatpush1.bf16.msra.mxu0 %v306
    %620 = vmatprep.subr.bf16.mxu0 0
    %621 = vmatpush1.bf16.msra.mxu0 %v307
    %622 = vmatprep.subr.bf16.mxu0 0
    %623 = vmatpush1.bf16.msra.mxu0 0
    %624 = vmatprep.subr.bf16.mxu0 0
    %625 = vmatpush1.bf16.msra.mxu0 0
    %626 = vmatprep.subr.bf16.mxu0 0
    %627 = vmatpush1.bf16.msra.mxu0 0
    %628 = vmatprep.subr.bf16.mxu0 0
    %629 = vmatpush1.bf16.msra.mxu0 0
    %630 = vmatprep.subr.bf16.mxu0 0
    %631 = vmatpush1.bf16.msra.mxu0 0
    %632 = vmatprep.subr.bf16.mxu0 0
    %633 = vmatpush1.bf16.msra.mxu0 0
    %634 = vmatprep.subr.bf16.mxu0 0
    %635 = vmatpush1.bf16.msra.mxu0 0
    %636 = vmatprep.subr.bf16.mxu0 0
    %637 = vmatpush1.bf16.msra.mxu0 0
    %638 = vmatprep.subr.bf16.mxu0 0
    %639 = vmatpush1.bf16.msra.mxu0 0
    %640 = vmatprep.subr.bf16.mxu0 0
    %641 = vmatpush1.bf16.msra.mxu0 0
    %642 = vmatprep.subr.bf16.mxu0 0
    %643 = vmatpush1.bf16.msra.mxu0 0
    %644 = vmatprep.subr.bf16.mxu0 0
    %645 = vmatpush1.bf16.msra.mxu0 0
    %646 = vmatprep.mubr.bf16.mxu0 0
    %647 = vmatmul.mubr.bf16.gmra.mrb[0].mxu0 %v612
    %v648 = vpop.f32.mrb[0].mxu0
    %v649 = vadd.f32 %v80, %v648
    %v650 = vpop.f32.mrb[0].mxu0
    %v651 = vpop.f32.mrb[0].mxu0
    %v652 = vpop.f32.mrb[0].mxu0
    %653 = vdwg.mxu0
    %v654 = vxor.u32 %v649, 2147483648
    %v655 = vmul.f32 %v654, 1.442695
    %v656 = vpow.pop %v655
    %v657 = vadd.f32 %v656, 1.0
    %v658 = vrcp.pop %v657
    %v659 = vmul.f32 1.0, %v658
    %v660 = vtanh.pop %v649
    %v661 = vmul.f32 %v659, %v522
    %663 = vrot.lane.b32.xlu0 %v660, 64
    %v664 = vpop.permute.xlu0 %663
    %v666 = vmul.f32 %v659, %v664
    %668 = vrot.lane.b32.xlu0 %v666, 32
    %v669 = vpop.permute.xlu0 %668
    %v671 = vadd.f32 %v661, %v669
    %v672 = vtanh.pop %v671
    %674 = vrot.lane.b32.xlu0 %v672, 64
    %v675 = vpop.permute.xlu0 %674
    %v677 = vmul.f32 %v659, %v675
    %v678 = vpack.c.bf16 %v600, %v600
    %680 = vrot.lane.b32.xlu0 %v678, 32
    %v681 = vpop.permute.xlu0 %680
    %v683 = vsel %vm213, %v681, 0
    %685 = vmatprep.subr.bf16.mxu0 0
    %686 = vmatpush1.bf16.msra.mxu0 %v209
    %687 = vmatprep.subr.bf16.mxu0 0
    %688 = vmatpush1.bf16.msra.mxu0 %v210
    %689 = vmatprep.subr.bf16.mxu0 0
    %690 = vmatpush1.bf16.msra.mxu0 0
    %691 = vmatprep.subr.bf16.mxu0 0
    %692 = vmatpush1.bf16.msra.mxu0 0
    %693 = vmatprep.subr.bf16.mxu0 0
    %694 = vmatpush1.bf16.msra.mxu0 0
    %695 = vmatprep.subr.bf16.mxu0 0
    %696 = vmatpush1.bf16.msra.mxu0 0
    %697 = vmatprep.subr.bf16.mxu0 0
    %698 = vmatpush1.bf16.msra.mxu0 0
    %699 = vmatprep.subr.bf16.mxu0 0
    %700 = vmatpush1.bf16.msra.mxu0 0
    %701 = vmatprep.subr.bf16.mxu0 0
    %702 = vmatpush1.bf16.msra.mxu0 0
    %703 = vmatprep.subr.bf16.mxu0 0
    %704 = vmatpush1.bf16.msra.mxu0 0
    %705 = vmatprep.subr.bf16.mxu0 0
    %706 = vmatpush1.bf16.msra.mxu0 0
    %707 = vmatprep.subr.bf16.mxu0 0
    %708 = vmatpush1.bf16.msra.mxu0 0
    %709 = vmatprep.subr.bf16.mxu0 0
    %710 = vmatpush1.bf16.msra.mxu0 0
    %711 = vmatprep.subr.bf16.mxu0 0
    %712 = vmatpush1.bf16.msra.mxu0 0
    %713 = vmatprep.subr.bf16.mxu0 0
    %714 = vmatpush1.bf16.msra.mxu0 0
    %715 = vmatprep.subr.bf16.mxu0 0
    %716 = vmatpush1.bf16.msra.mxu0 0
    %717 = vmatprep.mubr.bf16.mxu0 0
    %718 = vmatmul.mubr.bf16.gmra.mrb[0].mxu0 %v683
    %v719 = vpop.f32.mrb[0].mxu0
    %v720 = vadd.f32 0.0, %v719
    %v721 = vpop.f32.mrb[0].mxu0
    %v722 = vpop.f32.mrb[0].mxu0
    %v723 = vpop.f32.mrb[0].mxu0
    %724 = vdwg.mxu0
    %v725 = vadd.f32 %v182, %v720
    %v726 = vxor.u32 %v725, 2147483648
    %v727 = vmul.f32 %v726, 1.442695
    %v728 = vpow.pop %v727
    %v729 = vadd.f32 %v728, 1.0
    %v730 = vrcp.pop %v729
    %v731 = vmul.f32 1.0, %v730
    %v732 = vtanh.pop %v725
    %v733 = vmul.f32 %v731, %v594
    %735 = vrot.lane.b32.xlu0 %v732, 64
    %v736 = vpop.permute.xlu0 %735
    %v738 = vmul.f32 %v731, %v736
    %740 = vrot.lane.b32.xlu0 %v738, 32
    %v741 = vpop.permute.xlu0 %740
    %v743 = vadd.f32 %v733, %v741
    %v744 = vtanh.pop %v743
    %746 = vrot.lane.b32.xlu0 %v744, 64
    %v747 = vpop.permute.xlu0 %746
    %v749 = vmul.f32 %v731, %v747
    %751 = vrot.lane.b32.xlu0 %v749, 32
    %v752 = vpop.permute.xlu0 %751
    %755 = vrot.lane.b32.xlu0 %v677, 64
    %v756 = vpop.permute.xlu0 %755
    %v758 = vsel %vm213, %v752, %v756
    %v759 = vpack.c.bf16 %v758, %v758
    %v761 = vsel %vm312, %v759, 0
    %763 = vmatprep.subr.bf16.mxu0 0
    %764 = vmatpush1.bf16.msra.mxu0 %v304
    %765 = vmatprep.subr.bf16.mxu0 0
    %766 = vmatpush1.bf16.msra.mxu0 %v305
    %767 = vmatprep.subr.bf16.mxu0 0
    %768 = vmatpush1.bf16.msra.mxu0 %v306
    %769 = vmatprep.subr.bf16.mxu0 0
    %770 = vmatpush1.bf16.msra.mxu0 %v307
    %771 = vmatprep.subr.bf16.mxu0 0
    %772 = vmatpush1.bf16.msra.mxu0 0
    %773 = vmatprep.subr.bf16.mxu0 0
    %774 = vmatpush1.bf16.msra.mxu0 0
    %775 = vmatprep.subr.bf16.mxu0 0
    %776 = vmatpush1.bf16.msra.mxu0 0
    %777 = vmatprep.subr.bf16.mxu0 0
    %778 = vmatpush1.bf16.msra.mxu0 0
    %779 = vmatprep.subr.bf16.mxu0 0
    %780 = vmatpush1.bf16.msra.mxu0 0
    %781 = vmatprep.subr.bf16.mxu0 0
    %782 = vmatpush1.bf16.msra.mxu0 0
    %783 = vmatprep.subr.bf16.mxu0 0
    %784 = vmatpush1.bf16.msra.mxu0 0
    %785 = vmatprep.subr.bf16.mxu0 0
    %786 = vmatpush1.bf16.msra.mxu0 0
    %787 = vmatprep.subr.bf16.mxu0 0
    %788 = vmatpush1.bf16.msra.mxu0 0
    %789 = vmatprep.subr.bf16.mxu0 0
    %790 = vmatpush1.bf16.msra.mxu0 0
    %791 = vmatprep.subr.bf16.mxu0 0
    %792 = vmatpush1.bf16.msra.mxu0 0
    %793 = vmatprep.subr.bf16.mxu0 0
    %794 = vmatpush1.bf16.msra.mxu0 0
    %795 = vmatprep.mubr.bf16.mxu0 0
    %796 = vmatmul.mubr.bf16.gmra.mrb[0].mxu0 %v761
    %v797 = vpop.f32.mrb[0].mxu0
    %v798 = vadd.f32 %v80, %v797
    %v799 = vpop.f32.mrb[0].mxu0
    %v800 = vpop.f32.mrb[0].mxu0
    %v801 = vpop.f32.mrb[0].mxu0
    %802 = vdwg.mxu0
    %v803 = vxor.u32 %v798, 2147483648
    %v804 = vmul.f32 %v803, 1.442695
    %v805 = vpow.pop %v804
    %v806 = vadd.f32 %v805, 1.0
    %v807 = vrcp.pop %v806
    %v808 = vmul.f32 1.0, %v807
    %v809 = vtanh.pop %v798
    %v810 = vmul.f32 %v808, %v671
    %812 = vrot.lane.b32.xlu0 %v809, 64
    %v813 = vpop.permute.xlu0 %812
    %v815 = vmul.f32 %v808, %v813
    %817 = vrot.lane.b32.xlu0 %v815, 32
    %v818 = vpop.permute.xlu0 %817
    %v820 = vadd.f32 %v810, %v818
    %v821 = vtanh.pop %v820
    %823 = vrot.lane.b32.xlu0 %v821, 64
    %v824 = vpop.permute.xlu0 %823
    %v826 = vmul.f32 %v808, %v824
    %v827 = vpack.c.bf16 %v749, %v749
    %829 = vrot.lane.b32.xlu0 %v827, 32
    %v830 = vpop.permute.xlu0 %829
    %v832 = vsel %vm213, %v830, 0
    %834 = vmatprep.subr.bf16.mxu0 0
    %835 = vmatpush1.bf16.msra.mxu0 %v209
    %836 = vmatprep.subr.bf16.mxu0 0
    %837 = vmatpush1.bf16.msra.mxu0 %v210
    %838 = vmatprep.subr.bf16.mxu0 0
    %839 = vmatpush1.bf16.msra.mxu0 0
    %840 = vmatprep.subr.bf16.mxu0 0
    %841 = vmatpush1.bf16.msra.mxu0 0
    %842 = vmatprep.subr.bf16.mxu0 0
    %843 = vmatpush1.bf16.msra.mxu0 0
    %844 = vmatprep.subr.bf16.mxu0 0
    %845 = vmatpush1.bf16.msra.mxu0 0
    %846 = vmatprep.subr.bf16.mxu0 0
    %847 = vmatpush1.bf16.msra.mxu0 0
    %848 = vmatprep.subr.bf16.mxu0 0
    %849 = vmatpush1.bf16.msra.mxu0 0
    %850 = vmatprep.subr.bf16.mxu0 0
    %851 = vmatpush1.bf16.msra.mxu0 0
    %852 = vmatprep.subr.bf16.mxu0 0
    %853 = vmatpush1.bf16.msra.mxu0 0
    %854 = vmatprep.subr.bf16.mxu0 0
    %855 = vmatpush1.bf16.msra.mxu0 0
    %856 = vmatprep.subr.bf16.mxu0 0
    %857 = vmatpush1.bf16.msra.mxu0 0
    %858 = vmatprep.subr.bf16.mxu0 0
    %859 = vmatpush1.bf16.msra.mxu0 0
    %860 = vmatprep.subr.bf16.mxu0 0
    %861 = vmatpush1.bf16.msra.mxu0 0
    %862 = vmatprep.subr.bf16.mxu0 0
    %863 = vmatpush1.bf16.msra.mxu0 0
    %864 = vmatprep.subr.bf16.mxu0 0
    %865 = vmatpush1.bf16.msra.mxu0 0
    %866 = vmatprep.mubr.bf16.mxu0 0
    %867 = vmatmul.mubr.bf16.gmra.mrb[0].mxu0 %v832
    %v868 = vpop.f32.mrb[0].mxu0
    %v869 = vadd.f32 0.0, %v868
    %v870 = vpop.f32.mrb[0].mxu0
    %v871 = vpop.f32.mrb[0].mxu0
    %v872 = vpop.f32.mrb[0].mxu0
    %873 = vdwg.mxu0
    %v874 = vadd.f32 %v187, %v869
    %v875 = vxor.u32 %v874, 2147483648
    %v876 = vmul.f32 %v875, 1.442695
    %v877 = vpow.pop %v876
    %v878 = vadd.f32 %v877, 1.0
    %v879 = vrcp.pop %v878
    %v880 = vmul.f32 1.0, %v879
    %v881 = vtanh.pop %v874
    %v882 = vmul.f32 %v880, %v743
    %884 = vrot.lane.b32.xlu0 %v881, 64
    %v885 = vpop.permute.xlu0 %884
    %v887 = vmul.f32 %v880, %v885
    %889 = vrot.lane.b32.xlu0 %v887, 32
    %v890 = vpop.permute.xlu0 %889
    %v892 = vadd.f32 %v882, %v890
    %v893 = vtanh.pop %v892
    %895 = vrot.lane.b32.xlu0 %v893, 64
    %v896 = vpop.permute.xlu0 %895
    %v898 = vmul.f32 %v880, %v896
    %900 = vrot.lane.b32.xlu0 %v898, 32
    %v901 = vpop.permute.xlu0 %900
    %904 = vrot.lane.b32.xlu0 %v826, 64
    %v905 = vpop.permute.xlu0 %904
    %v907 = vsel %vm213, %v901, %v905
    %v908 = vpack.c.bf16 %v907, %v907
    %v910 = vsel %vm312, %v908, 0
    %912 = vmatprep.subr.bf16.mxu0 0
    %913 = vmatpush1.bf16.msra.mxu0 %v304
    %914 = vmatprep.subr.bf16.mxu0 0
    %915 = vmatpush1.bf16.msra.mxu0 %v305
    %916 = vmatprep.subr.bf16.mxu0 0
    %917 = vmatpush1.bf16.msra.mxu0 %v306
    %918 = vmatprep.subr.bf16.mxu0 0
    %919 = vmatpush1.bf16.msra.mxu0 %v307
    %920 = vmatprep.subr.bf16.mxu0 0
    %921 = vmatpush1.bf16.msra.mxu0 0
    %922 = vmatprep.subr.bf16.mxu0 0
    %923 = vmatpush1.bf16.msra.mxu0 0
    %924 = vmatprep.subr.bf16.mxu0 0
    %925 = vmatpush1.bf16.msra.mxu0 0
    %926 = vmatprep.subr.bf16.mxu0 0
    %927 = vmatpush1.bf16.msra.mxu0 0
    %928 = vmatprep.subr.bf16.mxu0 0
    %929 = vmatpush1.bf16.msra.mxu0 0
    %930 = vmatprep.subr.bf16.mxu0 0
    %931 = vmatpush1.bf16.msra.mxu0 0
    %932 = vmatprep.subr.bf16.mxu0 0
    %933 = vmatpush1.bf16.msra.mxu0 0
    %934 = vmatprep.subr.bf16.mxu0 0
    %935 = vmatpush1.bf16.msra.mxu0 0
    %936 = vmatprep.subr.bf16.mxu0 0
    %937 = vmatpush1.bf16.msra.mxu0 0
    %938 = vmatprep.subr.bf16.mxu0 0
    %939 = vmatpush1.bf16.msra.mxu0 0
    %940 = vmatprep.subr.bf16.mxu0 0
    %941 = vmatpush1.bf16.msra.mxu0 0
    %942 = vmatprep.subr.bf16.mxu0 0
    %943 = vmatpush1.bf16.msra.mxu0 0
    %944 = vmatprep.mubr.bf16.mxu0 0
    %945 = vmatmul.mubr.bf16.gmra.mrb[0].mxu0 %v910
    %v946 = vpop.f32.mrb[0].mxu0
    %v947 = vadd.f32 %v80, %v946
    %v948 = vpop.f32.mrb[0].mxu0
    %v949 = vpop.f32.mrb[0].mxu0
    %v950 = vpop.f32.mrb[0].mxu0
    %951 = vdwg.mxu0
    %v952 = vxor.u32 %v947, 2147483648
    %v953 = vmul.f32 %v952, 1.442695
    %v954 = vpow.pop %v953
    %v955 = vadd.f32 %v954, 1.0
    %v956 = vrcp.pop %v955
    %v957 = vmul.f32 1.0, %v956
    %v958 = vtanh.pop %v947
    %v959 = vmul.f32 %v957, %v820
    %961 = vrot.lane.b32.xlu0 %v958, 64
    %v962 = vpop.permute.xlu0 %961
    %v964 = vmul.f32 %v957, %v962
    %966 = vrot.lane.b32.xlu0 %v964, 32
    %v967 = vpop.permute.xlu0 %966
    %v969 = vadd.f32 %v959, %v967
    %v970 = vtanh.pop %v969
    %972 = vrot.lane.b32.xlu0 %v970, 64
    %v973 = vpop.permute.xlu0 %972
    %v975 = vmul.f32 %v957, %v973
    %v976 = vpack.c.bf16 %v898, %v898
    %978 = vrot.lane.b32.xlu0 %v976, 32
    %v979 = vpop.permute.xlu0 %978
    %v981 = vsel %vm213, %v979, 0
    %983 = vmatprep.subr.bf16.mxu0 0
    %984 = vmatpush1.bf16.msra.mxu0 %v209
    %985 = vmatprep.subr.bf16.mxu0 0
    %986 = vmatpush1.bf16.msra.mxu0 %v210
    %987 = vmatprep.subr.bf16.mxu0 0
    %988 = vmatpush1.bf16.msra.mxu0 0
    %989 = vmatprep.subr.bf16.mxu0 0
    %990 = vmatpush1.bf16.msra.mxu0 0
    %991 = vmatprep.subr.bf16.mxu0 0
    %992 = vmatpush1.bf16.msra.mxu0 0
    %993 = vmatprep.subr.bf16.mxu0 0
    %994 = vmatpush1.bf16.msra.mxu0 0
    %995 = vmatprep.subr.bf16.mxu0 0
    %996 = vmatpush1.bf16.msra.mxu0 0
    %997 = vmatprep.subr.bf16.mxu0 0
    %998 = vmatpush1.bf16.msra.mxu0 0
    %999 = vmatprep.subr.bf16.mxu0 0
    %1000 = vmatpush1.bf16.msra.mxu0 0
    %1001 = vmatprep.subr.bf16.mxu0 0
    %1002 = vmatpush1.bf16.msra.mxu0 0
    %1003 = vmatprep.subr.bf16.mxu0 0
    %1004 = vmatpush1.bf16.msra.mxu0 0
    %1005 = vmatprep.subr.bf16.mxu0 0
    %1006 = vmatpush1.bf16.msra.mxu0 0
    %1007 = vmatprep.subr.bf16.mxu0 0
    %1008 = vmatpush1.bf16.msra.mxu0 0
    %1009 = vmatprep.subr.bf16.mxu0 0
    %1010 = vmatpush1.bf16.msra.mxu0 0
    %1011 = vmatprep.subr.bf16.mxu0 0
    %1012 = vmatpush1.bf16.msra.mxu0 0
    %1013 = vmatprep.subr.bf16.mxu0 0
    %1014 = vmatpush1.bf16.msra.mxu0 0
    %1015 = vmatprep.mubr.bf16.mxu0 0
    %1016 = vmatmul.mubr.bf16.gmra.mrb[0].mxu0 %v981
    %v1017 = vpop.f32.mrb[0].mxu0
    %v1018 = vadd.f32 0.0, %v1017
    %v1019 = vpop.f32.mrb[0].mxu0
    %v1020 = vpop.f32.mrb[0].mxu0
    %v1021 = vpop.f32.mrb[0].mxu0
    %1022 = vdwg.mxu0
    %v1023 = vadd.f32 %v190, %v1018
    %v1024 = vxor.u32 %v1023, 2147483648
    %v1025 = vmul.f32 %v1024, 1.442695
    %v1026 = vpow.pop %v1025
    %v1027 = vadd.f32 %v1026, 1.0
    %v1028 = vrcp.pop %v1027
    %v1029 = vmul.f32 1.0, %v1028
    %v1030 = vtanh.pop %v1023
    %v1031 = vmul.f32 %v1029, %v892
    %1033 = vrot.lane.b32.xlu0 %v1030, 64
    %v1034 = vpop.permute.xlu0 %1033
    %v1036 = vmul.f32 %v1029, %v1034
    %1038 = vrot.lane.b32.xlu0 %v1036, 32
    %v1039 = vpop.permute.xlu0 %1038
    %v1041 = vadd.f32 %v1031, %v1039
    %v1042 = vtanh.pop %v1041
    %1044 = vrot.lane.b32.xlu0 %v1042, 64
    %v1045 = vpop.permute.xlu0 %1044
    %v1047 = vmul.f32 %v1029, %v1045
    %1049 = vrot.lane.b32.xlu0 %v1047, 32
    %v1050 = vpop.permute.xlu0 %1049
    %1053 = vrot.lane.b32.xlu0 %v975, 64
    %v1054 = vpop.permute.xlu0 %1053
    %v1056 = vsel %vm213, %v1050, %v1054
    %v1057 = vpack.c.bf16 %v1056, %v1056
    %v1059 = vsel %vm312, %v1057, 0
    %1061 = vmatprep.subr.bf16.mxu0 0
    %1062 = vmatpush1.bf16.msra.mxu0 %v304
    %1063 = vmatprep.subr.bf16.mxu0 0
    %1064 = vmatpush1.bf16.msra.mxu0 %v305
    %1065 = vmatprep.subr.bf16.mxu0 0
    %1066 = vmatpush1.bf16.msra.mxu0 %v306
    %1067 = vmatprep.subr.bf16.mxu0 0
    %1068 = vmatpush1.bf16.msra.mxu0 %v307
    %1069 = vmatprep.subr.bf16.mxu0 0
    %1070 = vmatpush1.bf16.msra.mxu0 0
    %1071 = vmatprep.subr.bf16.mxu0 0
    %1072 = vmatpush1.bf16.msra.mxu0 0
    %1073 = vmatprep.subr.bf16.mxu0 0
    %1074 = vmatpush1.bf16.msra.mxu0 0
    %1075 = vmatprep.subr.bf16.mxu0 0
    %1076 = vmatpush1.bf16.msra.mxu0 0
    %1077 = vmatprep.subr.bf16.mxu0 0
    %1078 = vmatpush1.bf16.msra.mxu0 0
    %1079 = vmatprep.subr.bf16.mxu0 0
    %1080 = vmatpush1.bf16.msra.mxu0 0
    %1081 = vmatprep.subr.bf16.mxu0 0
    %1082 = vmatpush1.bf16.msra.mxu0 0
    %1083 = vmatprep.subr.bf16.mxu0 0
    %1084 = vmatpush1.bf16.msra.mxu0 0
    %1085 = vmatprep.subr.bf16.mxu0 0
    %1086 = vmatpush1.bf16.msra.mxu0 0
    %1087 = vmatprep.subr.bf16.mxu0 0
    %1088 = vmatpush1.bf16.msra.mxu0 0
    %1089 = vmatprep.subr.bf16.mxu0 0
    %1090 = vmatpush1.bf16.msra.mxu0 0
    %1091 = vmatprep.subr.bf16.mxu0 0
    %1092 = vmatpush1.bf16.msra.mxu0 0
    %1093 = vmatprep.mubr.bf16.mxu0 0
    %1094 = vmatmul.mubr.bf16.gmra.mrb[0].mxu0 %v1059
    %v1095 = vpop.f32.mrb[0].mxu0
    %v1096 = vadd.f32 %v80, %v1095
    %v1097 = vpop.f32.mrb[0].mxu0
    %v1098 = vpop.f32.mrb[0].mxu0
    %v1099 = vpop.f32.mrb[0].mxu0
    %1100 = vdwg.mxu0
    %v1101 = vxor.u32 %v1096, 2147483648
    %v1102 = vmul.f32 %v1101, 1.442695
    %v1103 = vpow.pop %v1102
    %v1104 = vadd.f32 %v1103, 1.0
    %v1105 = vrcp.pop %v1104
    %v1106 = vmul.f32 1.0, %v1105
    %v1107 = vtanh.pop %v1096
    %v1108 = vmul.f32 %v1106, %v969
    %1110 = vrot.lane.b32.xlu0 %v1107, 64
    %v1111 = vpop.permute.xlu0 %1110
    %v1113 = vmul.f32 %v1106, %v1111
    %1115 = vrot.lane.b32.xlu0 %v1113, 32
    %v1116 = vpop.permute.xlu0 %1115
    %v1118 = vadd.f32 %v1108, %v1116
    %v1119 = vtanh.pop %v1118
    %1121 = vrot.lane.b32.xlu0 %v1119, 64
    %v1122 = vpop.permute.xlu0 %1121
    %v1124 = vmul.f32 %v1106, %v1122
    %v1125 = vpack.c.bf16 %v1047, %v1047
    %1127 = vrot.lane.b32.xlu0 %v1125, 32
    %v1128 = vpop.permute.xlu0 %1127
    %v1130 = vsel %vm213, %v1128, 0
    %1132 = vmatprep.subr.bf16.mxu0 0
    %1133 = vmatpush1.bf16.msra.mxu0 %v209
    %1134 = vmatprep.subr.bf16.mxu0 0
    %1135 = vmatpush1.bf16.msra.mxu0 %v210
    %1136 = vmatprep.subr.bf16.mxu0 0
    %1137 = vmatpush1.bf16.msra.mxu0 0
    %1138 = vmatprep.subr.bf16.mxu0 0
    %1139 = vmatpush1.bf16.msra.mxu0 0
    %1140 = vmatprep.subr.bf16.mxu0 0
    %1141 = vmatpush1.bf16.msra.mxu0 0
    %1142 = vmatprep.subr.bf16.mxu0 0
    %1143 = vmatpush1.bf16.msra.mxu0 0
    %1144 = vmatprep.subr.bf16.mxu0 0
    %1145 = vmatpush1.bf16.msra.mxu0 0
    %1146 = vmatprep.subr.bf16.mxu0 0
    %1147 = vmatpush1.bf16.msra.mxu0 0
    %1148 = vmatprep.subr.bf16.mxu0 0
    %1149 = vmatpush1.bf16.msra.mxu0 0
    %1150 = vmatprep.subr.bf16.mxu0 0
    %1151 = vmatpush1.bf16.msra.mxu0 0
    %1152 = vmatprep.subr.bf16.mxu0 0
    %1153 = vmatpush1.bf16.msra.mxu0 0
    %1154 = vmatprep.subr.bf16.mxu0 0
    %1155 = vmatpush1.bf16.msra.mxu0 0
    %1156 = vmatprep.subr.bf16.mxu0 0
    %1157 = vmatpush1.bf16.msra.mxu0 0
    %1158 = vmatprep.subr.bf16.mxu0 0
    %1159 = vmatpush1.bf16.msra.mxu0 0
    %1160 = vmatprep.subr.bf16.mxu0 0
    %1161 = vmatpush1.bf16.msra.mxu0 0
    %1162 = vmatprep.subr.bf16.mxu0 0
    %1163 = vmatpush1.bf16.msra.mxu0 0
    %1164 = vmatprep.mubr.bf16.mxu0 0
    %1165 = vmatmul.mubr.bf16.gmra.mrb[0].mxu0 %v1130
    %v1166 = vpop.f32.mrb[0].mxu0
    %v1167 = vadd.f32 0.0, %v1166
    %v1168 = vpop.f32.mrb[0].mxu0
    %v1169 = vpop.f32.mrb[0].mxu0
    %v1170 = vpop.f32.mrb[0].mxu0
    %1171 = vdwg.mxu0
    %v1172 = vadd.f32 %v195, %v1167
    %v1173 = vxor.u32 %v1172, 2147483648
    %v1174 = vmul.f32 %v1173, 1.442695
    %v1175 = vpow.pop %v1174
    %v1176 = vadd.f32 %v1175, 1.0
    %v1177 = vrcp.pop %v1176
    %v1178 = vmul.f32 1.0, %v1177
    %v1179 = vtanh.pop %v1172
    %v1180 = vmul.f32 %v1178, %v1041
    %1182 = vrot.lane.b32.xlu0 %v1179, 64
    %v1183 = vpop.permute.xlu0 %1182
    %v1185 = vmul.f32 %v1178, %v1183
    %1187 = vrot.lane.b32.xlu0 %v1185, 32
    %v1188 = vpop.permute.xlu0 %1187
    %v1190 = vadd.f32 %v1180, %v1188
    %v1191 = vtanh.pop %v1190
    %1193 = vrot.lane.b32.xlu0 %v1191, 64
    %v1194 = vpop.permute.xlu0 %1193
    %v1196 = vmul.f32 %v1178, %v1194
    %1198 = vrot.lane.b32.xlu0 %v1196, 32
    %v1199 = vpop.permute.xlu0 %1198
    %1202 = vrot.lane.b32.xlu0 %v1124, 64
    %v1203 = vpop.permute.xlu0 %1202
    %v1205 = vsel %vm213, %v1199, %v1203
    %v1206 = vpack.c.bf16 %v1205, %v1205
    %v1208 = vsel %vm312, %v1206, 0
    %1210 = vmatprep.subr.bf16.mxu0 0
    %1211 = vmatpush1.bf16.msra.mxu0 %v304
    %1212 = vmatprep.subr.bf16.mxu0 0
    %1213 = vmatpush1.bf16.msra.mxu0 %v305
    %1214 = vmatprep.subr.bf16.mxu0 0
    %1215 = vmatpush1.bf16.msra.mxu0 %v306
    %1216 = vmatprep.subr.bf16.mxu0 0
    %1217 = vmatpush1.bf16.msra.mxu0 %v307
    %1218 = vmatprep.subr.bf16.mxu0 0
    %1219 = vmatpush1.bf16.msra.mxu0 0
    %1220 = vmatprep.subr.bf16.mxu0 0
    %1221 = vmatpush1.bf16.msra.mxu0 0
    %1222 = vmatprep.subr.bf16.mxu0 0
    %1223 = vmatpush1.bf16.msra.mxu0 0
    %1224 = vmatprep.subr.bf16.mxu0 0
    %1225 = vmatpush1.bf16.msra.mxu0 0
    %1226 = vmatprep.subr.bf16.mxu0 0
    %1227 = vmatpush1.bf16.msra.mxu0 0
    %1228 = vmatprep.subr.bf16.mxu0 0
    %1229 = vmatpush1.bf16.msra.mxu0 0
    %1230 = vmatprep.subr.bf16.mxu0 0
    %1231 = vmatpush1.bf16.msra.mxu0 0
    %1232 = vmatprep.subr.bf16.mxu0 0
    %1233 = vmatpush1.bf16.msra.mxu0 0
    %1234 = vmatprep.subr.bf16.mxu0 0
    %1235 = vmatpush1.bf16.msra.mxu0 0
    %1236 = vmatprep.subr.bf16.mxu0 0
    %1237 = vmatpush1.bf16.msra.mxu0 0
    %1238 = vmatprep.subr.bf16.mxu0 0
    %1239 = vmatpush1.bf16.msra.mxu0 0
    %1240 = vmatprep.subr.bf16.mxu0 0
    %1241 = vmatpush1.bf16.msra.mxu0 0
    %1242 = vmatprep.mubr.bf16.mxu0 0
    %1243 = vmatmul.mubr.bf16.gmra.mrb[0].mxu0 %v1208
    %v1244 = vpop.f32.mrb[0].mxu0
    %v1245 = vadd.f32 %v80, %v1244
    %v1246 = vpop.f32.mrb[0].mxu0
    %v1247 = vpop.f32.mrb[0].mxu0
    %v1248 = vpop.f32.mrb[0].mxu0
    %1249 = vdwg.mxu0
    %v1250 = vxor.u32 %v1245, 2147483648
    %v1251 = vmul.f32 %v1250, 1.442695
    %v1252 = vpow.pop %v1251
    %v1253 = vadd.f32 %v1252, 1.0
    %v1254 = vrcp.pop %v1253
    %v1255 = vmul.f32 1.0, %v1254
    %v1256 = vtanh.pop %v1245
    %v1257 = vmul.f32 %v1255, %v1118
    %1259 = vrot.lane.b32.xlu0 %v1256, 64
    %v1260 = vpop.permute.xlu0 %1259
    %v1262 = vmul.f32 %v1255, %v1260
    %1264 = vrot.lane.b32.xlu0 %v1262, 32
    %v1265 = vpop.permute.xlu0 %1264
    %v1267 = vadd.f32 %v1257, %v1265
    %v1268 = vtanh.pop %v1267
    %1270 = vrot.lane.b32.xlu0 %v1268, 64
    %v1271 = vpop.permute.xlu0 %1270
    %v1273 = vmul.f32 %v1255, %v1271
    %v1274 = vpack.c.bf16 %v1196, %v1196
    %1276 = vrot.lane.b32.xlu0 %v1274, 32
    %v1277 = vpop.permute.xlu0 %1276
    %v1279 = vsel %vm213, %v1277, 0
    %1281 = vmatprep.subr.bf16.mxu0 0
    %1282 = vmatpush1.bf16.msra.mxu0 %v209
    %1283 = vmatprep.subr.bf16.mxu0 0
    %1284 = vmatpush1.bf16.msra.mxu0 %v210
    %1285 = vmatprep.subr.bf16.mxu0 0
    %1286 = vmatpush1.bf16.msra.mxu0 0
    %1287 = vmatprep.subr.bf16.mxu0 0
    %1288 = vmatpush1.bf16.msra.mxu0 0
    %1289 = vmatprep.subr.bf16.mxu0 0
    %1290 = vmatpush1.bf16.msra.mxu0 0
    %1291 = vmatprep.subr.bf16.mxu0 0
    %1292 = vmatpush1.bf16.msra.mxu0 0
    %1293 = vmatprep.subr.bf16.mxu0 0
    %1294 = vmatpush1.bf16.msra.mxu0 0
    %1295 = vmatprep.subr.bf16.mxu0 0
    %1296 = vmatpush1.bf16.msra.mxu0 0
    %1297 = vmatprep.subr.bf16.mxu0 0
    %1298 = vmatpush1.bf16.msra.mxu0 0
    %1299 = vmatprep.subr.bf16.mxu0 0
    %1300 = vmatpush1.bf16.msra.mxu0 0
    %1301 = vmatprep.subr.bf16.mxu0 0
    %1302 = vmatpush1.bf16.msra.mxu0 0
    %1303 = vmatprep.subr.bf16.mxu0 0
    %1304 = vmatpush1.bf16.msra.mxu0 0
    %1305 = vmatprep.subr.bf16.mxu0 0
    %1306 = vmatpush1.bf16.msra.mxu0 0
    %1307 = vmatprep.subr.bf16.mxu0 0
    %1308 = vmatpush1.bf16.msra.mxu0 0
    %1309 = vmatprep.subr.bf16.mxu0 0
    %1310 = vmatpush1.bf16.msra.mxu0 0
    %1311 = vmatprep.subr.bf16.mxu0 0
    %1312 = vmatpush1.bf16.msra.mxu0 0
    %1313 = vmatprep.mubr.bf16.mxu0 0
    %1314 = vmatmul.mubr.bf16.gmra.mrb[0].mxu0 %v1279
    %v1315 = vpop.f32.mrb[0].mxu0
    %v1316 = vadd.f32 0.0, %v1315
    %v1317 = vpop.f32.mrb[0].mxu0
    %v1318 = vpop.f32.mrb[0].mxu0
    %v1319 = vpop.f32.mrb[0].mxu0
    %1320 = vdwg.mxu0
    %v1321 = vadd.f32 %v198, %v1316
    %v1322 = vxor.u32 %v1321, 2147483648
    %v1323 = vmul.f32 %v1322, 1.442695
    %v1324 = vpow.pop %v1323
    %v1325 = vadd.f32 %v1324, 1.0
    %v1326 = vrcp.pop %v1325
    %v1327 = vmul.f32 1.0, %v1326
    %v1328 = vtanh.pop %v1321
    %v1329 = vmul.f32 %v1327, %v1190
    %1331 = vrot.lane.b32.xlu0 %v1328, 64
    %v1332 = vpop.permute.xlu0 %1331
    %v1334 = vmul.f32 %v1327, %v1332
    %1336 = vrot.lane.b32.xlu0 %v1334, 32
    %v1337 = vpop.permute.xlu0 %1336
    %v1339 = vadd.f32 %v1329, %v1337
    %v1340 = vtanh.pop %v1339
    %1342 = vrot.lane.b32.xlu0 %v1340, 64
    %v1343 = vpop.permute.xlu0 %1342
    %v1345 = vmul.f32 %v1327, %v1343
    %1347 = vrot.lane.b32.xlu0 %v1345, 32
    %v1348 = vpop.permute.xlu0 %1347
    %1351 = vrot.lane.b32.xlu0 %v1273, 64
    %v1352 = vpop.permute.xlu0 %1351
    %v1354 = vsel %vm213, %v1348, %v1352
    %v1355 = vpack.c.bf16 %v1354, %v1354
    %v1357 = vsel %vm312, %v1355, 0
    %1359 = vmatprep.subr.bf16.mxu0 0
    %1360 = vmatpush1.bf16.msra.mxu0 %v304
    %1361 = vmatprep.subr.bf16.mxu0 0
    %1362 = vmatpush1.bf16.msra.mxu0 %v305
    %1363 = vmatprep.subr.bf16.mxu0 0
    %1364 = vmatpush1.bf16.msra.mxu0 %v306
    %1365 = vmatprep.subr.bf16.mxu0 0
    %1366 = vmatpush1.bf16.msra.mxu0 %v307
    %1367 = vmatprep.subr.bf16.mxu0 0
    %1368 = vmatpush1.bf16.msra.mxu0 0
    %1369 = vmatprep.subr.bf16.mxu0 0
    %1370 = vmatpush1.bf16.msra.mxu0 0
    %1371 = vmatprep.subr.bf16.mxu0 0
    %1372 = vmatpush1.bf16.msra.mxu0 0
    %1373 = vmatprep.subr.bf16.mxu0 0
    %1374 = vmatpush1.bf16.msra.mxu0 0
    %1375 = vmatprep.subr.bf16.mxu0 0
    %1376 = vmatpush1.bf16.msra.mxu0 0
    %1377 = vmatprep.subr.bf16.mxu0 0
    %1378 = vmatpush1.bf16.msra.mxu0 0
    %1379 = vmatprep.subr.bf16.mxu0 0
    %1380 = vmatpush1.bf16.msra.mxu0 0
    %1381 = vmatprep.subr.bf16.mxu0 0
    %1382 = vmatpush1.bf16.msra.mxu0 0
    %1383 = vmatprep.subr.bf16.mxu0 0
    %1384 = vmatpush1.bf16.msra.mxu0 0
    %1385 = vmatprep.subr.bf16.mxu0 0
    %1386 = vmatpush1.bf16.msra.mxu0 0
    %1387 = vmatprep.subr.bf16.mxu0 0
    %1388 = vmatpush1.bf16.msra.mxu0 0
    %1389 = vmatprep.subr.bf16.mxu0 0
    %1390 = vmatpush1.bf16.msra.mxu0 0
    %1391 = vmatprep.mubr.bf16.mxu0 0
    %1392 = vmatmul.mubr.bf16.gmra.mrb[0].mxu0 %v1357
    %v1393 = vpop.f32.mrb[0].mxu0
    %v1394 = vadd.f32 %v80, %v1393
    %v1395 = vpop.f32.mrb[0].mxu0
    %v1396 = vpop.f32.mrb[0].mxu0
    %v1397 = vpop.f32.mrb[0].mxu0
    %1398 = vdwg.mxu0
    %v1399 = vxor.u32 %v1394, 2147483648
    %v1400 = vmul.f32 %v1399, 1.442695
    %v1401 = vpow.pop %v1400
    %v1402 = vadd.f32 %v1401, 1.0
    %v1403 = vrcp.pop %v1402
    %v1404 = vmul.f32 1.0, %v1403
    %v1405 = vtanh.pop %v1394
    %v1406 = vmul.f32 %v1404, %v1267
    %1408 = vrot.lane.b32.xlu0 %v1405, 64
    %v1409 = vpop.permute.xlu0 %1408
    %v1411 = vmul.f32 %v1404, %v1409
    %1413 = vrot.lane.b32.xlu0 %v1411, 32
    %v1414 = vpop.permute.xlu0 %1413
    %v1416 = vadd.f32 %v1406, %v1414
    %v1417 = vtanh.pop %v1416
    %1419 = vrot.lane.b32.xlu0 %v1417, 64
    %v1420 = vpop.permute.xlu0 %1419
    %v1422 = vmul.f32 %v1404, %v1420
    %v1423 = vpack.c.bf16 %v1422, %v1422
    %v1424 = vlaneseq
    %v1425 = vshrl.u32 %v1424, 7
    %v1426 = vsub.s32 5, %v1425
    %v1427 = vrot.slane %v30, %v1426
    %1429 = vrot.lane.b32.xlu0 %v1423, 32
    %v1430 = vpop.permute.xlu0 %1429
    %v1435 = vunpack.c.l.b16 %v62
    %v1436 = vunpack.c.l.b16 %v63
    %v1437 = vunpack.c.l.b16 %v64
    %v1438 = vunpack.c.l.b16 %v65
    %v1439 = vpack.c.b16 %v1436, %v1435
    %v1440 = vpack.c.b16 %v1438, %v1437
    %v1444 = vsel %vm213, %v1430, 0
    %1446 = vmatprep.subr.bf16.mxu0 0
    %1447 = vmatpush1.bf16.msra.mxu0 %v1439
    %1448 = vmatprep.subr.bf16.mxu0 0
    %1449 = vmatpush1.bf16.msra.mxu0 %v1440
    %1450 = vmatprep.subr.bf16.mxu0 0
    %1451 = vmatpush1.bf16.msra.mxu0 0
    %1452 = vmatprep.subr.bf16.mxu0 0
    %1453 = vmatpush1.bf16.msra.mxu0 0
    %1454 = vmatprep.subr.bf16.mxu0 0
    %1455 = vmatpush1.bf16.msra.mxu0 0
    %1456 = vmatprep.subr.bf16.mxu0 0
    %1457 = vmatpush1.bf16.msra.mxu0 0
    %1458 = vmatprep.subr.bf16.mxu0 0
    %1459 = vmatpush1.bf16.msra.mxu0 0
    %1460 = vmatprep.subr.bf16.mxu0 0
    %1461 = vmatpush1.bf16.msra.mxu0 0
    %1462 = vmatprep.subr.bf16.mxu0 0
    %1463 = vmatpush1.bf16.msra.mxu0 0
    %1464 = vmatprep.subr.bf16.mxu0 0
    %1465 = vmatpush1.bf16.msra.mxu0 0
    %1466 = vmatprep.subr.bf16.mxu0 0
    %1467 = vmatpush1.bf16.msra.mxu0 0
    %1468 = vmatprep.subr.bf16.mxu0 0
    %1469 = vmatpush1.bf16.msra.mxu0 0
    %1470 = vmatprep.subr.bf16.mxu0 0
    %1471 = vmatpush1.bf16.msra.mxu0 0
    %1472 = vmatprep.subr.bf16.mxu0 0
    %1473 = vmatpush1.bf16.msra.mxu0 0
    %1474 = vmatprep.subr.bf16.mxu0 0
    %1475 = vmatpush1.bf16.msra.mxu0 0
    %1476 = vmatprep.subr.bf16.mxu0 0
    %1477 = vmatpush1.bf16.msra.mxu0 0
    %1478 = vmatprep.mubr.bf16.mxu0 0
    %1479 = vmatmul.mubr.bf16.gmra.mrb[0].mxu0 %v1444
    %v1480 = vpop.f32.mrb[0].mxu0
    %v1481 = vadd.f32 %v1427, %v1480
    %v1482 = vpop.f32.mrb[0].mxu0
    %v1483 = vpop.f32.mrb[0].mxu0
    %v1484 = vpop.f32.mrb[0].mxu0
    %1485 = vdwg.mxu0
    %v1490 = vunpack.c.l.b16 %v50
    %v1491 = vunpack.c.l.b16 %v51
    %v1492 = vunpack.c.l.b16 %v52
    %v1493 = vunpack.c.l.b16 %v53
    %v1494 = vpack.c.b16 %v1491, %v1490
    %v1495 = vpack.c.b16 %v1493, %v1492
    %1498 = vmatprep.subr.bf16.mxu0 0
    %1499 = vmatpush1.bf16.msra.mxu0 %v1494
    %1500 = vmatprep.subr.bf16.mxu0 0
    %1501 = vmatpush1.bf16.msra.mxu0 %v1495
    %1502 = vmatprep.subr.bf16.mxu0 0
    %1503 = vmatpush1.bf16.msra.mxu0 0
    %1504 = vmatprep.subr.bf16.mxu0 0
    %1505 = vmatpush1.bf16.msra.mxu0 0
    %1506 = vmatprep.subr.bf16.mxu0 0
    %1507 = vmatpush1.bf16.msra.mxu0 0
    %1508 = vmatprep.subr.bf16.mxu0 0
    %1509 = vmatpush1.bf16.msra.mxu0 0
    %1510 = vmatprep.subr.bf16.mxu0 0
    %1511 = vmatpush1.bf16.msra.mxu0 0
    %1512 = vmatprep.subr.bf16.mxu0 0
    %1513 = vmatpush1.bf16.msra.mxu0 0
    %1514 = vmatprep.subr.bf16.mxu0 0
    %1515 = vmatpush1.bf16.msra.mxu0 0
    %1516 = vmatprep.subr.bf16.mxu0 0
    %1517 = vmatpush1.bf16.msra.mxu0 0
    %1518 = vmatprep.subr.bf16.mxu0 0
    %1519 = vmatpush1.bf16.msra.mxu0 0
    %1520 = vmatprep.subr.bf16.mxu0 0
    %1521 = vmatpush1.bf16.msra.mxu0 0
    %1522 = vmatprep.subr.bf16.mxu0 0
    %1523 = vmatpush1.bf16.msra.mxu0 0
    %1524 = vmatprep.subr.bf16.mxu0 0
    %1525 = vmatpush1.bf16.msra.mxu0 0
    %1526 = vmatprep.subr.bf16.mxu0 0
    %1527 = vmatpush1.bf16.msra.mxu0 0
    %1528 = vmatprep.subr.bf16.mxu0 0
    %1529 = vmatpush1.bf16.msra.mxu0 0
    %1530 = vmatprep.mubr.bf16.mxu0 0
    %1531 = vmatmul.mubr.bf16.gmra.mrb[0].mxu0 %v1444
    %v1532 = vpop.f32.mrb[0].mxu0
    %v1533 = vadd.f32 %v84, %v1532
    %v1534 = vpop.f32.mrb[0].mxu0
    %v1535 = vpop.f32.mrb[0].mxu0
    %v1536 = vpop.f32.mrb[0].mxu0
    %1537 = vdwg.mxu0
    %v1538 = vxor.u32 %v1533, 2147483648
    %v1539 = vmul.f32 %v1538, 1.442695
    %v1540 = vpow.pop %v1539
    %v1541 = vadd.f32 %v1540, 1.0
    %v1542 = vrcp.pop %v1541
    %v1543 = vmul.f32 1.0, %v1542
    %v1544 = vtanh.pop %v1533
    %v1545 = vmul.f32 %v1543, 0.0
    %1547 = vrot.lane.b32.xlu0 %v1544, 64
    %v1548 = vpop.permute.xlu0 %1547
    %v1550 = vmul.f32 %v1543, %v1548
    %1552 = vrot.lane.b32.xlu0 %v1550, 32
    %v1553 = vpop.permute.xlu0 %1552
    %v1555 = vadd.f32 %v1545, %v1553
    %v1556 = vtanh.pop %v1555
    %1558 = vrot.lane.b32.xlu0 %v1556, 64
    %v1559 = vpop.permute.xlu0 %1558
    %v1561 = vmul.f32 %v1543, %v1559
    %v1562 = vpack.c.bf16 %v1561, %v1561
    %1564 = vrot.lane.b32.xlu0 %v1562, 32
    %v1565 = vpop.permute.xlu0 %1564
    %v1570 = vunpack.c.l.b16 %v54
    %v1571 = vunpack.c.l.b16 %v55
    %v1572 = vunpack.c.l.b16 %v56
    %v1573 = vunpack.c.l.b16 %v57
    %v1574 = vpack.c.b16 %v1571, %v1570
    %v1575 = vpack.c.b16 %v1573, %v1572
    %v1579 = vsel %vm213, %v1565, 0
    %1581 = vmatprep.subr.bf16.mxu0 0
    %1582 = vmatpush1.bf16.msra.mxu0 %v1574
    %1583 = vmatprep.subr.bf16.mxu0 0
    %1584 = vmatpush1.bf16.msra.mxu0 %v1575
    %1585 = vmatprep.subr.bf16.mxu0 0
    %1586 = vmatpush1.bf16.msra.mxu0 0
    %1587 = vmatprep.subr.bf16.mxu0 0
    %1588 = vmatpush1.bf16.msra.mxu0 0
    %1589 = vmatprep.subr.bf16.mxu0 0
    %1590 = vmatpush1.bf16.msra.mxu0 0
    %1591 = vmatprep.subr.bf16.mxu0 0
    %1592 = vmatpush1.bf16.msra.mxu0 0
    %1593 = vmatprep.subr.bf16.mxu0 0
    %1594 = vmatpush1.bf16.msra.mxu0 0
    %1595 = vmatprep.subr.bf16.mxu0 0
    %1596 = vmatpush1.bf16.msra.mxu0 0
    %1597 = vmatprep.subr.bf16.mxu0 0
    %1598 = vmatpush1.bf16.msra.mxu0 0
    %1599 = vmatprep.subr.bf16.mxu0 0
    %1600 = vmatpush1.bf16.msra.mxu0 0
    %1601 = vmatprep.subr.bf16.mxu0 0
    %1602 = vmatpush1.bf16.msra.mxu0 0
    %1603 = vmatprep.subr.bf16.mxu0 0
    %1604 = vmatpush1.bf16.msra.mxu0 0
    %1605 = vmatprep.subr.bf16.mxu0 0
    %1606 = vmatpush1.bf16.msra.mxu0 0
    %1607 = vmatprep.subr.bf16.mxu0 0
    %1608 = vmatpush1.bf16.msra.mxu0 0
    %1609 = vmatprep.subr.bf16.mxu0 0
    %1610 = vmatpush1.bf16.msra.mxu0 0
    %1611 = vmatprep.subr.bf16.mxu0 0
    %1612 = vmatpush1.bf16.msra.mxu0 0
    %1613 = vmatprep.mubr.bf16.mxu0 0
    %1614 = vmatmul.mubr.bf16.gmra.mrb[0].mxu0 %v1579
    %v1615 = vpop.f32.mrb[0].mxu0
    %v1616 = vadd.f32 %v88, %v1615
    %v1617 = vpop.f32.mrb[0].mxu0
    %v1618 = vpop.f32.mrb[0].mxu0
    %v1619 = vpop.f32.mrb[0].mxu0
    %1620 = vdwg.mxu0
    %v1621 = vxor.u32 %v1616, 2147483648
    %v1622 = vmul.f32 %v1621, 1.442695
    %v1623 = vpow.pop %v1622
    %v1624 = vadd.f32 %v1623, 1.0
    %v1625 = vrcp.pop %v1624
    %v1626 = vmul.f32 1.0, %v1625
    %v1627 = vtanh.pop %v1616
    %v1628 = vmul.f32 %v1626, 0.0
    %1630 = vrot.lane.b32.xlu0 %v1627, 64
    %v1631 = vpop.permute.xlu0 %1630
    %v1633 = vmul.f32 %v1626, %v1631
    %1635 = vrot.lane.b32.xlu0 %v1633, 32
    %v1636 = vpop.permute.xlu0 %1635
    %v1638 = vadd.f32 %v1628, %v1636
    %v1639 = vtanh.pop %v1638
    %1641 = vrot.lane.b32.xlu0 %v1639, 64
    %v1642 = vpop.permute.xlu0 %1641
    %v1644 = vmul.f32 %v1626, %v1642
    %v1645 = vpack.c.bf16 %v1644, %v1644
    %1647 = vrot.lane.b32.xlu0 %v1645, 32
    %v1648 = vpop.permute.xlu0 %1647
    %v1650 = vsel %vm213, %v1648, 0
    %1652 = vmatprep.subr.bf16.mxu0 0
    %1653 = vmatpush1.bf16.msra.mxu0 %v1494
    %1654 = vmatprep.subr.bf16.mxu0 0
    %1655 = vmatpush1.bf16.msra.mxu0 %v1495
    %1656 = vmatprep.subr.bf16.mxu0 0
    %1657 = vmatpush1.bf16.msra.mxu0 0
    %1658 = vmatprep.subr.bf16.mxu0 0
    %1659 = vmatpush1.bf16.msra.mxu0 0
    %1660 = vmatprep.subr.bf16.mxu0 0
    %1661 = vmatpush1.bf16.msra.mxu0 0
    %1662 = vmatprep.subr.bf16.mxu0 0
    %1663 = vmatpush1.bf16.msra.mxu0 0
    %1664 = vmatprep.subr.bf16.mxu0 0
    %1665 = vmatpush1.bf16.msra.mxu0 0
    %1666 = vmatprep.subr.bf16.mxu0 0
    %1667 = vmatpush1.bf16.msra.mxu0 0
    %1668 = vmatprep.subr.bf16.mxu0 0
    %1669 = vmatpush1.bf16.msra.mxu0 0
    %1670 = vmatprep.subr.bf16.mxu0 0
    %1671 = vmatpush1.bf16.msra.mxu0 0
    %1672 = vmatprep.subr.bf16.mxu0 0
    %1673 = vmatpush1.bf16.msra.mxu0 0
    %1674 = vmatprep.subr.bf16.mxu0 0
    %1675 = vmatpush1.bf16.msra.mxu0 0
    %1676 = vmatprep.subr.bf16.mxu0 0
    %1677 = vmatpush1.bf16.msra.mxu0 0
    %1678 = vmatprep.subr.bf16.mxu0 0
    %1679 = vmatpush1.bf16.msra.mxu0 0
    %1680 = vmatprep.subr.bf16.mxu0 0
    %1681 = vmatpush1.bf16.msra.mxu0 0
    %1682 = vmatprep.subr.bf16.mxu0 0
    %1683 = vmatpush1.bf16.msra.mxu0 0
    %1684 = vmatprep.mubr.bf16.mxu0 0
    %1685 = vmatmul.mubr.bf16.gmra.mrb[0].mxu0 %v1650
    %v1686 = vpop.f32.mrb[0].mxu0
    %v1687 = vadd.f32 %v84, %v1686
    %v1688 = vpop.f32.mrb[0].mxu0
    %v1689 = vpop.f32.mrb[0].mxu0
    %v1690 = vpop.f32.mrb[0].mxu0
    %1691 = vdwg.mxu0
    %v1692 = vxor.u32 %v1687, 2147483648
    %v1693 = vmul.f32 %v1692, 1.442695
    %v1694 = vpow.pop %v1693
    %v1695 = vadd.f32 %v1694, 1.0
    %v1696 = vrcp.pop %v1695
    %v1697 = vmul.f32 1.0, %v1696
    %v1698 = vtanh.pop %v1687
    %v1699 = vmul.f32 %v1697, 0.0
    %1701 = vrot.lane.b32.xlu0 %v1698, 64
    %v1702 = vpop.permute.xlu0 %1701
    %v1704 = vmul.f32 %v1697, %v1702
    %1706 = vrot.lane.b32.xlu0 %v1704, 32
    %v1707 = vpop.permute.xlu0 %1706
    %v1709 = vadd.f32 %v1699, %v1707
    %v1710 = vtanh.pop %v1709
    %1712 = vrot.lane.b32.xlu0 %v1710, 64
    %v1713 = vpop.permute.xlu0 %1712
    %v1715 = vmul.f32 %v1697, %v1713
    %v1716 = vpack.c.bf16 %v1715, %v1715
    %1718 = vrot.lane.b32.xlu0 %v1716, 32
    %v1719 = vpop.permute.xlu0 %1718
    %v1721 = vsel %vm213, %v1719, 0
    %1723 = vmatprep.subr.bf16.mxu0 0
    %1724 = vmatpush1.bf16.msra.mxu0 %v1574
    %1725 = vmatprep.subr.bf16.mxu0 0
    %1726 = vmatpush1.bf16.msra.mxu0 %v1575
    %1727 = vmatprep.subr.bf16.mxu0 0
    %1728 = vmatpush1.bf16.msra.mxu0 0
    %1729 = vmatprep.subr.bf16.mxu0 0
    %1730 = vmatpush1.bf16.msra.mxu0 0
    %1731 = vmatprep.subr.bf16.mxu0 0
    %1732 = vmatpush1.bf16.msra.mxu0 0
    %1733 = vmatprep.subr.bf16.mxu0 0
    %1734 = vmatpush1.bf16.msra.mxu0 0
    %1735 = vmatprep.subr.bf16.mxu0 0
    %1736 = vmatpush1.bf16.msra.mxu0 0
    %1737 = vmatprep.subr.bf16.mxu0 0
    %1738 = vmatpush1.bf16.msra.mxu0 0
    %1739 = vmatprep.subr.bf16.mxu0 0
    %1740 = vmatpush1.bf16.msra.mxu0 0
    %1741 = vmatprep.subr.bf16.mxu0 0
    %1742 = vmatpush1.bf16.msra.mxu0 0
    %1743 = vmatprep.subr.bf16.mxu0 0
    %1744 = vmatpush1.bf16.msra.mxu0 0
    %1745 = vmatprep.subr.bf16.mxu0 0
    %1746 = vmatpush1.bf16.msra.mxu0 0
    %1747 = vmatprep.subr.bf16.mxu0 0
    %1748 = vmatpush1.bf16.msra.mxu0 0
    %1749 = vmatprep.subr.bf16.mxu0 0
    %1750 = vmatpush1.bf16.msra.mxu0 0
    %1751 = vmatprep.subr.bf16.mxu0 0
    %1752 = vmatpush1.bf16.msra.mxu0 0
    %1753 = vmatprep.subr.bf16.mxu0 0
    %1754 = vmatpush1.bf16.msra.mxu0 0
    %1755 = vmatprep.mubr.bf16.mxu0 0
    %1756 = vmatmul.mubr.bf16.gmra.mrb[0].mxu0 %v1721
    %v1757 = vpop.f32.mrb[0].mxu0
    %v1758 = vadd.f32 %v88, %v1757
    %v1759 = vpop.f32.mrb[0].mxu0
    %v1760 = vpop.f32.mrb[0].mxu0
    %v1761 = vpop.f32.mrb[0].mxu0
    %1762 = vdwg.mxu0
    %v1763 = vxor.u32 %v1758, 2147483648
    %v1764 = vmul.f32 %v1763, 1.442695
    %v1765 = vpow.pop %v1764
    %v1766 = vadd.f32 %v1765, 1.0
    %v1767 = vrcp.pop %v1766
    %v1768 = vmul.f32 1.0, %v1767
    %v1769 = vtanh.pop %v1758
    %v1770 = vmul.f32 %v1768, 0.0
    %1772 = vrot.lane.b32.xlu0 %v1769, 64
    %v1773 = vpop.permute.xlu0 %1772
    %v1775 = vmul.f32 %v1768, %v1773
    %1777 = vrot.lane.b32.xlu0 %v1775, 32
    %v1778 = vpop.permute.xlu0 %1777
    %v1780 = vadd.f32 %v1770, %v1778
    %v1781 = vtanh.pop %v1780
    %1783 = vrot.lane.b32.xlu0 %v1781, 64
    %v1784 = vpop.permute.xlu0 %1783
    %v1786 = vmul.f32 %v1768, %v1784
    %v1787 = vpack.c.bf16 %v1786, %v1786
    %1789 = vrot.lane.b32.xlu0 %v1787, 32
    %v1790 = vpop.permute.xlu0 %1789
    %v1792 = vsel %vm213, %v1790, 0
    %1794 = vmatprep.subr.bf16.mxu0 0
    %1795 = vmatpush1.bf16.msra.mxu0 %v1494
    %1796 = vmatprep.subr.bf16.mxu0 0
    %1797 = vmatpush1.bf16.msra.mxu0 %v1495
    %1798 = vmatprep.subr.bf16.mxu0 0
    %1799 = vmatpush1.bf16.msra.mxu0 0
    %1800 = vmatprep.subr.bf16.mxu0 0
    %1801 = vmatpush1.bf16.msra.mxu0 0
    %1802 = vmatprep.subr.bf16.mxu0 0
    %1803 = vmatpush1.bf16.msra.mxu0 0
    %1804 = vmatprep.subr.bf16.mxu0 0
    %1805 = vmatpush1.bf16.msra.mxu0 0
    %1806 = vmatprep.subr.bf16.mxu0 0
    %1807 = vmatpush1.bf16.msra.mxu0 0
    %1808 = vmatprep.subr.bf16.mxu0 0
    %1809 = vmatpush1.bf16.msra.mxu0 0
    %1810 = vmatprep.subr.bf16.mxu0 0
    %1811 = vmatpush1.bf16.msra.mxu0 0
    %1812 = vmatprep.subr.bf16.mxu0 0
    %1813 = vmatpush1.bf16.msra.mxu0 0
    %1814 = vmatprep.subr.bf16.mxu0 0
    %1815 = vmatpush1.bf16.msra.mxu0 0
    %1816 = vmatprep.subr.bf16.mxu0 0
    %1817 = vmatpush1.bf16.msra.mxu0 0
    %1818 = vmatprep.subr.bf16.mxu0 0
    %1819 = vmatpush1.bf16.msra.mxu0 0
    %1820 = vmatprep.subr.bf16.mxu0 0
    %1821 = vmatpush1.bf16.msra.mxu0 0
    %1822 = vmatprep.subr.bf16.mxu0 0
    %1823 = vmatpush1.bf16.msra.mxu0 0
    %1824 = vmatprep.subr.bf16.mxu0 0
    %1825 = vmatpush1.bf16.msra.mxu0 0
    %1826 = vmatprep.mubr.bf16.mxu0 0
    %1827 = vmatmul.mubr.bf16.gmra.mrb[0].mxu0 %v1792
    %v1828 = vpop.f32.mrb[0].mxu0
    %v1829 = vadd.f32 %v84, %v1828
    %v1830 = vpop.f32.mrb[0].mxu0
    %v1831 = vpop.f32.mrb[0].mxu0
    %v1832 = vpop.f32.mrb[0].mxu0
    %1833 = vdwg.mxu0
    %v1834 = vxor.u32 %v1829, 2147483648
    %v1835 = vmul.f32 %v1834, 1.442695
    %v1836 = vpow.pop %v1835
    %v1837 = vadd.f32 %v1836, 1.0
    %v1838 = vrcp.pop %v1837
    %v1839 = vmul.f32 1.0, %v1838
    %v1840 = vtanh.pop %v1829
    %v1841 = vmul.f32 %v1839, 0.0
    %1843 = vrot.lane.b32.xlu0 %v1840, 64
    %v1844 = vpop.permute.xlu0 %1843
    %v1846 = vmul.f32 %v1839, %v1844
    %1848 = vrot.lane.b32.xlu0 %v1846, 32
    %v1849 = vpop.permute.xlu0 %1848
    %v1851 = vadd.f32 %v1841, %v1849
    %v1852 = vtanh.pop %v1851
    %1854 = vrot.lane.b32.xlu0 %v1852, 64
    %v1855 = vpop.permute.xlu0 %1854
    %v1857 = vmul.f32 %v1839, %v1855
    %v1858 = vpack.c.bf16 %v1857, %v1857
    %1860 = vrot.lane.b32.xlu0 %v1858, 32
    %v1861 = vpop.permute.xlu0 %1860
    %v1863 = vsel %vm213, %v1861, 0
    %1865 = vmatprep.subr.bf16.mxu0 0
    %1866 = vmatpush1.bf16.msra.mxu0 %v1574
    %1867 = vmatprep.subr.bf16.mxu0 0
    %1868 = vmatpush1.bf16.msra.mxu0 %v1575
    %1869 = vmatprep.subr.bf16.mxu0 0
    %1870 = vmatpush1.bf16.msra.mxu0 0
    %1871 = vmatprep.subr.bf16.mxu0 0
    %1872 = vmatpush1.bf16.msra.mxu0 0
    %1873 = vmatprep.subr.bf16.mxu0 0
    %1874 = vmatpush1.bf16.msra.mxu0 0
    %1875 = vmatprep.subr.bf16.mxu0 0
    %1876 = vmatpush1.bf16.msra.mxu0 0
    %1877 = vmatprep.subr.bf16.mxu0 0
    %1878 = vmatpush1.bf16.msra.mxu0 0
    %1879 = vmatprep.subr.bf16.mxu0 0
    %1880 = vmatpush1.bf16.msra.mxu0 0
    %1881 = vmatprep.subr.bf16.mxu0 0
    %1882 = vmatpush1.bf16.msra.mxu0 0
    %1883 = vmatprep.subr.bf16.mxu0 0
    %1884 = vmatpush1.bf16.msra.mxu0 0
    %1885 = vmatprep.subr.bf16.mxu0 0
    %1886 = vmatpush1.bf16.msra.mxu0 0
    %1887 = vmatprep.subr.bf16.mxu0 0
    %1888 = vmatpush1.bf16.msra.mxu0 0
    %1889 = vmatprep.subr.bf16.mxu0 0
    %1890 = vmatpush1.bf16.msra.mxu0 0
    %1891 = vmatprep.subr.bf16.mxu0 0
    %1892 = vmatpush1.bf16.msra.mxu0 0
    %1893 = vmatprep.subr.bf16.mxu0 0
    %1894 = vmatpush1.bf16.msra.mxu0 0
    %1895 = vmatprep.subr.bf16.mxu0 0
    %1896 = vmatpush1.bf16.msra.mxu0 0
    %1897 = vmatprep.mubr.bf16.mxu0 0
    %1898 = vmatmul.mubr.bf16.gmra.mrb[0].mxu0 %v1863
    %v1899 = vpop.f32.mrb[0].mxu0
    %v1900 = vadd.f32 %v88, %v1899
    %v1901 = vpop.f32.mrb[0].mxu0
    %v1902 = vpop.f32.mrb[0].mxu0
    %v1903 = vpop.f32.mrb[0].mxu0
    %1904 = vdwg.mxu0
    %v1905 = vxor.u32 %v1900, 2147483648
    %v1906 = vmul.f32 %v1905, 1.442695
    %v1907 = vpow.pop %v1906
    %v1908 = vadd.f32 %v1907, 1.0
    %v1909 = vrcp.pop %v1908
    %v1910 = vmul.f32 1.0, %v1909
    %v1911 = vtanh.pop %v1900
    %v1912 = vmul.f32 %v1910, 0.0
    %1914 = vrot.lane.b32.xlu0 %v1911, 64
    %v1915 = vpop.permute.xlu0 %1914
    %v1917 = vmul.f32 %v1910, %v1915
    %1919 = vrot.lane.b32.xlu0 %v1917, 32
    %v1920 = vpop.permute.xlu0 %1919
    %v1922 = vadd.f32 %v1912, %v1920
    %v1923 = vtanh.pop %v1922
    %1925 = vrot.lane.b32.xlu0 %v1923, 64
    %v1926 = vpop.permute.xlu0 %1925
    %v1928 = vmul.f32 %v1910, %v1926
    %v1929 = vpack.c.bf16 %v1928, %v1928
    %1931 = vrot.lane.b32.xlu0 %v1929, 32
    %v1932 = vpop.permute.xlu0 %1931
    %v1934 = vsel %vm213, %v1932, 0
    %1936 = vmatprep.subr.bf16.mxu0 0
    %1937 = vmatpush1.bf16.msra.mxu0 %v1494
    %1938 = vmatprep.subr.bf16.mxu0 0
    %1939 = vmatpush1.bf16.msra.mxu0 %v1495
    %1940 = vmatprep.subr.bf16.mxu0 0
    %1941 = vmatpush1.bf16.msra.mxu0 0
    %1942 = vmatprep.subr.bf16.mxu0 0
    %1943 = vmatpush1.bf16.msra.mxu0 0
    %1944 = vmatprep.subr.bf16.mxu0 0
    %1945 = vmatpush1.bf16.msra.mxu0 0
    %1946 = vmatprep.subr.bf16.mxu0 0
    %1947 = vmatpush1.bf16.msra.mxu0 0
    %1948 = vmatprep.subr.bf16.mxu0 0
    %1949 = vmatpush1.bf16.msra.mxu0 0
    %1950 = vmatprep.subr.bf16.mxu0 0
    %1951 = vmatpush1.bf16.msra.mxu0 0
    %1952 = vmatprep.subr.bf16.mxu0 0
    %1953 = vmatpush1.bf16.msra.mxu0 0
    %1954 = vmatprep.subr.bf16.mxu0 0
    %1955 = vmatpush1.bf16.msra.mxu0 0
    %1956 = vmatprep.subr.bf16.mxu0 0
    %1957 = vmatpush1.bf16.msra.mxu0 0
    %1958 = vmatprep.subr.bf16.mxu0 0
    %1959 = vmatpush1.bf16.msra.mxu0 0
    %1960 = vmatprep.subr.bf16.mxu0 0
    %1961 = vmatpush1.bf16.msra.mxu0 0
    %1962 = vmatprep.subr.bf16.mxu0 0
    %1963 = vmatpush1.bf16.msra.mxu0 0
    %1964 = vmatprep.subr.bf16.mxu0 0
    %1965 = vmatpush1.bf16.msra.mxu0 0
    %1966 = vmatprep.subr.bf16.mxu0 0
    %1967 = vmatpush1.bf16.msra.mxu0 0
    %1968 = vmatprep.mubr.bf16.mxu0 0
    %1969 = vmatmul.mubr.bf16.gmra.mrb[0].mxu0 %v1934
    %v1970 = vpop.f32.mrb[0].mxu0
    %v1971 = vadd.f32 %v84, %v1970
    %v1972 = vpop.f32.mrb[0].mxu0
    %v1973 = vpop.f32.mrb[0].mxu0
    %v1974 = vpop.f32.mrb[0].mxu0
    %1975 = vdwg.mxu0
    %v1976 = vxor.u32 %v1971, 2147483648
    %v1977 = vmul.f32 %v1976, 1.442695
    %v1978 = vpow.pop %v1977
    %v1979 = vadd.f32 %v1978, 1.0
    %v1980 = vrcp.pop %v1979
    %v1981 = vmul.f32 1.0, %v1980
    %v1982 = vtanh.pop %v1971
    %v1983 = vmul.f32 %v1981, 0.0
    %1985 = vrot.lane.b32.xlu0 %v1982, 64
    %v1986 = vpop.permute.xlu0 %1985
    %v1988 = vmul.f32 %v1981, %v1986
    %1990 = vrot.lane.b32.xlu0 %v1988, 32
    %v1991 = vpop.permute.xlu0 %1990
    %v1993 = vadd.f32 %v1983, %v1991
    %v1994 = vtanh.pop %v1993
    %1996 = vrot.lane.b32.xlu0 %v1994, 64
    %v1997 = vpop.permute.xlu0 %1996
    %v1999 = vmul.f32 %v1981, %v1997
    %v2000 = vpack.c.bf16 %v1999, %v1999
    %2002 = vrot.lane.b32.xlu0 %v2000, 32
    %v2003 = vpop.permute.xlu0 %2002
    %v2005 = vsel %vm213, %v2003, 0
    %2007 = vmatprep.subr.bf16.mxu0 0
    %2008 = vmatpush1.bf16.msra.mxu0 %v1574
    %2009 = vmatprep.subr.bf16.mxu0 0
    %2010 = vmatpush1.bf16.msra.mxu0 %v1575
    %2011 = vmatprep.subr.bf16.mxu0 0
    %2012 = vmatpush1.bf16.msra.mxu0 0
    %2013 = vmatprep.subr.bf16.mxu0 0
    %2014 = vmatpush1.bf16.msra.mxu0 0
    %2015 = vmatprep.subr.bf16.mxu0 0
    %2016 = vmatpush1.bf16.msra.mxu0 0
    %2017 = vmatprep.subr.bf16.mxu0 0
    %2018 = vmatpush1.bf16.msra.mxu0 0
    %2019 = vmatprep.subr.bf16.mxu0 0
    %2020 = vmatpush1.bf16.msra.mxu0 0
    %2021 = vmatprep.subr.bf16.mxu0 0
    %2022 = vmatpush1.bf16.msra.mxu0 0
    %2023 = vmatprep.subr.bf16.mxu0 0
    %2024 = vmatpush1.bf16.msra.mxu0 0
    %2025 = vmatprep.subr.bf16.mxu0 0
    %2026 = vmatpush1.bf16.msra.mxu0 0
    %2027 = vmatprep.subr.bf16.mxu0 0
    %2028 = vmatpush1.bf16.msra.mxu0 0
    %2029 = vmatprep.subr.bf16.mxu0 0
    %2030 = vmatpush1.bf16.msra.mxu0 0
    %2031 = vmatprep.subr.bf16.mxu0 0
    %2032 = vmatpush1.bf16.msra.mxu0 0
    %2033 = vmatprep.subr.bf16.mxu0 0
    %2034 = vmatpush1.bf16.msra.mxu0 0
    %2035 = vmatprep.subr.bf16.mxu0 0
    %2036 = vmatpush1.bf16.msra.mxu0 0
    %2037 = vmatprep.subr.bf16.mxu0 0
    %2038 = vmatpush1.bf16.msra.mxu0 0
    %2039 = vmatprep.mubr.bf16.mxu0 0
    %2040 = vmatmul.mubr.bf16.gmra.mrb[0].mxu0 %v2005
    %v2041 = vpop.f32.mrb[0].mxu0
    %v2042 = vadd.f32 %v88, %v2041
    %v2043 = vpop.f32.mrb[0].mxu0
    %v2044 = vpop.f32.mrb[0].mxu0
    %v2045 = vpop.f32.mrb[0].mxu0
    %2046 = vdwg.mxu0
    %v2047 = vxor.u32 %v2042, 2147483648
    %v2048 = vmul.f32 %v2047, 1.442695
    %v2049 = vpow.pop %v2048
    %v2050 = vadd.f32 %v2049, 1.0
    %v2051 = vrcp.pop %v2050
    %v2052 = vmul.f32 1.0, %v2051
    %v2053 = vtanh.pop %v2042
    %v2054 = vmul.f32 %v2052, 0.0
    %2056 = vrot.lane.b32.xlu0 %v2053, 64
    %v2057 = vpop.permute.xlu0 %2056
    %v2059 = vmul.f32 %v2052, %v2057
    %2061 = vrot.lane.b32.xlu0 %v2059, 32
    %v2062 = vpop.permute.xlu0 %2061
    %v2064 = vadd.f32 %v2054, %v2062
    %v2065 = vtanh.pop %v2064
    %2067 = vrot.lane.b32.xlu0 %v2065, 64
    %v2068 = vpop.permute.xlu0 %2067
    %v2070 = vmul.f32 %v2052, %v2068
    %v2071 = vpack.c.bf16 %v1481, %v1481
    %vm2072 = vcmask 64512
    %v2074 = vsel %vm2072, %v2071, 0
    %vm2076 = vcmask 1043456
    %v2078 = vsel %vm2076, %v74, 0
    %2080 = vmatprep.subr.bf16.mxu0 0
    %2081 = vmatpush1.bf16.msra.mxu0 %v2078
    %2082 = vmatprep.subr.bf16.mxu0 0
    %2083 = vmatpush1.bf16.msra.mxu0 0
    %2084 = vmatprep.subr.bf16.mxu0 0
    %2085 = vmatpush1.bf16.msra.mxu0 0
    %2086 = vmatprep.subr.bf16.mxu0 0
    %2087 = vmatpush1.bf16.msra.mxu0 0
    %2088 = vmatprep.subr.bf16.mxu0 0
    %2089 = vmatpush1.bf16.msra.mxu0 0
    %2090 = vmatprep.subr.bf16.mxu0 0
    %2091 = vmatpush1.bf16.msra.mxu0 0
    %2092 = vmatprep.subr.bf16.mxu0 0
    %2093 = vmatpush1.bf16.msra.mxu0 0
    %2094 = vmatprep.subr.bf16.mxu0 0
    %2095 = vmatpush1.bf16.msra.mxu0 0
    %2096 = vmatprep.subr.bf16.mxu0 0
    %2097 = vmatpush1.bf16.msra.mxu0 0
    %2098 = vmatprep.subr.bf16.mxu0 0
    %2099 = vmatpush1.bf16.msra.mxu0 0
    %2100 = vmatprep.subr.bf16.mxu0 0
    %2101 = vmatpush1.bf16.msra.mxu0 0
    %2102 = vmatprep.subr.bf16.mxu0 0
    %2103 = vmatpush1.bf16.msra.mxu0 0
    %2104 = vmatprep.subr.bf16.mxu0 0
    %2105 = vmatpush1.bf16.msra.mxu0 0
    %2106 = vmatprep.subr.bf16.mxu0 0
    %2107 = vmatpush1.bf16.msra.mxu0 0
    %2108 = vmatprep.subr.bf16.mxu0 0
    %2109 = vmatpush1.bf16.msra.mxu0 0
    %2110 = vmatprep.subr.bf16.mxu0 0
    %2111 = vmatpush1.bf16.msra.mxu0 0
    %2112 = vmatprep.mubr.bf16.mxu0 0
    %2113 = vmatmul.mubr.bf16.gmra.mrb[0].mxu0 %v2074
    %v2114 = vpop.f32.mrb[0].mxu0
    %v2115 = vadd.f32 0.0, %v2114
    %v2116 = vpop.f32.mrb[0].mxu0
    %v2117 = vpop.f32.mrb[0].mxu0
    %v2118 = vpop.f32.mrb[0].mxu0
    %2119 = vdwg.mxu0
    %v2120 = vlaneseq
    %v2121 = vshrl.u32 %v2120, 7
    %v2122 = vsub.s32 4, %v2121
    %v2123 = vrot.slane %v30, %v2122
    %2125 = vrot.lane.b32.xlu0 %v2123, 32
    %v2126 = vpop.permute.xlu0 %2125
    %v2128 = vadd.f32 %v2115, %v2126
    %v2129 = vpack.c.bf16 %v89, %v89
    %v2132 = vunpack.c.l.b16 %v75
    %v2133 = vunpack.c.l.b16 %v76
    %v2134 = vpack.c.b16 %v2133, %v2132
    %vm2136 = vcmask 130048
    %v2138 = vsel %vm2136, %v2129, 0
    %2140 = vmatprep.subr.bf16.mxu0 0
    %2141 = vmatpush1.bf16.msra.mxu0 %v2134
    %2142 = vmatprep.subr.bf16.mxu0 0
    %2143 = vmatpush1.bf16.msra.mxu0 0
    %2144 = vmatprep.subr.bf16.mxu0 0
    %2145 = vmatpush1.bf16.msra.mxu0 0
    %2146 = vmatprep.subr.bf16.mxu0 0
    %2147 = vmatpush1.bf16.msra.mxu0 0
    %2148 = vmatprep.subr.bf16.mxu0 0
    %2149 = vmatpush1.bf16.msra.mxu0 0
    %2150 = vmatprep.subr.bf16.mxu0 0
    %2151 = vmatpush1.bf16.msra.mxu0 0
    %2152 = vmatprep.subr.bf16.mxu0 0
    %2153 = vmatpush1.bf16.msra.mxu0 0
    %2154 = vmatprep.subr.bf16.mxu0 0
    %2155 = vmatpush1.bf16.msra.mxu0 0
    %2156 = vmatprep.subr.bf16.mxu0 0
    %2157 = vmatpush1.bf16.msra.mxu0 0
    %2158 = vmatprep.subr.bf16.mxu0 0
    %2159 = vmatpush1.bf16.msra.mxu0 0
    %2160 = vmatprep.subr.bf16.mxu0 0
    %2161 = vmatpush1.bf16.msra.mxu0 0
    %2162 = vmatprep.subr.bf16.mxu0 0
    %2163 = vmatpush1.bf16.msra.mxu0 0
    %2164 = vmatprep.subr.bf16.mxu0 0
    %2165 = vmatpush1.bf16.msra.mxu0 0
    %2166 = vmatprep.subr.bf16.mxu0 0
    %2167 = vmatpush1.bf16.msra.mxu0 0
    %2168 = vmatprep.subr.bf16.mxu0 0
    %2169 = vmatpush1.bf16.msra.mxu0 0
    %2170 = vmatprep.subr.bf16.mxu0 0
    %2171 = vmatpush1.bf16.msra.mxu0 0
    %2172 = vmatprep.mubr.bf16.mxu0 0
    %2173 = vmatmul.mubr.bf16.gmra.mrb[0].mxu0 %v2138
    %v2174 = vpop.f32.mrb[0].mxu0
    %v2175 = vadd.f32 %v2115, %v2174
    %v2176 = vpop.f32.mrb[0].mxu0
    %v2177 = vpop.f32.mrb[0].mxu0
    %v2178 = vpop.f32.mrb[0].mxu0
    %2179 = vdwg.mxu0
    %v2180 = vlaneseq
    %v2181 = vshrl.u32 %v2180, 7
    %v2182 = vsub.s32 0, %v2181
    %v2183 = vrot.slane %v31, %v2182
    %v2184 = vadd.f32 %v2175, %v2183
    %vm2185 = vcmp.ge.f32.partialorder %v2184, 0.0
    %v2186 = vmul.f32 %v2184, 0.01
    %v2187 = vsel %vm2185, %v2184, %v2186
    %v2188 = vpack.c.bf16 %v2187, %v2187
    %v2189 = vlaneseq
    %v2190 = vshrl.u32 %v2189, 7
    %v2191 = vsub.s32 7, %v2190
    %v2192 = vrot.slane %v30, %v2191
    %v2197 = vunpack.c.l.b16 %v70
    %v2198 = vunpack.c.l.b16 %v71
    %v2199 = vunpack.c.l.b16 %v72
    %v2200 = vunpack.c.l.b16 %v73
    %v2201 = vpack.c.b16 %v2198, %v2197
    %v2202 = vpack.c.b16 %v2200, %v2199
    %v2206 = vsel %vm213, %v2188, 0
    %2208 = vmatprep.subr.bf16.mxu0 0
    %2209 = vmatpush1.bf16.msra.mxu0 %v2201
    %2210 = vmatprep.subr.bf16.mxu0 0
    %2211 = vmatpush1.bf16.msra.mxu0 %v2202
    %2212 = vmatprep.subr.bf16.mxu0 0
    %2213 = vmatpush1.bf16.msra.mxu0 0
    %2214 = vmatprep.subr.bf16.mxu0 0
    %2215 = vmatpush1.bf16.msra.mxu0 0
    %2216 = vmatprep.subr.bf16.mxu0 0
    %2217 = vmatpush1.bf16.msra.mxu0 0
    %2218 = vmatprep.subr.bf16.mxu0 0
    %2219 = vmatpush1.bf16.msra.mxu0 0
    %2220 = vmatprep.subr.bf16.mxu0 0
    %2221 = vmatpush1.bf16.msra.mxu0 0
    %2222 = vmatprep.subr.bf16.mxu0 0
    %2223 = vmatpush1.bf16.msra.mxu0 0
    %2224 = vmatprep.subr.bf16.mxu0 0
    %2225 = vmatpush1.bf16.msra.mxu0 0
    %2226 = vmatprep.subr.bf16.mxu0 0
    %2227 = vmatpush1.bf16.msra.mxu0 0
    %2228 = vmatprep.subr.bf16.mxu0 0
    %2229 = vmatpush1.bf16.msra.mxu0 0
    %2230 = vmatprep.subr.bf16.mxu0 0
    %2231 = vmatpush1.bf16.msra.mxu0 0
    %2232 = vmatprep.subr.bf16.mxu0 0
    %2233 = vmatpush1.bf16.msra.mxu0 0
    %2234 = vmatprep.subr.bf16.mxu0 0
    %2235 = vmatpush1.bf16.msra.mxu0 0
    %2236 = vmatprep.subr.bf16.mxu0 0
    %2237 = vmatpush1.bf16.msra.mxu0 0
    %2238 = vmatprep.subr.bf16.mxu0 0
    %2239 = vmatpush1.bf16.msra.mxu0 0
    %2240 = vmatprep.mubr.bf16.mxu0 0
    %2241 = vmatmul.mubr.bf16.gmra.mrb[0].mxu0 %v2206
    %v2242 = vpop.f32.mrb[0].mxu0
    %v2243 = vadd.f32 %v2192, %v2242
    %v2244 = vpop.f32.mrb[0].mxu0
    %v2245 = vpop.f32.mrb[0].mxu0
    %v2246 = vpop.f32.mrb[0].mxu0
    %2247 = vdwg.mxu0
    %v2248 = vpack.c.bf16 %v528, %v379
    %v2249 = vpack.c.bf16 %v826, %v677
    %v2250 = vpack.c.bf16 %v1124, %v975
    %v2251 = vpack.c.bf16 %v1422, %v1273
    %v2252 = vpack.c.bf16 %v1786, %v1644
    %v2253 = vpack.c.bf16 %v2070, %v1928
    %2260 = vrot.lane.b32.xlu0 %v2248, 32
    %v2261 = vpop.permute.xlu0 %2260
    %2262 = vrot.lane.b32.xlu0 %v2249, 32
    %v2263 = vpop.permute.xlu0 %2262
    %2264 = vrot.lane.b32.xlu0 %v2250, 32
    %v2265 = vpop.permute.xlu0 %2264
    %2266 = vrot.lane.b32.xlu0 %v2251, 32
    %v2267 = vpop.permute.xlu0 %2266
    %2268 = vrot.lane.b32.xlu0 %v2252, 32
    %v2269 = vpop.permute.xlu0 %2268
    %2270 = vrot.lane.b32.xlu0 %v2253, 32
    %v2271 = vpop.permute.xlu0 %2270
    %v2276 = vunpack.c.l.b16 %v58
    %v2277 = vunpack.c.l.b16 %v59
    %v2278 = vunpack.c.l.b16 %v60
    %v2279 = vunpack.c.l.b16 %v61
    %v2280 = vpack.c.b16 %v2277, %v2276
    %v2281 = vpack.c.b16 %v2279, %v2278
    %v2285 = vsel %vm213, %v2261, 0
    %v2288 = vsel %vm213, %v2263, 0
    %v2291 = vsel %vm213, %v2265, 0
    %v2294 = vsel %vm213, %v2267, 0
    %v2297 = vsel %vm213, %v2269, 0
    %v2300 = vsel %vm213, %v2271, 0
    %2302 = vmatprep.subr.bf16.mxu0 0
    %2303 = vmatpush1.bf16.msra.mxu0 %v2280
    %2304 = vmatprep.subr.bf16.mxu0 0
    %2305 = vmatpush1.bf16.msra.mxu0 %v2281
    %2306 = vmatprep.subr.bf16.mxu0 0
    %2307 = vmatpush1.bf16.msra.mxu0 0
    %2308 = vmatprep.subr.bf16.mxu0 0
    %2309 = vmatpush1.bf16.msra.mxu0 0
    %2310 = vmatprep.subr.bf16.mxu0 0
    %2311 = vmatpush1.bf16.msra.mxu0 0
    %2312 = vmatprep.subr.bf16.mxu0 0
    %2313 = vmatpush1.bf16.msra.mxu0 0
    %2314 = vmatprep.subr.bf16.mxu0 0
    %2315 = vmatpush1.bf16.msra.mxu0 0
    %2316 = vmatprep.subr.bf16.mxu0 0
    %2317 = vmatpush1.bf16.msra.mxu0 0
    %2318 = vmatprep.subr.bf16.mxu0 0
    %2319 = vmatpush1.bf16.msra.mxu0 0
    %2320 = vmatprep.subr.bf16.mxu0 0
    %2321 = vmatpush1.bf16.msra.mxu0 0
    %2322 = vmatprep.subr.bf16.mxu0 0
    %2323 = vmatpush1.bf16.msra.mxu0 0
    %2324 = vmatprep.subr.bf16.mxu0 0
    %2325 = vmatpush1.bf16.msra.mxu0 0
    %2326 = vmatprep.subr.bf16.mxu0 0
    %2327 = vmatpush1.bf16.msra.mxu0 0
    %2328 = vmatprep.subr.bf16.mxu0 0
    %2329 = vmatpush1.bf16.msra.mxu0 0
    %2330 = vmatprep.subr.bf16.mxu0 0
    %2331 = vmatpush1.bf16.msra.mxu0 0
    %2332 = vmatprep.subr.bf16.mxu0 0
    %2333 = vmatpush1.bf16.msra.mxu0 0
    %2334 = vmatprep.mubr.bf16.mxu0 0
    %2335 = vmatmul.mubr.bf16.gmra.mrb[0].mxu0 %v2285
    %v2336 = vpop.f32.mrb[0].mxu0
    %v2337 = vadd.f32 0.0, %v2336
    %v2338 = vpop.f32.mrb[0].mxu0
    %v2339 = vpop.f32.mrb[0].mxu0
    %v2340 = vadd.f32 0.0, %v2339
    %v2341 = vpop.f32.mrb[0].mxu0
    %2342 = vmatprep.mubr.bf16.mxu0 0
    %2343 = vmatmul.mubr.bf16.gmra.mrb[0].mxu0 %v2288
    %v2344 = vpop.f32.mrb[0].mxu0
    %v2345 = vadd.f32 0.0, %v2344
    %v2346 = vpop.f32.mrb[0].mxu0
    %v2347 = vpop.f32.mrb[0].mxu0
    %v2348 = vadd.f32 0.0, %v2347
    %v2349 = vpop.f32.mrb[0].mxu0
    %2350 = vmatprep.mubr.bf16.mxu0 0
    %2351 = vmatmul.mubr.bf16.gmra.mrb[0].mxu0 %v2291
    %v2352 = vpop.f32.mrb[0].mxu0
    %v2353 = vadd.f32 0.0, %v2352
    %v2354 = vpop.f32.mrb[0].mxu0
    %v2355 = vpop.f32.mrb[0].mxu0
    %v2356 = vadd.f32 0.0, %v2355
    %v2357 = vpop.f32.mrb[0].mxu0
    %2358 = vmatprep.mubr.bf16.mxu0 0
    %2359 = vmatmul.mubr.bf16.gmra.mrb[0].mxu0 %v2294
    %v2360 = vpop.f32.mrb[0].mxu0
    %v2361 = vadd.f32 0.0, %v2360
    %v2362 = vpop.f32.mrb[0].mxu0
    %v2363 = vpop.f32.mrb[0].mxu0
    %v2364 = vadd.f32 0.0, %v2363
    %v2365 = vpop.f32.mrb[0].mxu0
    %2366 = vmatprep.mubr.bf16.mxu0 0
    %2367 = vmatmul.mubr.bf16.gmra.mrb[0].mxu0 %v2297
    %v2368 = vpop.f32.mrb[0].mxu0
    %v2369 = vadd.f32 0.0, %v2368
    %v2370 = vpop.f32.mrb[0].mxu0
    %v2371 = vpop.f32.mrb[0].mxu0
    %v2372 = vadd.f32 0.0, %v2371
    %v2373 = vpop.f32.mrb[0].mxu0
    %2374 = vmatprep.mubr.bf16.mxu0 0
    %2375 = vmatmul.mubr.bf16.gmra.mrb[0].mxu0 %v2300
    %v2376 = vpop.f32.mrb[0].mxu0
    %v2377 = vadd.f32 0.0, %v2376
    %v2378 = vpop.f32.mrb[0].mxu0
    %v2379 = vpop.f32.mrb[0].mxu0
    %v2380 = vadd.f32 0.0, %v2379
    %v2381 = vpop.f32.mrb[0].mxu0
    %2382 = vdwg.mxu0
    %2384 = vrot.lane.b32.xlu0 %v2128, 96
    %v2385 = vpop.permute.xlu0 %2384
    %v2387 = vadd.f32 %v2337, %v2385
    %v2388 = vadd.f32 %v2340, %v2385
    %v2389 = vadd.f32 %v2345, %v2385
    %v2390 = vadd.f32 %v2348, %v2385
    %v2391 = vadd.f32 %v2353, %v2385
    %v2392 = vadd.f32 %v2356, %v2385
    %v2393 = vadd.f32 %v2361, %v2385
    %v2394 = vadd.f32 %v2364, %v2385
    %v2395 = vadd.f32 %v2369, %v2385
    %v2396 = vadd.f32 %v2372, %v2385
    %v2397 = vadd.f32 %v2377, %v2385
    %v2398 = vadd.f32 %v2380, %v2385
    %vm2399 = vcmp.ge.f32.partialorder %v2387, 0.0
    %vm2400 = vcmp.ge.f32.partialorder %v2388, 0.0
    %vm2401 = vcmp.ge.f32.partialorder %v2389, 0.0
    %vm2402 = vcmp.ge.f32.partialorder %v2390, 0.0
    %vm2403 = vcmp.ge.f32.partialorder %v2391, 0.0
    %vm2404 = vcmp.ge.f32.partialorder %v2392, 0.0
    %vm2405 = vcmp.ge.f32.partialorder %v2393, 0.0
    %vm2406 = vcmp.ge.f32.partialorder %v2394, 0.0
    %vm2407 = vcmp.ge.f32.partialorder %v2395, 0.0
    %vm2408 = vcmp.ge.f32.partialorder %v2396, 0.0
    %vm2409 = vcmp.ge.f32.partialorder %v2397, 0.0
    %vm2410 = vcmp.ge.f32.partialorder %v2398, 0.0
    %v2411 = vmul.f32 %v2387, 0.01
    %v2412 = vmul.f32 %v2388, 0.01
    %v2413 = vmul.f32 %v2389, 0.01
    %v2414 = vmul.f32 %v2390, 0.01
    %v2415 = vmul.f32 %v2391, 0.01
    %v2416 = vmul.f32 %v2392, 0.01
    %v2417 = vmul.f32 %v2393, 0.01
    %v2418 = vmul.f32 %v2394, 0.01
    %v2419 = vmul.f32 %v2395, 0.01
    %v2420 = vmul.f32 %v2396, 0.01
    %v2421 = vmul.f32 %v2397, 0.01
    %v2422 = vmul.f32 %v2398, 0.01
    %v2423 = vsel %vm2399, %v2387, %v2411
    %v2424 = vsel %vm2400, %v2388, %v2412
    %v2425 = vsel %vm2401, %v2389, %v2413
    %v2426 = vsel %vm2402, %v2390, %v2414
    %v2427 = vsel %vm2403, %v2391, %v2415
    %v2428 = vsel %vm2404, %v2392, %v2416
    %v2429 = vsel %vm2405, %v2393, %v2417
    %v2430 = vsel %vm2406, %v2394, %v2418
    %v2431 = vsel %vm2407, %v2395, %v2419
    %v2432 = vsel %vm2408, %v2396, %v2420
    %v2433 = vsel %vm2409, %v2397, %v2421
    %v2434 = vsel %vm2410, %v2398, %v2422
    %v2435 = vpack.c.bf16 %v2424, %v2423
    %v2436 = vpack.c.bf16 %v2426, %v2425
    %v2437 = vpack.c.bf16 %v2428, %v2427
    %v2438 = vpack.c.bf16 %v2430, %v2429
    %v2439 = vpack.c.bf16 %v2432, %v2431
    %v2440 = vpack.c.bf16 %v2434, %v2433
    %v2441 = vlaneseq
    %v2442 = vshrl.u32 %v2441, 7
    %v2443 = vsub.s32 6, %v2442
    %v2444 = vrot.slane %v30, %v2443
    %v2449 = vunpack.c.l.b16 %v66
    %v2450 = vunpack.c.l.b16 %v67
    %v2451 = vunpack.c.l.b16 %v68
    %v2452 = vunpack.c.l.b16 %v69
    %v2453 = vpack.c.b16 %v2450, %v2449
    %v2454 = vpack.c.b16 %v2452, %v2451
    %v2458 = vsel %vm213, %v2435, 0
    %v2461 = vsel %vm213, %v2436, 0
    %v2464 = vsel %vm213, %v2437, 0
    %v2467 = vsel %vm213, %v2438, 0
    %v2470 = vsel %vm213, %v2439, 0
    %v2473 = vsel %vm213, %v2440, 0
    %2475 = vmatprep.subr.bf16.mxu0 0
    %2476 = vmatpush1.bf16.msra.mxu0 %v2453
    %2477 = vmatprep.subr.bf16.mxu0 0
    %2478 = vmatpush1.bf16.msra.mxu0 %v2454
    %2479 = vmatprep.subr.bf16.mxu0 0
    %2480 = vmatpush1.bf16.msra.mxu0 0
    %2481 = vmatprep.subr.bf16.mxu0 0
    %2482 = vmatpush1.bf16.msra.mxu0 0
    %2483 = vmatprep.subr.bf16.mxu0 0
    %2484 = vmatpush1.bf16.msra.mxu0 0
    %2485 = vmatprep.subr.bf16.mxu0 0
    %2486 = vmatpush1.bf16.msra.mxu0 0
    %2487 = vmatprep.subr.bf16.mxu0 0
    %2488 = vmatpush1.bf16.msra.mxu0 0
    %2489 = vmatprep.subr.bf16.mxu0 0
    %2490 = vmatpush1.bf16.msra.mxu0 0
    %2491 = vmatprep.subr.bf16.mxu0 0
    %2492 = vmatpush1.bf16.msra.mxu0 0
    %2493 = vmatprep.subr.bf16.mxu0 0
    %2494 = vmatpush1.bf16.msra.mxu0 0
    %2495 = vmatprep.subr.bf16.mxu0 0
    %2496 = vmatpush1.bf16.msra.mxu0 0
    %2497 = vmatprep.subr.bf16.mxu0 0
    %2498 = vmatpush1.bf16.msra.mxu0 0
    %2499 = vmatprep.subr.bf16.mxu0 0
    %2500 = vmatpush1.bf16.msra.mxu0 0
    %2501 = vmatprep.subr.bf16.mxu0 0
    %2502 = vmatpush1.bf16.msra.mxu0 0
    %2503 = vmatprep.subr.bf16.mxu0 0
    %2504 = vmatpush1.bf16.msra.mxu0 0
    %2505 = vmatprep.subr.bf16.mxu0 0
    %2506 = vmatpush1.bf16.msra.mxu0 0
    %2507 = vmatprep.mubr.bf16.mxu0 0
    %2508 = vmatmul.mubr.bf16.gmra.mrb[0].mxu0 %v2458
    %v2509 = vpop.f32.mrb[0].mxu0
    %v2510 = vadd.f32 %v2444, %v2509
    %v2511 = vpop.f32.mrb[0].mxu0
    %v2512 = vpop.f32.mrb[0].mxu0
    %v2513 = vadd.f32 %v2444, %v2512
    %v2514 = vpop.f32.mrb[0].mxu0
    %2515 = vmatprep.mubr.bf16.mxu0 0
    %2516 = vmatmul.mubr.bf16.gmra.mrb[0].mxu0 %v2461
    %v2517 = vpop.f32.mrb[0].mxu0
    %v2518 = vadd.f32 %v2444, %v2517
    %v2519 = vpop.f32.mrb[0].mxu0
    %v2520 = vpop.f32.mrb[0].mxu0
    %v2521 = vadd.f32 %v2444, %v2520
    %v2522 = vpop.f32.mrb[0].mxu0
    %2523 = vmatprep.mubr.bf16.mxu0 0
    %2524 = vmatmul.mubr.bf16.gmra.mrb[0].mxu0 %v2464
    %v2525 = vpop.f32.mrb[0].mxu0
    %v2526 = vadd.f32 %v2444, %v2525
    %v2527 = vpop.f32.mrb[0].mxu0
    %v2528 = vpop.f32.mrb[0].mxu0
    %v2529 = vadd.f32 %v2444, %v2528
    %v2530 = vpop.f32.mrb[0].mxu0
    %2531 = vmatprep.mubr.bf16.mxu0 0
    %2532 = vmatmul.mubr.bf16.gmra.mrb[0].mxu0 %v2467
    %v2533 = vpop.f32.mrb[0].mxu0
    %v2534 = vadd.f32 %v2444, %v2533
    %v2535 = vpop.f32.mrb[0].mxu0
    %v2536 = vpop.f32.mrb[0].mxu0
    %v2537 = vadd.f32 %v2444, %v2536
    %v2538 = vpop.f32.mrb[0].mxu0
    %2539 = vmatprep.mubr.bf16.mxu0 0
    %2540 = vmatmul.mubr.bf16.gmra.mrb[0].mxu0 %v2470
    %v2541 = vpop.f32.mrb[0].mxu0
    %v2542 = vadd.f32 %v2444, %v2541
    %v2543 = vpop.f32.mrb[0].mxu0
    %v2544 = vpop.f32.mrb[0].mxu0
    %v2545 = vadd.f32 %v2444, %v2544
    %v2546 = vpop.f32.mrb[0].mxu0
    %2547 = vmatprep.mubr.bf16.mxu0 0
    %2548 = vmatmul.mubr.bf16.gmra.mrb[0].mxu0 %v2473
    %v2549 = vpop.f32.mrb[0].mxu0
    %v2550 = vadd.f32 %v2444, %v2549
    %v2551 = vpop.f32.mrb[0].mxu0
    %v2552 = vpop.f32.mrb[0].mxu0
    %v2553 = vadd.f32 %v2444, %v2552
    %v2554 = vpop.f32.mrb[0].mxu0
    %2555 = vdwg.mxu0
    %v2556 = vadd.f32 %v2243, %v2510
    %v2557 = vadd.f32 %v2556, %v2513
    %v2558 = vadd.f32 %v2557, %v2518
    %v2559 = vadd.f32 %v2558, %v2521
    %v2560 = vadd.f32 %v2559, %v2526
    %v2561 = vadd.f32 %v2560, %v2529
    %v2562 = vadd.f32 %v2561, %v2534
    %v2563 = vadd.f32 %v2562, %v2537
    %v2564 = vadd.f32 %v2563, %v2542
    %v2565 = vadd.f32 %v2564, %v2545
    %v2566 = vadd.f32 %v2565, %v2550
    %v2567 = vadd.f32 %v2566, %v2553
    %2573 = vrot.lane.b32.xlu0 %v379, 32
    %v2574 = vpop.permute.xlu0 %2573
    %2575 = vrot.lane.b32.xlu0 %v528, 32
    %v2576 = vpop.permute.xlu0 %2575
    %2577 = vrot.lane.b32.xlu0 %v677, 32
    %v2578 = vpop.permute.xlu0 %2577
    %2579 = vrot.lane.b32.xlu0 %v826, 32
    %v2580 = vpop.permute.xlu0 %2579
    %2581 = vrot.lane.b32.xlu0 %v975, 32
    %v2582 = vpop.permute.xlu0 %2581
    %2583 = vrot.lane.b32.xlu0 %v1124, 32
    %v2584 = vpop.permute.xlu0 %2583
    %2585 = vrot.lane.b32.xlu0 %v1273, 32
    %v2586 = vpop.permute.xlu0 %2585
    %2587 = vrot.lane.b32.xlu0 %v1422, 32
    %v2588 = vpop.permute.xlu0 %2587
    %2589 = vrot.lane.b32.xlu0 %v1644, 32
    %v2590 = vpop.permute.xlu0 %2589
    %2591 = vrot.lane.b32.xlu0 %v1786, 32
    %v2592 = vpop.permute.xlu0 %2591
    %2593 = vrot.lane.b32.xlu0 %v1928, 32
    %v2594 = vpop.permute.xlu0 %2593
    %2595 = vrot.lane.b32.xlu0 %v2070, 32
    %v2596 = vpop.permute.xlu0 %2595
    %2621 = vrot.lane.b32.xlu0 %v2556, 32
    %v2622 = vpop.permute.xlu0 %2621
    %2623 = vrot.lane.b32.xlu0 %v2557, 32
    %v2624 = vpop.permute.xlu0 %2623
    %2625 = vrot.lane.b32.xlu0 %v2558, 32
    %v2626 = vpop.permute.xlu0 %2625
    %2627 = vrot.lane.b32.xlu0 %v2559, 32
    %v2628 = vpop.permute.xlu0 %2627
    %2629 = vrot.lane.b32.xlu0 %v2560, 32
    %v2630 = vpop.permute.xlu0 %2629
    %2631 = vrot.lane.b32.xlu0 %v2561, 32
    %v2632 = vpop.permute.xlu0 %2631
    %2633 = vrot.lane.b32.xlu0 %v2562, 32
    %v2634 = vpop.permute.xlu0 %2633
    %2635 = vrot.lane.b32.xlu0 %v2563, 32
    %v2636 = vpop.permute.xlu0 %2635
    %2637 = vrot.lane.b32.xlu0 %v2564, 32
    %v2638 = vpop.permute.xlu0 %2637
    %2639 = vrot.lane.b32.xlu0 %v2565, 32
    %v2640 = vpop.permute.xlu0 %2639
    %2641 = vrot.lane.b32.xlu0 %v2566, 32
    %v2642 = vpop.permute.xlu0 %2641
    %2643 = vrot.lane.b32.xlu0 %v2567, 32
    %v2644 = vpop.permute.xlu0 %2643
    %2658 = vrot.lane.b32.xlu0 %v1481, 40
    %v2659 = vpop.permute.xlu0 %2658
    %v2661 = vsel %vm213, %v2574, %v2622
    %v2662 = vsel %vm213, %v2576, %v2624
    %v2663 = vsel %vm213, %v2578, %v2626
    %v2664 = vsel %vm213, %v2580, %v2628
    %v2665 = vsel %vm213, %v2582, %v2630
    %v2666 = vsel %vm213, %v2584, %v2632
    %v2667 = vsel %vm213, %v2586, %v2634
    %v2668 = vsel %vm213, %v2588, %v2636
    %v2669 = vsel %vm213, %v2590, %v2638
    %v2670 = vsel %vm213, %v2592, %v2640
    %v2671 = vsel %vm213, %v2594, %v2642
    %v2672 = vsel %vm213, %v2596, %v2644
    %vm2673 = vcmask 326656
    %v2674 = vsel %vm2673, %v2661, %v2659
    %v2675 = vsel %vm2673, %v2662, %v2659
    %v2676 = vsel %vm2673, %v2663, %v2659
    %v2677 = vsel %vm2673, %v2664, %v2659
    %v2678 = vsel %vm2673, %v2665, %v2659
    %v2679 = vsel %vm2673, %v2666, %v2659
    %v2680 = vsel %vm2673, %v2667, %v2659
    %v2681 = vsel %vm2673, %v2668, %v2659
    %v2682 = vsel %vm2673, %v2669, %v2659
    %v2683 = vsel %vm2673, %v2670, %v2659
    %v2684 = vsel %vm2673, %v2671, %v2659
    %v2685 = vsel %vm2673, %v2672, %v2659
    %v2686 = vsel %vm123, %v2674, 0.0
    %v2687 = vsel %vm123, %v2675, 0.0
    %v2688 = vsel %vm123, %v2676, 0.0
    %v2689 = vsel %vm123, %v2677, 0.0
    %v2690 = vsel %vm123, %v2678, 0.0
    %v2691 = vsel %vm123, %v2679, 0.0
    %v2692 = vsel %vm123, %v2680, 0.0
    %v2693 = vsel %vm123, %v2681, 0.0
    %v2694 = vsel %vm123, %v2682, 0.0
    %v2695 = vsel %vm123, %v2683, 0.0
    %v2696 = vsel %vm123, %v2684, 0.0
    %v2697 = vsel %vm123, %v2685, 0.0
    %2698 = vst [vmem:[#allocation5] sm:$0xff] %v2686
    %2699 = vst [vmem:[#allocation5 + $0x8] sm:$0xff] %v2687
    %2700 = vst [vmem:[#allocation5 + $0x10] sm:$0xff] %v2688
    %2701 = vst [vmem:[#allocation5 + $0x18] sm:$0xff] %v2689
    %2702 = vst [vmem:[#allocation5 + $0x20] sm:$0xff] %v2690
    %2703 = vst [vmem:[#allocation5 + $0x28] sm:$0xff] %v2691
    %2704 = vst [vmem:[#allocation5 + $0x30] sm:$0xff] %v2692
    %2705 = vst [vmem:[#allocation5 + $0x38] sm:$0xff] %v2693
    %2706 = vst [vmem:[#allocation5 + $0x40] sm:$0xff] %v2694
    %2707 = vst [vmem:[#allocation5 + $0x48] sm:$0xff] %v2695
    %2708 = vst [vmem:[#allocation5 + $0x50] sm:$0xff] %v2696
    %2709 = vst [vmem:[#allocation5 + $0x58] sm:$0xff] %v2697
    // Predicated region
    $region18: #{tpu_custom_call.1} parent=1 // pred_check
      _
    $region19: #{tpu_custom_call.1} parent=1 // pred_check_branch
      %2711 = sbr.rel (0) target = $region21
    $region20: #{tpu_custom_call.1} parent=1 // pred_region
      %s2713 = ssub.s32 1536, 1536
      %2714 = vsyncadd [#allocation4], %s2713
      %s2715 = sshll.u32 [#allocation5], 4
      %s2716 = int_to_ptr.vmem [resolvable:$true] %s2715
      %2721 = dma.vmem_to_hbm [thread:$0]  %s2716, 1536, %s3, [#allocation4], 128, 128, 8
    $region21: #{tpu_custom_call.1} parent=1 // pred_fallthru
      _
    // Predicated region
    $region22: #{tpu_custom_call.1} parent=1 // pred_check
      _
    $region23: #{tpu_custom_call.1} parent=1 // pred_check_branch
      %2723 = sbr.rel (0) target = $region25
    $region24: #{tpu_custom_call.1} parent=1 // pred_region
      %2724 = dma.done [#allocation4], 1536
    $region25: #{tpu_custom_call.1} parent=1 // pred_fallthru
      _
    %2725 = vsyncpa [#allocation3], 1
    %2726 = vsyncpa [#allocation4], 1

</llo_original>
